<compile_context>
chip_gen: v7x
topology: tpu7x:2x2x1
jax: 0.10.0
libtpu: 0.0.40
codegen_flags: <defaults>
</compile_context>

<pallas_src>
import functools

import jax
import jax.numpy as jnp
from jax.experimental import pallas as pl
from jax.experimental.pallas import tpu as pltpu

# Keep the XLA reference matmuls and in-kernel dots at full f32 precision so
# the numerical comparison at the bottom is meaningful.
jax.config.update("jax_default_matmul_precision", "highest")


# ---------------------------------------------------------------------------
# Tiling helpers (generation-aware, v7x 64 MiB VMEM safe)
# ---------------------------------------------------------------------------
def _pick_tile(total: int, cap: int) -> int:
    """Largest multiple-of-8 tile <= cap that exactly divides `total`, else `total`."""
    if total <= cap:
        return total
    t = (cap // 8) * 8
    while t >= 8:
        if total % t == 0:
            return t
        t -= 8
    return total


def _proj_row_tile(rows: int, d: int, n4: int, itemsize: int, vmem_budget: int) -> int:
    """Row tile for the projection kernel from an explicit per-step VMEM formula.

    per-step VMEM ~ 2*(D*4N + 4N)  (weights/biases, conservatively double-buffered)
                  + 2*TM*(3D + 4N) (double-buffered input + output row tiles)
    """
    fixed = 2 * (d * n4 + n4) * itemsize
    cap = 1024
    while cap > 8:
        per_step = 2 * cap * (3 * d + n4) * itemsize
        if fixed + per_step <= vmem_budget:
            break
        cap //= 2
    return _pick_tile(rows, cap)


# ---------------------------------------------------------------------------
# Kernel 1: fused linear projections  K, V, [Q | R]
# ---------------------------------------------------------------------------
def _proj_kernel(key_ref, value_ref, query_ref,
                 wk_ref, bk_ref, wv_ref, bv_ref, wqr_ref, bqr_ref,
                 k_out_ref, v_out_ref, qr_out_ref):
    # key/value/query refs: (TM, D) row tiles; weights are fully resident.
    k_out_ref[...] = (
        jnp.dot(key_ref[...], wk_ref[...], preferred_element_type=jnp.float32)
        + bk_ref[...]).astype(k_out_ref.dtype)
    v_out_ref[...] = (
        jnp.dot(value_ref[...], wv_ref[...], preferred_element_type=jnp.float32)
        + bv_ref[...]).astype(v_out_ref.dtype)
    # Q and residual projections share one wide (D, 2N) matmul (both read query0).
    qr_out_ref[...] = (
        jnp.dot(query_ref[...], wqr_ref[...], preferred_element_type=jnp.float32)
        + bqr_ref[...]).astype(qr_out_ref.dtype)


# ---------------------------------------------------------------------------
# Kernel 2: flash (online-softmax) attention + residual add + ReLU epilogue
#   grid = (B*H, q_tiles, kv_tiles); KV axis is the innermost ("arbitrary")
#   reduction; m/l/acc live in VMEM scratch across KV steps.
# ---------------------------------------------------------------------------
def _flash_attn_kernel(q_ref, k_ref, v_ref, r_ref, o_ref,
                       m_sc, l_sc, acc_sc, *, scale):
    kv = pl.program_id(2)

    @pl.when(kv == 0)
    def _():
        m_sc[...] = jnp.full(m_sc.shape, -jnp.inf, dtype=m_sc.dtype)
        l_sc[...] = jnp.zeros(l_sc.shape, dtype=l_sc.dtype)
        acc_sc[...] = jnp.zeros(acc_sc.shape, dtype=acc_sc.dtype)

    # Fold the softmax scale into Q (dk-wide) instead of the (TQ, TK) scores.
    q = q_ref[0] * scale                                    # (TQ, dk), input dtype
    k = k_ref[0]                                            # (TK, dk)
    v = v_ref[0]                                            # (TK, dk)

    # Scores for this KV tile; MXU consumes the input dtype, accumulates f32.
    s = jax.lax.dot_general(q, k, (((1,), (1,)), ((), ())),
                            preferred_element_type=jnp.float32)   # (TQ, TK)

    m_prev = m_sc[...]
    m_new = jnp.maximum(m_prev, jnp.max(s, axis=-1, keepdims=True))
    alpha = jnp.exp(m_prev - m_new)                         # (TQ, 1)
    p = jnp.exp(s - m_new)                                  # (TQ, TK) f32

    l_sc[...] = alpha * l_sc[...] + jnp.sum(p, axis=-1, keepdims=True)
    acc_sc[...] = alpha * acc_sc[...] + jax.lax.dot_general(
        p.astype(v.dtype), v, (((1,), (0,)), ((), ())),
        preferred_element_type=jnp.float32)                 # (TQ, dk) f32
    m_sc[...] = m_new

    @pl.when(kv == pl.num_programs(2) - 1)
    def _():
        # Normalization deferred to the epilogue; approx reciprocal uses the
        # otherwise-idle EUP slot, one Newton step (on a (TQ,1) column) keeps
        # full f32 accuracy for negligible VPU cost.
        l = l_sc[...]
        inv_l = pl.reciprocal(l, approx=True)
        inv_l = inv_l * (2.0 - l * inv_l)
        ctx = acc_sc[...] * inv_l                            # (TQ, dk) f32
        # dropout(p=0.0) is the identity -> omitted.
        o_ref[0] = jnp.maximum(ctx + r_ref[0].astype(jnp.float32),
                               0.0).astype(o_ref.dtype)      # relu(residual + ctx)


# ---------------------------------------------------------------------------
# Wrapper
# ---------------------------------------------------------------------------
@functools.partial(jax.jit, static_argnames=("num_heads", "dim_per_head"))
def multi_head_attention_l(key0, value0, query0, params, *,
                           num_heads, dim_per_head, attn_mask=None):
    del attn_mask  # accepted but unused, exactly as in the PyTorch module
    B, S, D = query0.shape
    H, dk = num_heads, dim_per_head
    N = H * dk
    BS = B * S
    BH = B * H
    dtype = query0.dtype
    itemsize = jnp.dtype(dtype).itemsize

    # --- 1. fused linear projections -------------------------------------
    # TODO(synk): when key0 is value0 is query0 (self-attention), fuse all four
    # weights into one (D, 4N) operand so the input streams from HBM only once.
    wqr = jnp.concatenate([params["wq"], params["wr"]], axis=1)        # (D, 2N)
    bqr = jnp.concatenate([params["bq"], params["br"]], axis=0).reshape(1, 2 * N)
    bk = params["bk"].reshape(1, N)
    bv = params["bv"].reshape(1, N)

    key_flat = key0.reshape(BS, D)
    value_flat = value0.reshape(BS, D)
    query_flat = query0.reshape(BS, D)

    # 32 MiB scoped-VMEM cap is valid on every generation (above v5e's 16 MiB
    # default, well under v7x's 64 MiB physical); tiles are sized for ~24 MiB.
    vmem_cap = 32 * 1024 * 1024
    TM = _proj_row_tile(BS, D, 4 * N, itemsize, vmem_budget=24 * 1024 * 1024)
    n_row_tiles = BS // TM

    proj_cost = pl.CostEstimate(
        flops=2 * BS * D * 4 * N,
        transcendentals=0,
        bytes_accessed=itemsize * (3 * BS * D + D * 4 * N + 4 * N + BS * 4 * N),
    )

    k_flat, v_flat, qr_flat = pl.pallas_call(
        _proj_kernel,
        out_shape=(
            jax.ShapeDtypeStruct((BS, N), dtype),
            jax.ShapeDtypeStruct((BS, N), dtype),
            jax.ShapeDtypeStruct((BS, 2 * N), dtype),
        ),
        grid_spec=pltpu.PrefetchScalarGridSpec(
            num_scalar_prefetch=0,
            grid=(n_row_tiles,),
            in_specs=[
                pl.BlockSpec((TM, D), lambda i: (i, 0)),
                pl.BlockSpec((TM, D), lambda i: (i, 0)),
                pl.BlockSpec((TM, D), lambda i: (i, 0)),
                pl.BlockSpec((D, N), lambda i: (0, 0)),
                pl.BlockSpec((1, N), lambda i: (0, 0)),
                pl.BlockSpec((D, N), lambda i: (0, 0)),
                pl.BlockSpec((1, N), lambda i: (0, 0)),
                pl.BlockSpec((D, 2 * N), lambda i: (0, 0)),
                pl.BlockSpec((1, 2 * N), lambda i: (0, 0)),
            ],
            out_specs=(
                pl.BlockSpec((TM, N), lambda i: (i, 0)),
                pl.BlockSpec((TM, N), lambda i: (i, 0)),
                pl.BlockSpec((TM, 2 * N), lambda i: (i, 0)),
            ),
        ),
        compiler_params=pltpu.CompilerParams(
            dimension_semantics=("parallel",),
            vmem_limit_bytes=vmem_cap,
        ),
        cost_estimate=proj_cost,
    )(key_flat, value_flat, query_flat,
      params["wk"], bk, params["wv"], bv, wqr, bqr)

    # PyTorch's `.view(B*H, S, dk)` of the (B, S, H*dk) projection is a pure
    # row-major reinterpretation; the reshapes below are exactly that (free,
    # bit-identical regrouping -- no transpose, no copy for k/v).
    kh = k_flat.reshape(BH, S, dk)
    vh = v_flat.reshape(BH, S, dk)
    qh = qr_flat[:, :N].reshape(BH, S, dk)
    rh = qr_flat[:, N:].reshape(BH, S, dk)

    # Matches the PyTorch quirk: scale = (key.size(-1) // num_heads) ** -0.5
    # with key.size(-1) == dk.  NOTE: integer floor division -- num_heads > dk
    # would raise (0 ** -0.5) exactly as the original module would.
    scale = float((dk // H) ** (-0.5))

    # --- 2. flash attention + residual + ReLU -----------------------------
    TQ = _pick_tile(S, 256)
    TK = _pick_tile(S, 512)
    n_q, n_kv = S // TQ, S // TK

    attn_cost = pl.CostEstimate(
        flops=4 * BH * S * S * dk,
        transcendentals=BH * S * S,
        bytes_accessed=itemsize * 5 * BH * S * dk,
    )

    out_h = pl.pallas_call(
        functools.partial(_flash_attn_kernel, scale=scale),
        out_shape=jax.ShapeDtypeStruct((BH, S, dk), dtype),
        grid_spec=pltpu.PrefetchScalarGridSpec(
            num_scalar_prefetch=0,
            grid=(BH, n_q, n_kv),
            in_specs=[
                pl.BlockSpec((1, TQ, dk), lambda b, qi, ki: (b, qi, 0)),  # q
                pl.BlockSpec((1, TK, dk), lambda b, qi, ki: (b, ki, 0)),  # k
                pl.BlockSpec((1, TK, dk), lambda b, qi, ki: (b, ki, 0)),  # v
                pl.BlockSpec((1, TQ, dk), lambda b, qi, ki: (b, qi, 0)),  # residual
            ],
            out_specs=pl.BlockSpec((1, TQ, dk), lambda b, qi, ki: (b, qi, 0)),
            scratch_shapes=[
                pltpu.VMEM((TQ, 1), jnp.float32),    # m (running max)
                pltpu.VMEM((TQ, 1), jnp.float32),    # l (running denom)
                pltpu.VMEM((TQ, dk), jnp.float32),   # unnormalized accumulator
            ],
        ),
        compiler_params=pltpu.CompilerParams(
            dimension_semantics=("parallel", "parallel", "arbitrary"),
            vmem_limit_bytes=vmem_cap,
        ),
        cost_estimate=attn_cost,
    )(qh, kh, vh, rh)

    # `.view(batch_size, -1, dk * num_heads)`: same row-major reinterpretation.
    return out_h.reshape(B, S, N)


# ---------------------------------------------------------------------------
# Pure-JAX reference mirroring the PyTorch module line-by-line.
# ---------------------------------------------------------------------------
def _reference(key0, value0, query0, params, num_heads, dim_per_head):
    B = key0.shape[0]
    H, dk = num_heads, dim_per_head
    N = H * dk
    key = key0 @ params["wk"] + params["bk"]
    value = value0 @ params["wv"] + params["bv"]
    query = query0 @ params["wq"] + params["bq"]
    key = key.reshape(B * H, -1, dk)
    value = value.reshape(B * H, -1, dk)
    query = query.reshape(B * H, -1, dk)
    scale = (dk // H) ** (-0.5)
    attention = jnp.einsum("bqd,bkd->bqk", query, key) * scale
    attention = jax.nn.softmax(attention, axis=2)
    context = jnp.einsum("bqk,bkd->bqd", attention, value)
    context = context.reshape(B, -1, N)
    residual = (query0 @ params["wr"] + params["br"]).reshape(B, -1, N)
    return jnp.maximum(residual + context, 0.0)


if __name__ == "__main__":
    rng = jax.random.PRNGKey(0)
    B, S, model_dim = 2, 8, 32
    num_heads, dk = 4, 8          # dk // num_heads = 2  ->  scale = 2 ** -0.5
    N = num_heads * dk

    keys = jax.random.split(rng, 11)
    key0 = jax.random.normal(keys[0], (B, S, model_dim), dtype=jnp.float32)
    value0 = jax.random.normal(keys[1], (B, S, model_dim), dtype=jnp.float32)
    query0 = jax.random.normal(keys[2], (B, S, model_dim), dtype=jnp.float32)

    def init_linear(kw, kb, fan_in, fan_out):
        bound = 1.0 / (fan_in ** 0.5)
        w = jax.random.uniform(kw, (fan_in, fan_out), jnp.float32, -bound, bound)
        b = jax.random.uniform(kb, (fan_out,), jnp.float32, -bound, bound)
        return w, b

    wk, bk = init_linear(keys[3], keys[4], model_dim, N)
    wv, bv = init_linear(keys[5], keys[6], model_dim, N)
    wq, bq = init_linear(keys[7], keys[8], model_dim, N)
    wr, br = init_linear(keys[9], keys[10], model_dim, N)
    params = dict(wk=wk, bk=bk, wv=wv, bv=bv, wq=wq, bq=bq, wr=wr, br=br)

    out = multi_head_attention_l(key0, value0, query0, params,
                                 num_heads=num_heads, dim_per_head=dk)
    out = jax.block_until_ready(out)

    ref = _reference(key0, value0, query0, params, num_heads, dk)
    assert out.shape == (B, S, N), out.shape
    max_err = float(jnp.max(jnp.abs(out - ref)))
    assert jnp.allclose(out, ref, atol=1e-3, rtol=1e-3), max_err

    print("KERNEL_OK")
</pallas_src>

<mosaic_0001>
module attributes {stable_mosaic.version = 11 : i64} {
  func.func @_proj_kernel(%arg0: i32, %arg1: memref<16x32xf32, #tpu.memory_space<vmem>>, %arg2: memref<16x32xf32, #tpu.memory_space<vmem>>, %arg3: memref<16x32xf32, #tpu.memory_space<vmem>>, %arg4: memref<32x32xf32, #tpu.memory_space<vmem>>, %arg5: memref<1x32xf32, #tpu.memory_space<vmem>>, %arg6: memref<32x32xf32, #tpu.memory_space<vmem>>, %arg7: memref<1x32xf32, #tpu.memory_space<vmem>>, %arg8: memref<32x64xf32, #tpu.memory_space<vmem>>, %arg9: memref<1x64xf32, #tpu.memory_space<vmem>>, %arg10: memref<16x32xf32, #tpu.memory_space<vmem>>, %arg11: memref<16x32xf32, #tpu.memory_space<vmem>>, %arg12: memref<16x64xf32, #tpu.memory_space<vmem>>) attributes {dimension_semantics = [#tpu.dimension_semantics<parallel>], iteration_bounds = array<i64: 1>, scalar_prefetch = 0 : i64, scratch_operands = 0 : i64, tpu.core_type = #tpu.core_type<tc>, window_params = [{transform_indices = @transform_0, window_bounds = array<i64: 16, 32>}, {transform_indices = @transform_1, window_bounds = array<i64: 16, 32>}, {transform_indices = @transform_2, window_bounds = array<i64: 16, 32>}, {pipeline_mode = #tpu.pipeline_mode<synchronous>, transform_indices = @transform_3, window_bounds = array<i64: 32, 32>}, {pipeline_mode = #tpu.pipeline_mode<synchronous>, transform_indices = @transform_4, window_bounds = array<i64: 1, 32>}, {pipeline_mode = #tpu.pipeline_mode<synchronous>, transform_indices = @transform_5, window_bounds = array<i64: 32, 32>}, {pipeline_mode = #tpu.pipeline_mode<synchronous>, transform_indices = @transform_6, window_bounds = array<i64: 1, 32>}, {pipeline_mode = #tpu.pipeline_mode<synchronous>, transform_indices = @transform_7, window_bounds = array<i64: 32, 64>}, {pipeline_mode = #tpu.pipeline_mode<synchronous>, transform_indices = @transform_8, window_bounds = array<i64: 1, 64>}, {transform_indices = @transform_9, window_bounds = array<i64: 16, 32>}, {transform_indices = @transform_10, window_bounds = array<i64: 16, 32>}, {transform_indices = @transform_11, window_bounds = array<i64: 16, 64>}]} {
    %c0 = arith.constant 0 : index
    %c0_0 = arith.constant 0 : index
    %0 = vector.load %arg1[%c0, %c0_0] : memref<16x32xf32, #tpu.memory_space<vmem>>, vector<16x32xf32>
    %c0_1 = arith.constant 0 : index
    %c0_2 = arith.constant 0 : index
    %1 = vector.load %arg4[%c0_1, %c0_2] : memref<32x32xf32, #tpu.memory_space<vmem>>, vector<32x32xf32>
    %cst = arith.constant dense<0.000000e+00> : vector<16x32xf32>
    %2 = tpu.matmul %0, %1, %cst {dimension_numbers = #tpu.dot_dimension_numbers<[1], [0], [0], [1], [0, 0, 1, 1], [], []>, precision = #tpu.contract_precision<fp32>} : vector<16x32xf32>, vector<32x32xf32>, vector<16x32xf32> -> vector<16x32xf32>
    %c0_3 = arith.constant 0 : index
    %c0_4 = arith.constant 0 : index
    %3 = vector.load %arg5[%c0_3, %c0_4] : memref<1x32xf32, #tpu.memory_space<vmem>>, vector<1x32xf32>
    %4 = vector.broadcast %3 : vector<1x32xf32> to vector<16x32xf32>
    %5 = arith.addf %2, %4 : vector<16x32xf32>
    %c0_5 = arith.constant 0 : index
    %c0_6 = arith.constant 0 : index
    %6 = vector.load %arg10[%c0_5, %c0_6] : memref<16x32xf32, #tpu.memory_space<vmem>>, vector<16x32xf32>
    tpu.vector_store %arg10[%c0_5, %c0_6], %5 {strides = array<i32>} : memref<16x32xf32, #tpu.memory_space<vmem>>, vector<16x32xf32>,
    %c0_7 = arith.constant 0 : index
    %c0_8 = arith.constant 0 : index
    %7 = vector.load %arg2[%c0_7, %c0_8] : memref<16x32xf32, #tpu.memory_space<vmem>>, vector<16x32xf32>
    %c0_9 = arith.constant 0 : index
    %c0_10 = arith.constant 0 : index
    %8 = vector.load %arg6[%c0_9, %c0_10] : memref<32x32xf32, #tpu.memory_space<vmem>>, vector<32x32xf32>
    %cst_11 = arith.constant dense<0.000000e+00> : vector<16x32xf32>
    %9 = tpu.matmul %7, %8, %cst_11 {dimension_numbers = #tpu.dot_dimension_numbers<[1], [0], [0], [1], [0, 0, 1, 1], [], []>, precision = #tpu.contract_precision<fp32>} : vector<16x32xf32>, vector<32x32xf32>, vector<16x32xf32> -> vector<16x32xf32>
    %c0_12 = arith.constant 0 : index
    %c0_13 = arith.constant 0 : index
    %10 = vector.load %arg7[%c0_12, %c0_13] : memref<1x32xf32, #tpu.memory_space<vmem>>, vector<1x32xf32>
    %11 = vector.broadcast %10 : vector<1x32xf32> to vector<16x32xf32>
    %12 = arith.addf %9, %11 : vector<16x32xf32>
    %c0_14 = arith.constant 0 : index
    %c0_15 = arith.constant 0 : index
    %13 = vector.load %arg11[%c0_14, %c0_15] : memref<16x32xf32, #tpu.memory_space<vmem>>, vector<16x32xf32>
    tpu.vector_store %arg11[%c0_14, %c0_15], %12 {strides = array<i32>} : memref<16x32xf32, #tpu.memory_space<vmem>>, vector<16x32xf32>,
    %c0_16 = arith.constant 0 : index
    %c0_17 = arith.constant 0 : index
    %14 = vector.load %arg3[%c0_16, %c0_17] : memref<16x32xf32, #tpu.memory_space<vmem>>, vector<16x32xf32>
    %c0_18 = arith.constant 0 : index
    %c0_19 = arith.constant 0 : index
    %15 = vector.load %arg8[%c0_18, %c0_19] : memref<32x64xf32, #tpu.memory_space<vmem>>, vector<32x64xf32>
    %cst_20 = arith.constant dense<0.000000e+00> : vector<16x64xf32>
    %16 = tpu.matmul %14, %15, %cst_20 {dimension_numbers = #tpu.dot_dimension_numbers<[1], [0], [0], [1], [0, 0, 1, 1], [], []>, precision = #tpu.contract_precision<fp32>} : vector<16x32xf32>, vector<32x64xf32>, vector<16x64xf32> -> vector<16x64xf32>
    %c0_21 = arith.constant 0 : index
    %c0_22 = arith.constant 0 : index
    %17 = vector.load %arg9[%c0_21, %c0_22] : memref<1x64xf32, #tpu.memory_space<vmem>>, vector<1x64xf32>
    %18 = vector.broadcast %17 : vector<1x64xf32> to vector<16x64xf32>
    %19 = arith.addf %16, %18 : vector<16x64xf32>
    %c0_23 = arith.constant 0 : index
    %c0_24 = arith.constant 0 : index
    %20 = vector.load %arg12[%c0_23, %c0_24] : memref<16x64xf32, #tpu.memory_space<vmem>>, vector<16x64xf32>
    tpu.vector_store %arg12[%c0_23, %c0_24], %19 {strides = array<i32>} : memref<16x64xf32, #tpu.memory_space<vmem>>, vector<16x64xf32>,
    return
  }
  func.func @transform_0(%arg0: i32) -> (i32, i32) {
    %c0_i32 = arith.constant 0 : i32
    %c0_i32_0 = arith.constant 0 : i32
    return %arg0, %c0_i32 : i32, i32
  }
  func.func @transform_1(%arg0: i32) -> (i32, i32) {
    %c0_i32 = arith.constant 0 : i32
    %c0_i32_0 = arith.constant 0 : i32
    return %arg0, %c0_i32 : i32, i32
  }
  func.func @transform_2(%arg0: i32) -> (i32, i32) {
    %c0_i32 = arith.constant 0 : i32
    %c0_i32_0 = arith.constant 0 : i32
    return %arg0, %c0_i32 : i32, i32
  }
  func.func @transform_3(%arg0: i32) -> (i32, i32) {
    %c0_i32 = arith.constant 0 : i32
    %c0_i32_0 = arith.constant 0 : i32
    %c0_i32_1 = arith.constant 0 : i32
    return %c0_i32, %c0_i32_0 : i32, i32
  }
  func.func @transform_4(%arg0: i32) -> (i32, i32) {
    %c0_i32 = arith.constant 0 : i32
    %c0_i32_0 = arith.constant 0 : i32
    %c0_i32_1 = arith.constant 0 : i32
    return %c0_i32, %c0_i32_0 : i32, i32
  }
  func.func @transform_5(%arg0: i32) -> (i32, i32) {
    %c0_i32 = arith.constant 0 : i32
    %c0_i32_0 = arith.constant 0 : i32
    %c0_i32_1 = arith.constant 0 : i32
    return %c0_i32, %c0_i32_0 : i32, i32
  }
  func.func @transform_6(%arg0: i32) -> (i32, i32) {
    %c0_i32 = arith.constant 0 : i32
    %c0_i32_0 = arith.constant 0 : i32
    %c0_i32_1 = arith.constant 0 : i32
    return %c0_i32, %c0_i32_0 : i32, i32
  }
  func.func @transform_7(%arg0: i32) -> (i32, i32) {
    %c0_i32 = arith.constant 0 : i32
    %c0_i32_0 = arith.constant 0 : i32
    %c0_i32_1 = arith.constant 0 : i32
    return %c0_i32, %c0_i32_0 : i32, i32
  }
  func.func @transform_8(%arg0: i32) -> (i32, i32) {
    %c0_i32 = arith.constant 0 : i32
    %c0_i32_0 = arith.constant 0 : i32
    %c0_i32_1 = arith.constant 0 : i32
    return %c0_i32, %c0_i32_0 : i32, i32
  }
  func.func @transform_9(%arg0: i32) -> (i32, i32) {
    %c0_i32 = arith.constant 0 : i32
    %c0_i32_0 = arith.constant 0 : i32
    return %arg0, %c0_i32 : i32, i32
  }
  func.func @transform_10(%arg0: i32) -> (i32, i32) {
    %c0_i32 = arith.constant 0 : i32
    %c0_i32_0 = arith.constant 0 : i32
    return %arg0, %c0_i32 : i32, i32
  }
  func.func @transform_11(%arg0: i32) -> (i32, i32) {
    %c0_i32 = arith.constant 0 : i32
    %c0_i32_0 = arith.constant 0 : i32
    return %arg0, %c0_i32 : i32, i32
  }
}

module attributes {stable_mosaic.version = 11 : i64} {
  func.func @_flash_attn_kernel(%arg0: i32, %arg1: i32, %arg2: i32, %arg3: memref<1x8x8xf32, #tpu.memory_space<vmem>>, %arg4: memref<1x8x8xf32, #tpu.memory_space<vmem>>, %arg5: memref<1x8x8xf32, #tpu.memory_space<vmem>>, %arg6: memref<1x8x8xf32, #tpu.memory_space<vmem>>, %arg7: memref<1x8x8xf32, #tpu.memory_space<vmem>>, %arg8: memref<8x1xf32, #tpu.memory_space<vmem>>, %arg9: memref<8x1xf32, #tpu.memory_space<vmem>>, %arg10: memref<8x8xf32, #tpu.memory_space<vmem>>) attributes {dimension_semantics = [#tpu.dimension_semantics<parallel>, #tpu.dimension_semantics<parallel>, #tpu.dimension_semantics<arbitrary>], iteration_bounds = array<i64: 8, 1, 1>, scalar_prefetch = 0 : i64, scratch_operands = 3 : i64, tpu.core_type = #tpu.core_type<tc>, window_params = [{transform_indices = @transform_0, window_bounds = array<i64: 1, 8, 8>}, {transform_indices = @transform_1, window_bounds = array<i64: 1, 8, 8>}, {transform_indices = @transform_2, window_bounds = array<i64: 1, 8, 8>}, {transform_indices = @transform_3, window_bounds = array<i64: 1, 8, 8>}, {transform_indices = @transform_4, window_bounds = array<i64: 1, 8, 8>}]} {
    %c0_i32 = arith.constant 0 : i32
    %0 = arith.cmpi eq, %arg2, %c0_i32 : i32
    %1 = arith.extui %0 : i1 to i32
    %c0_i32_0 = arith.constant 0 : i32
    %2 = arith.cmpi ne, %1, %c0_i32_0 : i32
    scf.if %2 {
      %cst_27 = arith.constant 0xFF800000 : f32
      %37 = vector.broadcast %cst_27 : f32 to vector<8x1xf32>
      %c0_28 = arith.constant 0 : index
      %c0_29 = arith.constant 0 : index
      %38 = vector.load %arg8[%c0_28, %c0_29] : memref<8x1xf32, #tpu.memory_space<vmem>>, vector<8x1xf32>
      tpu.vector_store %arg8[%c0_28, %c0_29], %37 {strides = array<i32>} : memref<8x1xf32, #tpu.memory_space<vmem>>, vector<8x1xf32>,
      %cst_30 = arith.constant 0.000000e+00 : f32
      %39 = vector.broadcast %cst_30 : f32 to vector<8x1xf32>
      %c0_31 = arith.constant 0 : index
      %c0_32 = arith.constant 0 : index
      %40 = vector.load %arg9[%c0_31, %c0_32] : memref<8x1xf32, #tpu.memory_space<vmem>>, vector<8x1xf32>
      tpu.vector_store %arg9[%c0_31, %c0_32], %39 {strides = array<i32>} : memref<8x1xf32, #tpu.memory_space<vmem>>, vector<8x1xf32>,
      %cst_33 = arith.constant 0.000000e+00 : f32
      %41 = vector.broadcast %cst_33 : f32 to vector<8x8xf32>
      %c0_34 = arith.constant 0 : index
      %c0_35 = arith.constant 0 : index
      %42 = vector.load %arg10[%c0_34, %c0_35] : memref<8x8xf32, #tpu.memory_space<vmem>>, vector<8x8xf32>
      tpu.vector_store %arg10[%c0_34, %c0_35], %41 {strides = array<i32>} : memref<8x8xf32, #tpu.memory_space<vmem>>, vector<8x8xf32>,
    } else {
    }
    %c0 = arith.constant 0 : index
    %c0_1 = arith.constant 0 : index
    %c0_2 = arith.constant 0 : index
    %3 = vector.load %arg3[%c0, %c0_1, %c0_2] : memref<1x8x8xf32, #tpu.memory_space<vmem>>, vector<1x8x8xf32>
    %4 = vector.shape_cast %3 : vector<1x8x8xf32> to vector<8x8xf32>
    %cst = arith.constant 0.707106769 : f32
    %5 = vector.broadcast %cst : f32 to vector<8x8xf32>
    %6 = arith.mulf %4, %5 : vector<8x8xf32>
    %c0_3 = arith.constant 0 : index
    %c0_4 = arith.constant 0 : index
    %c0_5 = arith.constant 0 : index
    %7 = vector.load %arg4[%c0_3, %c0_4, %c0_5] : memref<1x8x8xf32, #tpu.memory_space<vmem>>, vector<1x8x8xf32>
    %8 = vector.shape_cast %7 : vector<1x8x8xf32> to vector<8x8xf32>
    %c0_6 = arith.constant 0 : index
    %c0_7 = arith.constant 0 : index
    %c0_8 = arith.constant 0 : index
    %9 = vector.load %arg5[%c0_6, %c0_7, %c0_8] : memref<1x8x8xf32, #tpu.memory_space<vmem>>, vector<1x8x8xf32>
    %10 = vector.shape_cast %9 : vector<1x8x8xf32> to vector<8x8xf32>
    %cst_9 = arith.constant dense<0.000000e+00> : vector<8x8xf32>
    %11 = tpu.matmul %6, %8, %cst_9 {dimension_numbers = #tpu.dot_dimension_numbers<[1], [1], [0], [0], [0, 0, 1, 0], [], []>, precision = #tpu.contract_precision<fp32>} : vector<8x8xf32>, vector<8x8xf32>, vector<8x8xf32> -> vector<8x8xf32>
    %c0_10 = arith.constant 0 : index
    %c0_11 = arith.constant 0 : index
    %12 = vector.load %arg8[%c0_10, %c0_11] : memref<8x1xf32, #tpu.memory_space<vmem>>, vector<8x1xf32>
    %cst_12 = arith.constant dense<0xFF800000> : vector<8xf32>
    %13 = vector.multi_reduction <maximumf>, %11, %cst_12 [1] : vector<8x8xf32> to vector<8xf32>
    %14 = vector.shape_cast %13 : vector<8xf32> to vector<8x1xf32>
    %15 = arith.maximumf %12, %14 : vector<8x1xf32>
    %16 = arith.subf %12, %15 : vector<8x1xf32>
    %17 = math.exp %16 : vector<8x1xf32>
    %18 = vector.broadcast %15 : vector<8x1xf32> to vector<8x8xf32>
    %19 = arith.subf %11, %18 : vector<8x8xf32>
    %20 = math.exp %19 : vector<8x8xf32>
    %c0_13 = arith.constant 0 : index
    %c0_14 = arith.constant 0 : index
    %21 = vector.load %arg9[%c0_13, %c0_14] : memref<8x1xf32, #tpu.memory_space<vmem>>, vector<8x1xf32>
    %22 = arith.mulf %17, %21 : vector<8x1xf32>
    %cst_15 = arith.constant dense<0.000000e+00> : vector<8xf32>
    %23 = vector.multi_reduction <add>, %20, %cst_15 [1] : vector<8x8xf32> to vector<8xf32>
    %24 = vector.shape_cast %23 : vector<8xf32> to vector<8x1xf32>
    %25 = arith.addf %22, %24 : vector<8x1xf32>
    %c0_16 = arith.constant 0 : index
    %c0_17 = arith.constant 0 : index
    %26 = vector.load %arg9[%c0_16, %c0_17] : memref<8x1xf32, #tpu.memory_space<vmem>>, vector<8x1xf32>
    tpu.vector_store %arg9[%c0_16, %c0_17], %25 {strides = array<i32>} : memref<8x1xf32, #tpu.memory_space<vmem>>, vector<8x1xf32>,
    %c0_18 = arith.constant 0 : index
    %c0_19 = arith.constant 0 : index
    %27 = vector.load %arg10[%c0_18, %c0_19] : memref<8x8xf32, #tpu.memory_space<vmem>>, vector<8x8xf32>
    %28 = vector.broadcast %17 : vector<8x1xf32> to vector<8x8xf32>
    %29 = arith.mulf %28, %27 : vector<8x8xf32>
    %cst_20 = arith.constant dense<0.000000e+00> : vector<8x8xf32>
    %30 = tpu.matmul %20, %10, %cst_20 {dimension_numbers = #tpu.dot_dimension_numbers<[1], [0], [0], [1], [0, 0, 1, 1], [], []>, precision = #tpu.contract_precision<fp32>} : vector<8x8xf32>, vector<8x8xf32>, vector<8x8xf32> -> vector<8x8xf32>
    %31 = arith.addf %29, %30 : vector<8x8xf32>
    %c0_21 = arith.constant 0 : index
    %c0_22 = arith.constant 0 : index
    %32 = vector.load %arg10[%c0_21, %c0_22] : memref<8x8xf32, #tpu.memory_space<vmem>>, vector<8x8xf32>
    tpu.vector_store %arg10[%c0_21, %c0_22], %31 {strides = array<i32>} : memref<8x8xf32, #tpu.memory_space<vmem>>, vector<8x8xf32>,
    %c0_23 = arith.constant 0 : index
    %c0_24 = arith.constant 0 : index
    %33 = vector.load %arg8[%c0_23, %c0_24] : memref<8x1xf32, #tpu.memory_space<vmem>>, vector<8x1xf32>
    tpu.vector_store %arg8[%c0_23, %c0_24], %15 {strides = array<i32>} : memref<8x1xf32, #tpu.memory_space<vmem>>, vector<8x1xf32>,
    %c0_i32_25 = arith.constant 0 : i32
    %34 = arith.cmpi eq, %arg2, %c0_i32_25 : i32
    %35 = arith.extui %34 : i1 to i32
    %c0_i32_26 = arith.constant 0 : i32
    %36 = arith.cmpi ne, %35, %c0_i32_26 : i32
    scf.if %36 {
      %c0_27 = arith.constant 0 : index
      %c0_28 = arith.constant 0 : index
      %37 = vector.load %arg9[%c0_27, %c0_28] : memref<8x1xf32, #tpu.memory_space<vmem>>, vector<8x1xf32>
      %38 = tpu.reciprocal %37 {approx = true} : vector<8x1xf32> -> vector<8x1xf32>
      %39 = arith.mulf %37, %38 : vector<8x1xf32>
      %cst_29 = arith.constant 2.000000e+00 : f32
      %40 = vector.broadcast %cst_29 : f32 to vector<8x1xf32>
      %41 = arith.subf %40, %39 : vector<8x1xf32>
      %42 = arith.mulf %38, %41 : vector<8x1xf32>
      %c0_30 = arith.constant 0 : index
      %c0_31 = arith.constant 0 : index
      %43 = vector.load %arg10[%c0_30, %c0_31] : memref<8x8xf32, #tpu.memory_space<vmem>>, vector<8x8xf32>
      %44 = vector.broadcast %42 : vector<8x1xf32> to vector<8x8xf32>
      %45 = arith.mulf %43, %44 : vector<8x8xf32>
      %c0_32 = arith.constant 0 : index
      %c0_33 = arith.constant 0 : index
      %c0_34 = arith.constant 0 : index
      %46 = vector.load %arg6[%c0_32, %c0_33, %c0_34] : memref<1x8x8xf32, #tpu.memory_space<vmem>>, vector<1x8x8xf32>
      %47 = vector.shape_cast %46 : vector<1x8x8xf32> to vector<8x8xf32>
      %48 = arith.addf %45, %47 : vector<8x8xf32>
      %cst_35 = arith.constant 0.000000e+00 : f32
      %49 = vector.broadcast %cst_35 : f32 to vector<8x8xf32>
      %50 = arith.maximumf %48, %49 : vector<8x8xf32>
      %c0_36 = arith.constant 0 : index
      %c0_37 = arith.constant 0 : index
      %c0_38 = arith.constant 0 : index
      %51 = vector.load %arg7[%c0_36, %c0_37, %c0_38] : memref<1x8x8xf32, #tpu.memory_space<vmem>>, vector<1x8x8xf32>
      %52 = vector.shape_cast %51 : vector<1x8x8xf32> to vector<8x8xf32>
      %53 = vector.shape_cast %50 : vector<8x8xf32> to vector<1x8x8xf32>
      tpu.vector_store %arg7[%c0_36, %c0_37, %c0_38], %53 {strides = array<i32>} : memref<1x8x8xf32, #tpu.memory_space<vmem>>, vector<1x8x8xf32>,
    } else {
    }
    return
  }
  func.func @transform_0(%arg0: i32, %arg1: i32, %arg2: i32) -> (i32, i32, i32) {
    %c0_i32 = arith.constant 0 : i32
    %c0_i32_0 = arith.constant 0 : i32
    return %arg0, %arg1, %c0_i32 : i32, i32, i32
  }
  func.func @transform_1(%arg0: i32, %arg1: i32, %arg2: i32) -> (i32, i32, i32) {
    %c0_i32 = arith.constant 0 : i32
    %c0_i32_0 = arith.constant 0 : i32
    return %arg0, %arg2, %c0_i32 : i32, i32, i32
  }
  func.func @transform_2(%arg0: i32, %arg1: i32, %arg2: i32) -> (i32, i32, i32) {
    %c0_i32 = arith.constant 0 : i32
    %c0_i32_0 = arith.constant 0 : i32
    return %arg0, %arg2, %c0_i32 : i32, i32, i32
  }
  func.func @transform_3(%arg0: i32, %arg1: i32, %arg2: i32) -> (i32, i32, i32) {
    %c0_i32 = arith.constant 0 : i32
    %c0_i32_0 = arith.constant 0 : i32
    return %arg0, %arg1, %c0_i32 : i32, i32, i32
  }
  func.func @transform_4(%arg0: i32, %arg1: i32, %arg2: i32) -> (i32, i32, i32) {
    %c0_i32 = arith.constant 0 : i32
    %c0_i32_0 = arith.constant 0 : i32
    return %arg0, %arg1, %c0_i32 : i32, i32, i32
  }
}

</mosaic_0001>

<llo_original>
// kernel: multi_head_attention_l.3
$region0: #{multi_head_attention_l.3}
  #allocation0 [shape = 'u32[]', space=smem, size = 0x4, offset = 0x4, fixed_abs, tag = 'smem constant byte address 0x4 - core index']
  #allocation1 [shape = 'u32[144,128]{1,0:T(1,128)}', space=vmem, size = 0x12000, scoped, tag = 'internal scratch']
  #allocation2 [shape = 'f32[8,1]{1,0:T(8,128)}', space=vmem, size = 0x1000, scoped, tag = 'scratch operand']
  #allocation3 [shape = 'f32[8,1]{1,0:T(8,128)}', space=vmem, size = 0x1000, scoped, tag = 'scratch operand']
  #allocation4 [shape = 'f32[8,8]{1,0:T(8,128)}', space=vmem, size = 0x1000, scoped, tag = 'scratch operand']
  %s0 = inlined_call_operand.vmem [shape: f32[8,8,8], index: 0, kind: input, shape index: {}]
  %s1 = inlined_call_operand.vmem [shape: f32[8,8,8], index: 1, kind: input, shape index: {}]
  %s2 = inlined_call_operand.vmem [shape: f32[8,8,8], index: 2, kind: input, shape index: {}]
  %s3 = inlined_call_operand.vmem [shape: f32[8,8,8], index: 3, kind: input, shape index: {}]
  %s4 = inlined_call_operand.vmem [shape: f32[8,8,8], index: 4, kind: output, shape index: {}]
  %s5 = sld [smem:[#allocation0]]
  $region57: #{multi_head_attention_l.3} parent=0
    _
  %s7 = ssub.s32 1, %s5
  %s8 = scalar_select 0, %s7, %s5
  loop: start=0, step=1, limit=10
  $region2: #{multi_head_attention_l.3} parent=0 // loop_pre_header
    _
  $region3: #{multi_head_attention_l.3} parent=0 // loop_header
    %s10 = sphi 0, %s14
    %p11 = scmp.ge.s32.totalorder %s10, 10
    %s17 = sphi 0, %s36
    %s18 = sphi 0, %s32
    %s19 = sphi 0, %s28
    %s20 = sphi 0, %s17
    %s21 = sphi 0, %s18
    %s22 = sphi 0, %s19
    %s23 = sphi 0, %s20
    %s24 = sphi 0, %s21
    %s25 = sphi 0, %s22
    %s41 = sphi 0, %s43
    %s44 = sphi 0, %s41
    %s45 = sphi 0, %s44
    %s61 = sphi 0, %s45
    %s69 = sphi 0, %s71
    %s72 = sphi 0, %s69
    %s73 = sphi 0, %s72
    %s89 = sphi 0, %s73
    %s97 = sphi 0, %s99
    %s100 = sphi 0, %s97
    %s101 = sphi 0, %s100
    %s117 = sphi 0, %s101
    %s125 = sphi 0, %s127
    %s128 = sphi 0, %s125
    %s129 = sphi 0, %s128
    %s145 = sphi 0, %s129
    %s153 = sphi 0, %s155
    %s156 = sphi 0, %s153
    %s157 = sphi 0, %s156
    %s173 = sphi 0, %s157
  $region4: #{multi_head_attention_l.3} parent=0 // loop_header_branch
    %13 = sbr.rel (%p11) target = $region8
  $region5: #{multi_head_attention_l.3} parent=0 // loop_body
    %s15 = ssub.s32 %s10, 1
    %s16 = ssub.s32 %s10, 2
    %s26 = sadd.s32 1, %s19
    %p27 = scmp.ge.s32.totalorder %s26, 1
    %s28 = scalar_select %p27, 0, %s26
    %s29 = sadd.s32 1, %s18
    %s30 = scalar_select %p27, %s29, %s18
    %p31 = scmp.ge.s32.totalorder %s30, 1
    %s32 = scalar_select %p31, 0, %s30
    %s33 = sadd.s32 1, %s17
    %s34 = scalar_select %p31, %s33, %s17
    %p35 = scmp.ge.s32.totalorder %s34, 8
    %s36 = scalar_select %p35, 0, %s34
    %s37 = ssub.s32 %s17, %s36
    %s38 = ssub.s32 %s18, %s32
    %s39 = sor.u32 %s37, %s38
    %p40 = scmp.eq.s32.totalorder %s39, 0
    %s42 = sadd.s32 %s41, 1
    %s43 = scalar_select %p40, %s41, %s42
    %p46 = pneg %p40
    %p47 = scmp.eq.s32.totalorder %s10, 7
    %p48 = por %p46, %p47
    %p49 = scmp.ne.s32.totalorder %s41, %s44
    %p50 = scmp.eq.s32.totalorder %s10, 0
    %p51 = por %p49, %p50
    %p52 = scmp.ne.s32.totalorder %s41, %s44
    %p53 = scmp.eq.s32.totalorder %s15, 7
    %p54 = por %p52, %p53
    %p55 = scmp.ne.s32.totalorder %s44, %s45
    %p56 = scmp.eq.s32.totalorder %s15, 0
    %p57 = por %p55, %p56
    %p58 = scmp.ne.s32.totalorder %s44, %s45
    %p59 = scmp.eq.s32.totalorder %s16, 7
    %p60 = por %p58, %p59
    %p62 = scmp.ne.s32.totalorder %s45, %s61
    %p63 = scmp.eq.s32.totalorder %s16, 0
    %p64 = por %p62, %p63
    %s65 = ssub.s32 %s17, %s36
    %s66 = ssub.s32 %s19, %s28
    %s67 = sor.u32 %s65, %s66
    %p68 = scmp.eq.s32.totalorder %s67, 0
    %s70 = sadd.s32 %s69, 1
    %s71 = scalar_select %p68, %s69, %s70
    %p74 = pneg %p68
    %p75 = scmp.eq.s32.totalorder %s10, 7
    %p76 = por %p74, %p75
    %p77 = scmp.ne.s32.totalorder %s69, %s72
    %p78 = scmp.eq.s32.totalorder %s10, 0
    %p79 = por %p77, %p78
    %p80 = scmp.ne.s32.totalorder %s69, %s72
    %p81 = scmp.eq.s32.totalorder %s15, 7
    %p82 = por %p80, %p81
    %p83 = scmp.ne.s32.totalorder %s72, %s73
    %p84 = scmp.eq.s32.totalorder %s15, 0
    %p85 = por %p83, %p84
    %p86 = scmp.ne.s32.totalorder %s72, %s73
    %p87 = scmp.eq.s32.totalorder %s16, 7
    %p88 = por %p86, %p87
    %p90 = scmp.ne.s32.totalorder %s73, %s89
    %p91 = scmp.eq.s32.totalorder %s16, 0
    %p92 = por %p90, %p91
    %s93 = ssub.s32 %s17, %s36
    %s94 = ssub.s32 %s19, %s28
    %s95 = sor.u32 %s93, %s94
    %p96 = scmp.eq.s32.totalorder %s95, 0
    %s98 = sadd.s32 %s97, 1
    %s99 = scalar_select %p96, %s97, %s98
    %p102 = pneg %p96
    %p103 = scmp.eq.s32.totalorder %s10, 7
    %p104 = por %p102, %p103
    %p105 = scmp.ne.s32.totalorder %s97, %s100
    %p106 = scmp.eq.s32.totalorder %s10, 0
    %p107 = por %p105, %p106
    %p108 = scmp.ne.s32.totalorder %s97, %s100
    %p109 = scmp.eq.s32.totalorder %s15, 7
    %p110 = por %p108, %p109
    %p111 = scmp.ne.s32.totalorder %s100, %s101
    %p112 = scmp.eq.s32.totalorder %s15, 0
    %p113 = por %p111, %p112
    %p114 = scmp.ne.s32.totalorder %s100, %s101
    %p115 = scmp.eq.s32.totalorder %s16, 7
    %p116 = por %p114, %p115
    %p118 = scmp.ne.s32.totalorder %s101, %s117
    %p119 = scmp.eq.s32.totalorder %s16, 0
    %p120 = por %p118, %p119
    %s121 = ssub.s32 %s17, %s36
    %s122 = ssub.s32 %s18, %s32
    %s123 = sor.u32 %s121, %s122
    %p124 = scmp.eq.s32.totalorder %s123, 0
    %s126 = sadd.s32 %s125, 1
    %s127 = scalar_select %p124, %s125, %s126
    %p130 = pneg %p124
    %p131 = scmp.eq.s32.totalorder %s10, 7
    %p132 = por %p130, %p131
    %p133 = scmp.ne.s32.totalorder %s125, %s128
    %p134 = scmp.eq.s32.totalorder %s10, 0
    %p135 = por %p133, %p134
    %p136 = scmp.ne.s32.totalorder %s125, %s128
    %p137 = scmp.eq.s32.totalorder %s15, 7
    %p138 = por %p136, %p137
    %p139 = scmp.ne.s32.totalorder %s128, %s129
    %p140 = scmp.eq.s32.totalorder %s15, 0
    %p141 = por %p139, %p140
    %p142 = scmp.ne.s32.totalorder %s128, %s129
    %p143 = scmp.eq.s32.totalorder %s16, 7
    %p144 = por %p142, %p143
    %p146 = scmp.ne.s32.totalorder %s129, %s145
    %p147 = scmp.eq.s32.totalorder %s16, 0
    %p148 = por %p146, %p147
    %s149 = ssub.s32 %s17, %s36
    %s150 = ssub.s32 %s18, %s32
    %s151 = sor.u32 %s149, %s150
    %p152 = scmp.eq.s32.totalorder %s151, 0
    %s154 = sadd.s32 %s153, 1
    %s155 = scalar_select %p152, %s153, %s154
    %p158 = pneg %p152
    %p159 = scmp.eq.s32.totalorder %s10, 7
    %p160 = por %p158, %p159
    %p161 = scmp.ne.s32.totalorder %s153, %s156
    %p162 = scmp.eq.s32.totalorder %s10, 0
    %p163 = por %p161, %p162
    %p164 = scmp.ne.s32.totalorder %s153, %s156
    %p165 = scmp.eq.s32.totalorder %s15, 7
    %p166 = por %p164, %p165
    %p167 = scmp.ne.s32.totalorder %s156, %s157
    %p168 = scmp.eq.s32.totalorder %s15, 0
    %p169 = por %p167, %p168
    %p170 = scmp.ne.s32.totalorder %s156, %s157
    %p171 = scmp.eq.s32.totalorder %s16, 7
    %p172 = por %p170, %p171
    %p174 = scmp.ne.s32.totalorder %s157, %s173
    %p175 = scmp.eq.s32.totalorder %s16, 0
    %p176 = por %p174, %p175
    %p177 = scmp.le.s32.totalorder 1, %s10
    %p178 = scmp.lt.s32.totalorder %s10, 9
    %p179 = pnand %p177, %p178
    %p180 = pneg %p179
    // Predicated region
    $region9: #{multi_head_attention_l.3} parent=5 // pred_check
      _
    $region10: #{multi_head_attention_l.3} parent=5 // pred_check_branch
      %182 = sbr.rel (%p179) target = $region12
    $region11: #{multi_head_attention_l.3} parent=5 // pred_region
      %s183 = ssub.s32 %s10, 1
    $region12: #{multi_head_attention_l.3} parent=5 // pred_fallthru
      _
    %p184 = scmp.lt.s32.totalorder %s10, 8
    // Predicated region
    $region13: #{multi_head_attention_l.3} parent=5 // pred_check
      %p185 = pneg %p184
    $region14: #{multi_head_attention_l.3} parent=5 // pred_check_branch
      %187 = sbr.rel (%p185) target = $region16
    $region15: #{multi_head_attention_l.3} parent=5 // pred_region
      // Predicated region
      $region17: #{multi_head_attention_l.3} parent=15 // pred_check
        %p188 = pneg %p51
      $region18: #{multi_head_attention_l.3} parent=15 // pred_check_branch
        %190 = sbr.rel (%p188) target = $region20
      $region19: #{multi_head_attention_l.3} parent=15 // pred_region
        %p191 = scmp.lt.s32.totalorder %s17, 7
        %s192 = scalar_select %p191, %s17, 7
        %p193 = scmp.lt.s32.totalorder %s18, 0
        %s194 = scalar_select %p193, %s18, 0
        %s195 = sadd.s32 %s194, %s192
        %s196 = smul.addr %s195, 8
        %s197 = scalar_lea.vmem %s0, %s196
      $region20: #{multi_head_attention_l.3} parent=15 // pred_fallthru
        _
      // Predicated region
      $region21: #{multi_head_attention_l.3} parent=15 // pred_check
        %p198 = pneg %p79
      $region22: #{multi_head_attention_l.3} parent=15 // pred_check_branch
        %200 = sbr.rel (%p198) target = $region24
      $region23: #{multi_head_attention_l.3} parent=15 // pred_region
        %p201 = scmp.lt.s32.totalorder %s17, 7
        %s202 = scalar_select %p201, %s17, 7
        %p203 = scmp.lt.s32.totalorder %s19, 0
        %s204 = scalar_select %p203, %s19, 0
        %s205 = sadd.s32 %s204, %s202
        %s206 = smul.addr %s205, 8
        %s207 = scalar_lea.vmem %s1, %s206
      $region24: #{multi_head_attention_l.3} parent=15 // pred_fallthru
        _
      // Predicated region
      $region25: #{multi_head_attention_l.3} parent=15 // pred_check
        %p208 = pneg %p107
      $region26: #{multi_head_attention_l.3} parent=15 // pred_check_branch
        %210 = sbr.rel (%p208) target = $region28
      $region27: #{multi_head_attention_l.3} parent=15 // pred_region
        %p211 = scmp.lt.s32.totalorder %s17, 7
        %s212 = scalar_select %p211, %s17, 7
        %p213 = scmp.lt.s32.totalorder %s19, 0
        %s214 = scalar_select %p213, %s19, 0
        %s215 = sadd.s32 %s214, %s212
        %s216 = smul.addr %s215, 8
        %s217 = scalar_lea.vmem %s2, %s216
      $region28: #{multi_head_attention_l.3} parent=15 // pred_fallthru
        _
      // Predicated region
      $region29: #{multi_head_attention_l.3} parent=15 // pred_check
        %p218 = pneg %p135
      $region30: #{multi_head_attention_l.3} parent=15 // pred_check_branch
        %220 = sbr.rel (%p218) target = $region32
      $region31: #{multi_head_attention_l.3} parent=15 // pred_region
        %p221 = scmp.lt.s32.totalorder %s17, 7
        %s222 = scalar_select %p221, %s17, 7
        %p223 = scmp.lt.s32.totalorder %s18, 0
        %s224 = scalar_select %p223, %s18, 0
        %s225 = sadd.s32 %s224, %s222
        %s226 = smul.addr %s225, 8
        %s227 = scalar_lea.vmem %s3, %s226
      $region32: #{multi_head_attention_l.3} parent=15 // pred_fallthru
        _
    $region16: #{multi_head_attention_l.3} parent=5 // pred_fallthru
      _
    %p228 = scmp.le.s32.totalorder 1, %s10
    %p229 = scmp.lt.s32.totalorder %s10, 9
    %p230 = pnand %p228, %p229
    %p231 = pneg %p230
    // Predicated region
    $region33: #{multi_head_attention_l.3} parent=5 // pred_check
      _
    $region34: #{multi_head_attention_l.3} parent=5 // pred_check_branch
      %233 = sbr.rel (%p230) target = $region36
    $region35: #{multi_head_attention_l.3} parent=5 // pred_region
      %s234 = ssub.s32 %s10, 1
      %p235 = scmp.lt.s32.totalorder %s20, 7
      %s236 = scalar_select %p235, %s20, 7
      %p237 = scmp.lt.s32.totalorder %s21, 0
      %s238 = scalar_select %p237, %s21, 0
      %s239 = sadd.s32 %s238, %s236
      %s240 = smul.addr %s239, 8
      %s241 = scalar_lea.vmem %s0, %s240
      %p242 = pneg %p57
      %p243 = pneg %p54
      %p244 = scmp.lt.s32.totalorder %s20, 7
      %s245 = scalar_select %p244, %s20, 7
      %p246 = scmp.lt.s32.totalorder %s22, 0
      %s247 = scalar_select %p246, %s22, 0
      %s248 = sadd.s32 %s247, %s245
      %s249 = smul.addr %s248, 8
      %s250 = scalar_lea.vmem %s1, %s249
      %p251 = pneg %p85
      %p252 = pneg %p82
      %p253 = scmp.lt.s32.totalorder %s20, 7
      %s254 = scalar_select %p253, %s20, 7
      %p255 = scmp.lt.s32.totalorder %s22, 0
      %s256 = scalar_select %p255, %s22, 0
      %s257 = sadd.s32 %s256, %s254
      %s258 = smul.addr %s257, 8
      %s259 = scalar_lea.vmem %s2, %s258
      %p260 = pneg %p113
      %p261 = pneg %p110
      %p262 = scmp.lt.s32.totalorder %s20, 7
      %s263 = scalar_select %p262, %s20, 7
      %p264 = scmp.lt.s32.totalorder %s21, 0
      %s265 = scalar_select %p264, %s21, 0
      %s266 = sadd.s32 %s265, %s263
      %s267 = smul.addr %s266, 8
      %s268 = scalar_lea.vmem %s3, %s267
      %p269 = pneg %p141
      %p270 = pneg %p138
      %p271 = pneg %p169
      %p272 = pneg %p166
      %p273 = scmp.lt.s32.totalorder %s20, 7
      %s274 = scalar_select %p273, %s20, 7
      %p275 = scmp.lt.s32.totalorder %s21, 0
      %s276 = scalar_select %p275, %s21, 0
      %s277 = sadd.s32 %s276, %s274
      %s278 = smul.addr %s277, 8
      %s279 = scalar_lea.vmem %s4, %s278
      %p280 = scmp.lt.s32.totalorder %s20, 7
      %s281 = scalar_select %p280, %s20, 7
      %p282 = scmp.lt.s32.totalorder %s21, 0
      %s283 = scalar_select %p282, %s21, 0
      %s284 = sadd.s32 %s283, %s281
      %s285 = smul.addr %s284, 8
      %s286 = scalar_lea.vmem %s0, %s285
      %p287 = scmp.lt.s32.totalorder %s20, 7
      %s288 = scalar_select %p287, %s20, 7
      %p289 = scmp.lt.s32.totalorder %s22, 0
      %s290 = scalar_select %p289, %s22, 0
      %s291 = sadd.s32 %s290, %s288
      %s292 = smul.addr %s291, 8
      %s293 = scalar_lea.vmem %s1, %s292
      %p294 = scmp.lt.s32.totalorder %s20, 7
      %s295 = scalar_select %p294, %s20, 7
      %p296 = scmp.lt.s32.totalorder %s22, 0
      %s297 = scalar_select %p296, %s22, 0
      %s298 = sadd.s32 %s297, %s295
      %s299 = smul.addr %s298, 8
      %s300 = scalar_lea.vmem %s2, %s299
      %p301 = scmp.lt.s32.totalorder %s20, 7
      %s302 = scalar_select %p301, %s20, 7
      %p303 = scmp.lt.s32.totalorder %s21, 0
      %s304 = scalar_select %p303, %s21, 0
      %s305 = sadd.s32 %s304, %s302
      %s306 = smul.addr %s305, 8
      %s307 = scalar_lea.vmem %s3, %s306
      %p308 = scmp.lt.s32.totalorder %s20, 7
      %s309 = scalar_select %p308, %s20, 7
      %p310 = scmp.lt.s32.totalorder %s21, 0
      %s311 = scalar_select %p310, %s21, 0
      %s312 = sadd.s32 %s311, %s309
      %s313 = smul.addr %s312, 8
      %s314 = scalar_lea.vmem %s4, %s313
      %p315 = scmp.eq.s32.totalorder %s22, 0
      // Predicated region
      $region37: #{multi_head_attention_l.3} parent=35 // pred_check
        %p316 = pneg %p315
      $region38: #{multi_head_attention_l.3} parent=35 // pred_check_branch
        %318 = sbr.rel (%p316) target = $region40
      $region39: #{multi_head_attention_l.3} parent=35 // pred_region
        %vm319 = vcmask 7168
        %320 = vst.msk [vmem:[#allocation2] sm:$0xff] %vm319, -inf
        %321 = vst.msk [vmem:[#allocation3] sm:$0xff] %vm319, 0.0
        %vm322 = vcmask 64512
        %323 = vst.msk [vmem:[#allocation4] sm:$0xff] %vm322, 0.0
      $region40: #{multi_head_attention_l.3} parent=35 // pred_fallthru
        _
      %v324 = vld [vmem:[%s286] sm:$0xff]
      %v325 = vmul.f32 %v324, 0.70710677
      %v326 = vld [vmem:[%s293] sm:$0xff]
      %v327 = vld [vmem:[%s300] sm:$0xff]
      %vm328 = vcmask 64512
      %v330 = vsel %vm328, %v325, 0
      %v333 = vsel %vm328, %v326, 0
      %335 = vmatprep.subr.mxu0 0.0
      %v336 = vand.u32 %v333, 4294901760
      %337 = vmatpush1.xpose.msra.mxu0 %v336
      %338 = vmatprep.subr.mxu0 0.0
      %339 = vmatpush1.xpose.msra.mxu0 0.0
      %340 = vmatprep.subr.mxu0 0.0
      %341 = vmatpush1.xpose.msra.mxu0 0.0
      %342 = vmatprep.subr.mxu0 0.0
      %343 = vmatpush1.xpose.msra.mxu0 0.0
      %344 = vmatprep.subr.mxu0 0.0
      %345 = vmatpush1.xpose.msra.mxu0 0.0
      %346 = vmatprep.subr.mxu0 0.0
      %347 = vmatpush1.xpose.msra.mxu0 0.0
      %348 = vmatprep.subr.mxu0 0.0
      %349 = vmatpush1.xpose.msra.mxu0 0.0
      %350 = vmatprep.subr.mxu0 0.0
      %351 = vmatpush1.xpose.msra.mxu0 0.0
      %352 = vmatprep.subr.mxu0 0.0
      %353 = vmatpush1.xpose.msra.mxu0 0.0
      %354 = vmatprep.subr.mxu0 0.0
      %355 = vmatpush1.xpose.msra.mxu0 0.0
      %356 = vmatprep.subr.mxu0 0.0
      %357 = vmatpush1.xpose.msra.mxu0 0.0
      %358 = vmatprep.subr.mxu0 0.0
      %359 = vmatpush1.xpose.msra.mxu0 0.0
      %360 = vmatprep.subr.mxu0 0.0
      %361 = vmatpush1.xpose.msra.mxu0 0.0
      %362 = vmatprep.subr.mxu0 0.0
      %363 = vmatpush1.xpose.msra.mxu0 0.0
      %364 = vmatprep.subr.mxu0 0.0
      %365 = vmatpush1.xpose.msra.mxu0 0.0
      %366 = vmatprep.subr.mxu0 0.0
      %367 = vmatpush1.xpose.msra.mxu0 0.0
      %368 = vmatprep.subr.mxu0 0.0
      %369 = vmatpush1.xpose.msra.mxu0 0.0
      %370 = vmatprep.subr.mxu0 0.0
      %371 = vmatpush1.xpose.msra.mxu0 0.0
      %372 = vmatprep.subr.mxu0 0.0
      %373 = vmatpush1.xpose.msra.mxu0 0.0
      %374 = vmatprep.subr.mxu0 0.0
      %375 = vmatpush1.xpose.msra.mxu0 0.0
      %376 = vmatprep.subr.mxu0 0.0
      %377 = vmatpush1.xpose.msra.mxu0 0.0
      %378 = vmatprep.subr.mxu0 0.0
      %379 = vmatpush1.xpose.msra.mxu0 0.0
      %380 = vmatprep.subr.mxu0 0.0
      %381 = vmatpush1.xpose.msra.mxu0 0.0
      %382 = vmatprep.subr.mxu0 0.0
      %383 = vmatpush1.xpose.msra.mxu0 0.0
      %384 = vmatprep.subr.mxu0 0.0
      %385 = vmatpush1.xpose.msra.mxu0 0.0
      %386 = vmatprep.subr.mxu0 0.0
      %387 = vmatpush1.xpose.msra.mxu0 0.0
      %388 = vmatprep.subr.mxu0 0.0
      %389 = vmatpush1.xpose.msra.mxu0 0.0
      %390 = vmatprep.subr.mxu0 0.0
      %391 = vmatpush1.xpose.msra.mxu0 0.0
      %392 = vmatprep.subr.mxu0 0.0
      %393 = vmatpush1.xpose.msra.mxu0 0.0
      %394 = vmatprep.subr.mxu0 0.0
      %395 = vmatpush1.xpose.msra.mxu0 0.0
      %396 = vmatprep.subr.mxu0 0.0
      %397 = vmatpush1.xpose.msra.mxu0 0.0
      %398 = vmatprep.subr.mxu0 0.0
      %399 = vmatpush1.xpose.msra.mxu0 0.0
      %400 = vmatprep.mubr.f32.mxu0 0.0
      %v401 = vand.u32 %v330, 4294901760
      %v402 = vsub.f32 %v330, %v401
      %v403 = vand.u32 %v402, 4294901760
      %v404 = vsub.f32 %v402, %v403
      %v405 = vand.u32 %v404, 4294901760
      %406 = vmatmul.mubr.f32.gmra.mrb[0].mxu0 %v405
      %v407 = vpop.f32.mrb[0].mxu0
      %v408 = vadd.f32 0.0, %v407
      %v409 = vpop.f32.mrb[0].mxu0
      %410 = vdwg.mxu0
      %411 = vmatprep.subr.mxu0 0.0
      %v412 = vand.u32 %v333, 4294901760
      %v413 = vsub.f32 %v333, %v412
      %v414 = vand.u32 %v413, 4294901760
      %v415 = vsub.f32 %v413, %v414
      %v416 = vand.u32 %v415, 4294901760
      %417 = vmatpush1.xpose.msra.mxu0 %v416
      %418 = vmatprep.subr.mxu0 0.0
      %419 = vmatpush1.xpose.msra.mxu0 0.0
      %420 = vmatprep.subr.mxu0 0.0
      %421 = vmatpush1.xpose.msra.mxu0 0.0
      %422 = vmatprep.subr.mxu0 0.0
      %423 = vmatpush1.xpose.msra.mxu0 0.0
      %424 = vmatprep.subr.mxu0 0.0
      %425 = vmatpush1.xpose.msra.mxu0 0.0
      %426 = vmatprep.subr.mxu0 0.0
      %427 = vmatpush1.xpose.msra.mxu0 0.0
      %428 = vmatprep.subr.mxu0 0.0
      %429 = vmatpush1.xpose.msra.mxu0 0.0
      %430 = vmatprep.subr.mxu0 0.0
      %431 = vmatpush1.xpose.msra.mxu0 0.0
      %432 = vmatprep.subr.mxu0 0.0
      %433 = vmatpush1.xpose.msra.mxu0 0.0
      %434 = vmatprep.subr.mxu0 0.0
      %435 = vmatpush1.xpose.msra.mxu0 0.0
      %436 = vmatprep.subr.mxu0 0.0
      %437 = vmatpush1.xpose.msra.mxu0 0.0
      %438 = vmatprep.subr.mxu0 0.0
      %439 = vmatpush1.xpose.msra.mxu0 0.0
      %440 = vmatprep.subr.mxu0 0.0
      %441 = vmatpush1.xpose.msra.mxu0 0.0
      %442 = vmatprep.subr.mxu0 0.0
      %443 = vmatpush1.xpose.msra.mxu0 0.0
      %444 = vmatprep.subr.mxu0 0.0
      %445 = vmatpush1.xpose.msra.mxu0 0.0
      %446 = vmatprep.subr.mxu0 0.0
      %447 = vmatpush1.xpose.msra.mxu0 0.0
      %448 = vmatprep.subr.mxu0 0.0
      %449 = vmatpush1.xpose.msra.mxu0 0.0
      %450 = vmatprep.subr.mxu0 0.0
      %451 = vmatpush1.xpose.msra.mxu0 0.0
      %452 = vmatprep.subr.mxu0 0.0
      %453 = vmatpush1.xpose.msra.mxu0 0.0
      %454 = vmatprep.subr.mxu0 0.0
      %455 = vmatpush1.xpose.msra.mxu0 0.0
      %456 = vmatprep.subr.mxu0 0.0
      %457 = vmatpush1.xpose.msra.mxu0 0.0
      %458 = vmatprep.subr.mxu0 0.0
      %459 = vmatpush1.xpose.msra.mxu0 0.0
      %460 = vmatprep.subr.mxu0 0.0
      %461 = vmatpush1.xpose.msra.mxu0 0.0
      %462 = vmatprep.subr.mxu0 0.0
      %463 = vmatpush1.xpose.msra.mxu0 0.0
      %464 = vmatprep.subr.mxu0 0.0
      %465 = vmatpush1.xpose.msra.mxu0 0.0
      %466 = vmatprep.subr.mxu0 0.0
      %467 = vmatpush1.xpose.msra.mxu0 0.0
      %468 = vmatprep.subr.mxu0 0.0
      %469 = vmatpush1.xpose.msra.mxu0 0.0
      %470 = vmatprep.subr.mxu0 0.0
      %471 = vmatpush1.xpose.msra.mxu0 0.0
      %472 = vmatprep.subr.mxu0 0.0
      %473 = vmatpush1.xpose.msra.mxu0 0.0
      %474 = vmatprep.subr.mxu0 0.0
      %475 = vmatpush1.xpose.msra.mxu0 0.0
      %476 = vmatprep.subr.mxu0 0.0
      %477 = vmatpush1.xpose.msra.mxu0 0.0
      %478 = vmatprep.subr.mxu0 0.0
      %479 = vmatpush1.xpose.msra.mxu0 0.0
      %480 = vmatprep.mubr.f32.mxu0 0.0
      %v481 = vand.u32 %v330, 4294901760
      %482 = vmatmul.mubr.f32.gmra.mrb[0].mxu0 %v481
      %v483 = vpop.f32.mrb[0].mxu0
      %v484 = vadd.f32 %v408, %v483
      %v485 = vpop.f32.mrb[0].mxu0
      %486 = vdwg.mxu0
      %487 = vmatprep.subr.mxu0 0.0
      %v488 = vand.u32 %v333, 4294901760
      %v489 = vsub.f32 %v333, %v488
      %490 = vmatpush1.xpose.msra.mxu0 %v489
      %491 = vmatprep.subr.mxu0 0.0
      %492 = vmatpush1.xpose.msra.mxu0 0.0
      %493 = vmatprep.subr.mxu0 0.0
      %494 = vmatpush1.xpose.msra.mxu0 0.0
      %495 = vmatprep.subr.mxu0 0.0
      %496 = vmatpush1.xpose.msra.mxu0 0.0
      %497 = vmatprep.subr.mxu0 0.0
      %498 = vmatpush1.xpose.msra.mxu0 0.0
      %499 = vmatprep.subr.mxu0 0.0
      %500 = vmatpush1.xpose.msra.mxu0 0.0
      %501 = vmatprep.subr.mxu0 0.0
      %502 = vmatpush1.xpose.msra.mxu0 0.0
      %503 = vmatprep.subr.mxu0 0.0
      %504 = vmatpush1.xpose.msra.mxu0 0.0
      %505 = vmatprep.subr.mxu0 0.0
      %506 = vmatpush1.xpose.msra.mxu0 0.0
      %507 = vmatprep.subr.mxu0 0.0
      %508 = vmatpush1.xpose.msra.mxu0 0.0
      %509 = vmatprep.subr.mxu0 0.0
      %510 = vmatpush1.xpose.msra.mxu0 0.0
      %511 = vmatprep.subr.mxu0 0.0
      %512 = vmatpush1.xpose.msra.mxu0 0.0
      %513 = vmatprep.subr.mxu0 0.0
      %514 = vmatpush1.xpose.msra.mxu0 0.0
      %515 = vmatprep.subr.mxu0 0.0
      %516 = vmatpush1.xpose.msra.mxu0 0.0
      %517 = vmatprep.subr.mxu0 0.0
      %518 = vmatpush1.xpose.msra.mxu0 0.0
      %519 = vmatprep.subr.mxu0 0.0
      %520 = vmatpush1.xpose.msra.mxu0 0.0
      %521 = vmatprep.subr.mxu0 0.0
      %522 = vmatpush1.xpose.msra.mxu0 0.0
      %523 = vmatprep.subr.mxu0 0.0
      %524 = vmatpush1.xpose.msra.mxu0 0.0
      %525 = vmatprep.subr.mxu0 0.0
      %526 = vmatpush1.xpose.msra.mxu0 0.0
      %527 = vmatprep.subr.mxu0 0.0
      %528 = vmatpush1.xpose.msra.mxu0 0.0
      %529 = vmatprep.subr.mxu0 0.0
      %530 = vmatpush1.xpose.msra.mxu0 0.0
      %531 = vmatprep.subr.mxu0 0.0
      %532 = vmatpush1.xpose.msra.mxu0 0.0
      %533 = vmatprep.subr.mxu0 0.0
      %534 = vmatpush1.xpose.msra.mxu0 0.0
      %535 = vmatprep.subr.mxu0 0.0
      %536 = vmatpush1.xpose.msra.mxu0 0.0
      %537 = vmatprep.subr.mxu0 0.0
      %538 = vmatpush1.xpose.msra.mxu0 0.0
      %539 = vmatprep.subr.mxu0 0.0
      %540 = vmatpush1.xpose.msra.mxu0 0.0
      %541 = vmatprep.subr.mxu0 0.0
      %542 = vmatpush1.xpose.msra.mxu0 0.0
      %543 = vmatprep.subr.mxu0 0.0
      %544 = vmatpush1.xpose.msra.mxu0 0.0
      %545 = vmatprep.subr.mxu0 0.0
      %546 = vmatpush1.xpose.msra.mxu0 0.0
      %547 = vmatprep.subr.mxu0 0.0
      %548 = vmatpush1.xpose.msra.mxu0 0.0
      %549 = vmatprep.subr.mxu0 0.0
      %550 = vmatpush1.xpose.msra.mxu0 0.0
      %551 = vmatprep.subr.mxu0 0.0
      %552 = vmatpush1.xpose.msra.mxu0 0.0
      %553 = vmatprep.mubr.f32.mxu0 0.0
      %v554 = vand.u32 %v330, 4294901760
      %v555 = vsub.f32 %v330, %v554
      %556 = vmatmul.mubr.f32.gmra.mrb[0].mxu0 %v555
      %v557 = vpop.f32.mrb[0].mxu0
      %v558 = vadd.f32 %v484, %v557
      %v559 = vpop.f32.mrb[0].mxu0
      %560 = vdwg.mxu0
      %561 = vmatprep.subr.mxu0 0.0
      %v562 = vand.u32 %v333, 4294901760
      %563 = vmatpush1.xpose.msra.mxu0 %v562
      %564 = vmatprep.subr.mxu0 0.0
      %565 = vmatpush1.xpose.msra.mxu0 0.0
      %566 = vmatprep.subr.mxu0 0.0
      %567 = vmatpush1.xpose.msra.mxu0 0.0
      %568 = vmatprep.subr.mxu0 0.0
      %569 = vmatpush1.xpose.msra.mxu0 0.0
      %570 = vmatprep.subr.mxu0 0.0
      %571 = vmatpush1.xpose.msra.mxu0 0.0
      %572 = vmatprep.subr.mxu0 0.0
      %573 = vmatpush1.xpose.msra.mxu0 0.0
      %574 = vmatprep.subr.mxu0 0.0
      %575 = vmatpush1.xpose.msra.mxu0 0.0
      %576 = vmatprep.subr.mxu0 0.0
      %577 = vmatpush1.xpose.msra.mxu0 0.0
      %578 = vmatprep.subr.mxu0 0.0
      %579 = vmatpush1.xpose.msra.mxu0 0.0
      %580 = vmatprep.subr.mxu0 0.0
      %581 = vmatpush1.xpose.msra.mxu0 0.0
      %582 = vmatprep.subr.mxu0 0.0
      %583 = vmatpush1.xpose.msra.mxu0 0.0
      %584 = vmatprep.subr.mxu0 0.0
      %585 = vmatpush1.xpose.msra.mxu0 0.0
      %586 = vmatprep.subr.mxu0 0.0
      %587 = vmatpush1.xpose.msra.mxu0 0.0
      %588 = vmatprep.subr.mxu0 0.0
      %589 = vmatpush1.xpose.msra.mxu0 0.0
      %590 = vmatprep.subr.mxu0 0.0
      %591 = vmatpush1.xpose.msra.mxu0 0.0
      %592 = vmatprep.subr.mxu0 0.0
      %593 = vmatpush1.xpose.msra.mxu0 0.0
      %594 = vmatprep.subr.mxu0 0.0
      %595 = vmatpush1.xpose.msra.mxu0 0.0
      %596 = vmatprep.subr.mxu0 0.0
      %597 = vmatpush1.xpose.msra.mxu0 0.0
      %598 = vmatprep.subr.mxu0 0.0
      %599 = vmatpush1.xpose.msra.mxu0 0.0
      %600 = vmatprep.subr.mxu0 0.0
      %601 = vmatpush1.xpose.msra.mxu0 0.0
      %602 = vmatprep.subr.mxu0 0.0
      %603 = vmatpush1.xpose.msra.mxu0 0.0
      %604 = vmatprep.subr.mxu0 0.0
      %605 = vmatpush1.xpose.msra.mxu0 0.0
      %606 = vmatprep.subr.mxu0 0.0
      %607 = vmatpush1.xpose.msra.mxu0 0.0
      %608 = vmatprep.subr.mxu0 0.0
      %609 = vmatpush1.xpose.msra.mxu0 0.0
      %610 = vmatprep.subr.mxu0 0.0
      %611 = vmatpush1.xpose.msra.mxu0 0.0
      %612 = vmatprep.subr.mxu0 0.0
      %613 = vmatpush1.xpose.msra.mxu0 0.0
      %614 = vmatprep.subr.mxu0 0.0
      %615 = vmatpush1.xpose.msra.mxu0 0.0
      %616 = vmatprep.subr.mxu0 0.0
      %617 = vmatpush1.xpose.msra.mxu0 0.0
      %618 = vmatprep.subr.mxu0 0.0
      %619 = vmatpush1.xpose.msra.mxu0 0.0
      %620 = vmatprep.subr.mxu0 0.0
      %621 = vmatpush1.xpose.msra.mxu0 0.0
      %622 = vmatprep.subr.mxu0 0.0
      %623 = vmatpush1.xpose.msra.mxu0 0.0
      %624 = vmatprep.subr.mxu0 0.0
      %625 = vmatpush1.xpose.msra.mxu0 0.0
      %626 = vmatprep.mubr.f32.mxu0 0.0
      %v627 = vand.u32 %v330, 4294901760
      %v628 = vsub.f32 %v330, %v627
      %v629 = vand.u32 %v628, 4294901760
      %630 = vmatmul.mubr.f32.gmra.mrb[0].mxu0 %v629
      %v631 = vpop.f32.mrb[0].mxu0
      %v632 = vadd.f32 %v558, %v631
      %v633 = vpop.f32.mrb[0].mxu0
      %634 = vdwg.mxu0
      %635 = vmatprep.subr.mxu0 0.0
      %v636 = vand.u32 %v333, 4294901760
      %v637 = vsub.f32 %v333, %v636
      %v638 = vand.u32 %v637, 4294901760
      %639 = vmatpush1.xpose.msra.mxu0 %v638
      %640 = vmatprep.subr.mxu0 0.0
      %641 = vmatpush1.xpose.msra.mxu0 0.0
      %642 = vmatprep.subr.mxu0 0.0
      %643 = vmatpush1.xpose.msra.mxu0 0.0
      %644 = vmatprep.subr.mxu0 0.0
      %645 = vmatpush1.xpose.msra.mxu0 0.0
      %646 = vmatprep.subr.mxu0 0.0
      %647 = vmatpush1.xpose.msra.mxu0 0.0
      %648 = vmatprep.subr.mxu0 0.0
      %649 = vmatpush1.xpose.msra.mxu0 0.0
      %650 = vmatprep.subr.mxu0 0.0
      %651 = vmatpush1.xpose.msra.mxu0 0.0
      %652 = vmatprep.subr.mxu0 0.0
      %653 = vmatpush1.xpose.msra.mxu0 0.0
      %654 = vmatprep.subr.mxu0 0.0
      %655 = vmatpush1.xpose.msra.mxu0 0.0
      %656 = vmatprep.subr.mxu0 0.0
      %657 = vmatpush1.xpose.msra.mxu0 0.0
      %658 = vmatprep.subr.mxu0 0.0
      %659 = vmatpush1.xpose.msra.mxu0 0.0
      %660 = vmatprep.subr.mxu0 0.0
      %661 = vmatpush1.xpose.msra.mxu0 0.0
      %662 = vmatprep.subr.mxu0 0.0
      %663 = vmatpush1.xpose.msra.mxu0 0.0
      %664 = vmatprep.subr.mxu0 0.0
      %665 = vmatpush1.xpose.msra.mxu0 0.0
      %666 = vmatprep.subr.mxu0 0.0
      %667 = vmatpush1.xpose.msra.mxu0 0.0
      %668 = vmatprep.subr.mxu0 0.0
      %669 = vmatpush1.xpose.msra.mxu0 0.0
      %670 = vmatprep.subr.mxu0 0.0
      %671 = vmatpush1.xpose.msra.mxu0 0.0
      %672 = vmatprep.subr.mxu0 0.0
      %673 = vmatpush1.xpose.msra.mxu0 0.0
      %674 = vmatprep.subr.mxu0 0.0
      %675 = vmatpush1.xpose.msra.mxu0 0.0
      %676 = vmatprep.subr.mxu0 0.0
      %677 = vmatpush1.xpose.msra.mxu0 0.0
      %678 = vmatprep.subr.mxu0 0.0
      %679 = vmatpush1.xpose.msra.mxu0 0.0
      %680 = vmatprep.subr.mxu0 0.0
      %681 = vmatpush1.xpose.msra.mxu0 0.0
      %682 = vmatprep.subr.mxu0 0.0
      %683 = vmatpush1.xpose.msra.mxu0 0.0
      %684 = vmatprep.subr.mxu0 0.0
      %685 = vmatpush1.xpose.msra.mxu0 0.0
      %686 = vmatprep.subr.mxu0 0.0
      %687 = vmatpush1.xpose.msra.mxu0 0.0
      %688 = vmatprep.subr.mxu0 0.0
      %689 = vmatpush1.xpose.msra.mxu0 0.0
      %690 = vmatprep.subr.mxu0 0.0
      %691 = vmatpush1.xpose.msra.mxu0 0.0
      %692 = vmatprep.subr.mxu0 0.0
      %693 = vmatpush1.xpose.msra.mxu0 0.0
      %694 = vmatprep.subr.mxu0 0.0
      %695 = vmatpush1.xpose.msra.mxu0 0.0
      %696 = vmatprep.subr.mxu0 0.0
      %697 = vmatpush1.xpose.msra.mxu0 0.0
      %698 = vmatprep.subr.mxu0 0.0
      %699 = vmatpush1.xpose.msra.mxu0 0.0
      %700 = vmatprep.subr.mxu0 0.0
      %701 = vmatpush1.xpose.msra.mxu0 0.0
      %702 = vmatprep.mubr.f32.mxu0 0.0
      %v703 = vand.u32 %v330, 4294901760
      %704 = vmatmul.mubr.f32.gmra.mrb[0].mxu0 %v703
      %v705 = vpop.f32.mrb[0].mxu0
      %v706 = vadd.f32 %v632, %v705
      %v707 = vpop.f32.mrb[0].mxu0
      %708 = vdwg.mxu0
      %709 = vmatprep.subr.mxu0 0.0
      %v710 = vand.u32 %v333, 4294901760
      %711 = vmatpush1.xpose.msra.mxu0 %v710
      %712 = vmatprep.subr.mxu0 0.0
      %713 = vmatpush1.xpose.msra.mxu0 0.0
      %714 = vmatprep.subr.mxu0 0.0
      %715 = vmatpush1.xpose.msra.mxu0 0.0
      %716 = vmatprep.subr.mxu0 0.0
      %717 = vmatpush1.xpose.msra.mxu0 0.0
      %718 = vmatprep.subr.mxu0 0.0
      %719 = vmatpush1.xpose.msra.mxu0 0.0
      %720 = vmatprep.subr.mxu0 0.0
      %721 = vmatpush1.xpose.msra.mxu0 0.0
      %722 = vmatprep.subr.mxu0 0.0
      %723 = vmatpush1.xpose.msra.mxu0 0.0
      %724 = vmatprep.subr.mxu0 0.0
      %725 = vmatpush1.xpose.msra.mxu0 0.0
      %726 = vmatprep.subr.mxu0 0.0
      %727 = vmatpush1.xpose.msra.mxu0 0.0
      %728 = vmatprep.subr.mxu0 0.0
      %729 = vmatpush1.xpose.msra.mxu0 0.0
      %730 = vmatprep.subr.mxu0 0.0
      %731 = vmatpush1.xpose.msra.mxu0 0.0
      %732 = vmatprep.subr.mxu0 0.0
      %733 = vmatpush1.xpose.msra.mxu0 0.0
      %734 = vmatprep.subr.mxu0 0.0
      %735 = vmatpush1.xpose.msra.mxu0 0.0
      %736 = vmatprep.subr.mxu0 0.0
      %737 = vmatpush1.xpose.msra.mxu0 0.0
      %738 = vmatprep.subr.mxu0 0.0
      %739 = vmatpush1.xpose.msra.mxu0 0.0
      %740 = vmatprep.subr.mxu0 0.0
      %741 = vmatpush1.xpose.msra.mxu0 0.0
      %742 = vmatprep.subr.mxu0 0.0
      %743 = vmatpush1.xpose.msra.mxu0 0.0
      %744 = vmatprep.subr.mxu0 0.0
      %745 = vmatpush1.xpose.msra.mxu0 0.0
      %746 = vmatprep.subr.mxu0 0.0
      %747 = vmatpush1.xpose.msra.mxu0 0.0
      %748 = vmatprep.subr.mxu0 0.0
      %749 = vmatpush1.xpose.msra.mxu0 0.0
      %750 = vmatprep.subr.mxu0 0.0
      %751 = vmatpush1.xpose.msra.mxu0 0.0
      %752 = vmatprep.subr.mxu0 0.0
      %753 = vmatpush1.xpose.msra.mxu0 0.0
      %754 = vmatprep.subr.mxu0 0.0
      %755 = vmatpush1.xpose.msra.mxu0 0.0
      %756 = vmatprep.subr.mxu0 0.0
      %757 = vmatpush1.xpose.msra.mxu0 0.0
      %758 = vmatprep.subr.mxu0 0.0
      %759 = vmatpush1.xpose.msra.mxu0 0.0
      %760 = vmatprep.subr.mxu0 0.0
      %761 = vmatpush1.xpose.msra.mxu0 0.0
      %762 = vmatprep.subr.mxu0 0.0
      %763 = vmatpush1.xpose.msra.mxu0 0.0
      %764 = vmatprep.subr.mxu0 0.0
      %765 = vmatpush1.xpose.msra.mxu0 0.0
      %766 = vmatprep.subr.mxu0 0.0
      %767 = vmatpush1.xpose.msra.mxu0 0.0
      %768 = vmatprep.subr.mxu0 0.0
      %769 = vmatpush1.xpose.msra.mxu0 0.0
      %770 = vmatprep.subr.mxu0 0.0
      %771 = vmatpush1.xpose.msra.mxu0 0.0
      %772 = vmatprep.subr.mxu0 0.0
      %773 = vmatpush1.xpose.msra.mxu0 0.0
      %774 = vmatprep.mubr.f32.mxu0 0.0
      %v775 = vand.u32 %v330, 4294901760
      %776 = vmatmul.mubr.f32.gmra.mrb[0].mxu0 %v775
      %v777 = vpop.f32.mrb[0].mxu0
      %v778 = vadd.f32 %v706, %v777
      %v779 = vpop.f32.mrb[0].mxu0
      %780 = vdwg.mxu0
      %v781 = vld [vmem:[#allocation2] sm:$0xff]
      %v782 = vsel %vm328, %v778, -inf
      %783 = vmax.xlane.f32.xlu0 %v782
      %v784 = vpop.xlane.xlu0 %783
      %v785 = vmax.f32 %v781, %v784
      %v786 = vsub.f32 %v781, %v785
      %v787 = vmul.f32 %v786, 1.442695
      %v788 = vpow.pop %v787
      %790 = vset.pattern.permute.xlu0 0
      %791 = vperm.xlu0 %790, %v785
      %v792 = vpop.permute.xlu0 %791
      %v794 = vsub.f32 %v778, %v792
      %v795 = vmul.f32 %v794, 1.442695
      %v796 = vpow.pop %v795
      %v797 = vld [vmem:[#allocation3] sm:$0xff]
      %v798 = vmul.f32 %v788, %v797
      %v799 = vsel %vm328, %v796, 0.0
      %800 = vadd.xlane.f32.xlu0 %v799
      %v801 = vpop.xlane.xlu0 %800
      %v802 = vadd.f32 %v798, %v801
      %vm803 = vcmask 7168
      %804 = vst.msk [vmem:[#allocation3] sm:$0xff] %vm803, %v802
      %v805 = vld [vmem:[#allocation4] sm:$0xff]
      %807 = vset.pattern.permute.xlu0 0
      %808 = vperm.xlu0 %807, %v788
      %v809 = vpop.permute.xlu0 %808
      %v811 = vmul.f32 %v809, %v805
      %v813 = vsel %vm328, %v796, 0
      %815 = vmatprep.subr.mxu0 0.0
      %v816 = vand.u32 %v327, 4294901760
      %817 = vmatpush1.msra.mxu0 %v816
      %818 = vmatprep.subr.mxu0 0.0
      %819 = vmatpush1.msra.mxu0 0.0
      %820 = vmatprep.subr.mxu0 0.0
      %821 = vmatpush1.msra.mxu0 0.0
      %822 = vmatprep.subr.mxu0 0.0
      %823 = vmatpush1.msra.mxu0 0.0
      %824 = vmatprep.subr.mxu0 0.0
      %825 = vmatpush1.msra.mxu0 0.0
      %826 = vmatprep.subr.mxu0 0.0
      %827 = vmatpush1.msra.mxu0 0.0
      %828 = vmatprep.subr.mxu0 0.0
      %829 = vmatpush1.msra.mxu0 0.0
      %830 = vmatprep.subr.mxu0 0.0
      %831 = vmatpush1.msra.mxu0 0.0
      %832 = vmatprep.subr.mxu0 0.0
      %833 = vmatpush1.msra.mxu0 0.0
      %834 = vmatprep.subr.mxu0 0.0
      %835 = vmatpush1.msra.mxu0 0.0
      %836 = vmatprep.subr.mxu0 0.0
      %837 = vmatpush1.msra.mxu0 0.0
      %838 = vmatprep.subr.mxu0 0.0
      %839 = vmatpush1.msra.mxu0 0.0
      %840 = vmatprep.subr.mxu0 0.0
      %841 = vmatpush1.msra.mxu0 0.0
      %842 = vmatprep.subr.mxu0 0.0
      %843 = vmatpush1.msra.mxu0 0.0
      %844 = vmatprep.subr.mxu0 0.0
      %845 = vmatpush1.msra.mxu0 0.0
      %846 = vmatprep.subr.mxu0 0.0
      %847 = vmatpush1.msra.mxu0 0.0
      %848 = vmatprep.subr.mxu0 0.0
      %849 = vmatpush1.msra.mxu0 0.0
      %850 = vmatprep.subr.mxu0 0.0
      %851 = vmatpush1.msra.mxu0 0.0
      %852 = vmatprep.subr.mxu0 0.0
      %853 = vmatpush1.msra.mxu0 0.0
      %854 = vmatprep.subr.mxu0 0.0
      %855 = vmatpush1.msra.mxu0 0.0
      %856 = vmatprep.subr.mxu0 0.0
      %857 = vmatpush1.msra.mxu0 0.0
      %858 = vmatprep.subr.mxu0 0.0
      %859 = vmatpush1.msra.mxu0 0.0
      %860 = vmatprep.subr.mxu0 0.0
      %861 = vmatpush1.msra.mxu0 0.0
      %862 = vmatprep.subr.mxu0 0.0
      %863 = vmatpush1.msra.mxu0 0.0
      %864 = vmatprep.subr.mxu0 0.0
      %865 = vmatpush1.msra.mxu0 0.0
      %866 = vmatprep.subr.mxu0 0.0
      %867 = vmatpush1.msra.mxu0 0.0
      %868 = vmatprep.subr.mxu0 0.0
      %869 = vmatpush1.msra.mxu0 0.0
      %870 = vmatprep.subr.mxu0 0.0
      %871 = vmatpush1.msra.mxu0 0.0
      %872 = vmatprep.subr.mxu0 0.0
      %873 = vmatpush1.msra.mxu0 0.0
      %874 = vmatprep.subr.mxu0 0.0
      %875 = vmatpush1.msra.mxu0 0.0
      %876 = vmatprep.subr.mxu0 0.0
      %877 = vmatpush1.msra.mxu0 0.0
      %878 = vmatprep.subr.mxu0 0.0
      %879 = vmatpush1.msra.mxu0 0.0
      %880 = vmatprep.mubr.f32.mxu0 0.0
      %v881 = vand.u32 %v813, 4294901760
      %v882 = vsub.f32 %v813, %v881
      %v883 = vand.u32 %v882, 4294901760
      %v884 = vsub.f32 %v882, %v883
      %v885 = vand.u32 %v884, 4294901760
      %886 = vmatmul.mubr.f32.gmra.mrb[0].mxu0 %v885
      %v887 = vpop.f32.mrb[0].mxu0
      %v888 = vadd.f32 0.0, %v887
      %v889 = vpop.f32.mrb[0].mxu0
      %890 = vdwg.mxu0
      %891 = vmatprep.subr.mxu0 0.0
      %v892 = vand.u32 %v327, 4294901760
      %v893 = vsub.f32 %v327, %v892
      %v894 = vand.u32 %v893, 4294901760
      %v895 = vsub.f32 %v893, %v894
      %v896 = vand.u32 %v895, 4294901760
      %897 = vmatpush1.msra.mxu0 %v896
      %898 = vmatprep.subr.mxu0 0.0
      %899 = vmatpush1.msra.mxu0 0.0
      %900 = vmatprep.subr.mxu0 0.0
      %901 = vmatpush1.msra.mxu0 0.0
      %902 = vmatprep.subr.mxu0 0.0
      %903 = vmatpush1.msra.mxu0 0.0
      %904 = vmatprep.subr.mxu0 0.0
      %905 = vmatpush1.msra.mxu0 0.0
      %906 = vmatprep.subr.mxu0 0.0
      %907 = vmatpush1.msra.mxu0 0.0
      %908 = vmatprep.subr.mxu0 0.0
      %909 = vmatpush1.msra.mxu0 0.0
      %910 = vmatprep.subr.mxu0 0.0
      %911 = vmatpush1.msra.mxu0 0.0
      %912 = vmatprep.subr.mxu0 0.0
      %913 = vmatpush1.msra.mxu0 0.0
      %914 = vmatprep.subr.mxu0 0.0
      %915 = vmatpush1.msra.mxu0 0.0
      %916 = vmatprep.subr.mxu0 0.0
      %917 = vmatpush1.msra.mxu0 0.0
      %918 = vmatprep.subr.mxu0 0.0
      %919 = vmatpush1.msra.mxu0 0.0
      %920 = vmatprep.subr.mxu0 0.0
      %921 = vmatpush1.msra.mxu0 0.0
      %922 = vmatprep.subr.mxu0 0.0
      %923 = vmatpush1.msra.mxu0 0.0
      %924 = vmatprep.subr.mxu0 0.0
      %925 = vmatpush1.msra.mxu0 0.0
      %926 = vmatprep.subr.mxu0 0.0
      %927 = vmatpush1.msra.mxu0 0.0
      %928 = vmatprep.subr.mxu0 0.0
      %929 = vmatpush1.msra.mxu0 0.0
      %930 = vmatprep.subr.mxu0 0.0
      %931 = vmatpush1.msra.mxu0 0.0
      %932 = vmatprep.subr.mxu0 0.0
      %933 = vmatpush1.msra.mxu0 0.0
      %934 = vmatprep.subr.mxu0 0.0
      %935 = vmatpush1.msra.mxu0 0.0
      %936 = vmatprep.subr.mxu0 0.0
      %937 = vmatpush1.msra.mxu0 0.0
      %938 = vmatprep.subr.mxu0 0.0
      %939 = vmatpush1.msra.mxu0 0.0
      %940 = vmatprep.subr.mxu0 0.0
      %941 = vmatpush1.msra.mxu0 0.0
      %942 = vmatprep.subr.mxu0 0.0
      %943 = vmatpush1.msra.mxu0 0.0
      %944 = vmatprep.subr.mxu0 0.0
      %945 = vmatpush1.msra.mxu0 0.0
      %946 = vmatprep.subr.mxu0 0.0
      %947 = vmatpush1.msra.mxu0 0.0
      %948 = vmatprep.subr.mxu0 0.0
      %949 = vmatpush1.msra.mxu0 0.0
      %950 = vmatprep.subr.mxu0 0.0
      %951 = vmatpush1.msra.mxu0 0.0
      %952 = vmatprep.subr.mxu0 0.0
      %953 = vmatpush1.msra.mxu0 0.0
      %954 = vmatprep.subr.mxu0 0.0
      %955 = vmatpush1.msra.mxu0 0.0
      %956 = vmatprep.subr.mxu0 0.0
      %957 = vmatpush1.msra.mxu0 0.0
      %958 = vmatprep.subr.mxu0 0.0
      %959 = vmatpush1.msra.mxu0 0.0
      %960 = vmatprep.mubr.f32.mxu0 0.0
      %v961 = vand.u32 %v813, 4294901760
      %962 = vmatmul.mubr.f32.gmra.mrb[0].mxu0 %v961
      %v963 = vpop.f32.mrb[0].mxu0
      %v964 = vadd.f32 %v888, %v963
      %v965 = vpop.f32.mrb[0].mxu0
      %966 = vdwg.mxu0
      %967 = vmatprep.subr.mxu0 0.0
      %v968 = vand.u32 %v327, 4294901760
      %v969 = vsub.f32 %v327, %v968
      %970 = vmatpush1.msra.mxu0 %v969
      %971 = vmatprep.subr.mxu0 0.0
      %972 = vmatpush1.msra.mxu0 0.0
      %973 = vmatprep.subr.mxu0 0.0
      %974 = vmatpush1.msra.mxu0 0.0
      %975 = vmatprep.subr.mxu0 0.0
      %976 = vmatpush1.msra.mxu0 0.0
      %977 = vmatprep.subr.mxu0 0.0
      %978 = vmatpush1.msra.mxu0 0.0
      %979 = vmatprep.subr.mxu0 0.0
      %980 = vmatpush1.msra.mxu0 0.0
      %981 = vmatprep.subr.mxu0 0.0
      %982 = vmatpush1.msra.mxu0 0.0
      %983 = vmatprep.subr.mxu0 0.0
      %984 = vmatpush1.msra.mxu0 0.0
      %985 = vmatprep.subr.mxu0 0.0
      %986 = vmatpush1.msra.mxu0 0.0
      %987 = vmatprep.subr.mxu0 0.0
      %988 = vmatpush1.msra.mxu0 0.0
      %989 = vmatprep.subr.mxu0 0.0
      %990 = vmatpush1.msra.mxu0 0.0
      %991 = vmatprep.subr.mxu0 0.0
      %992 = vmatpush1.msra.mxu0 0.0
      %993 = vmatprep.subr.mxu0 0.0
      %994 = vmatpush1.msra.mxu0 0.0
      %995 = vmatprep.subr.mxu0 0.0
      %996 = vmatpush1.msra.mxu0 0.0
      %997 = vmatprep.subr.mxu0 0.0
      %998 = vmatpush1.msra.mxu0 0.0
      %999 = vmatprep.subr.mxu0 0.0
      %1000 = vmatpush1.msra.mxu0 0.0
      %1001 = vmatprep.subr.mxu0 0.0
      %1002 = vmatpush1.msra.mxu0 0.0
      %1003 = vmatprep.subr.mxu0 0.0
      %1004 = vmatpush1.msra.mxu0 0.0
      %1005 = vmatprep.subr.mxu0 0.0
      %1006 = vmatpush1.msra.mxu0 0.0
      %1007 = vmatprep.subr.mxu0 0.0
      %1008 = vmatpush1.msra.mxu0 0.0
      %1009 = vmatprep.subr.mxu0 0.0
      %1010 = vmatpush1.msra.mxu0 0.0
      %1011 = vmatprep.subr.mxu0 0.0
      %1012 = vmatpush1.msra.mxu0 0.0
      %1013 = vmatprep.subr.mxu0 0.0
      %1014 = vmatpush1.msra.mxu0 0.0
      %1015 = vmatprep.subr.mxu0 0.0
      %1016 = vmatpush1.msra.mxu0 0.0
      %1017 = vmatprep.subr.mxu0 0.0
      %1018 = vmatpush1.msra.mxu0 0.0
      %1019 = vmatprep.subr.mxu0 0.0
      %1020 = vmatpush1.msra.mxu0 0.0
      %1021 = vmatprep.subr.mxu0 0.0
      %1022 = vmatpush1.msra.mxu0 0.0
      %1023 = vmatprep.subr.mxu0 0.0
      %1024 = vmatpush1.msra.mxu0 0.0
      %1025 = vmatprep.subr.mxu0 0.0
      %1026 = vmatpush1.msra.mxu0 0.0
      %1027 = vmatprep.subr.mxu0 0.0
      %1028 = vmatpush1.msra.mxu0 0.0
      %1029 = vmatprep.subr.mxu0 0.0
      %1030 = vmatpush1.msra.mxu0 0.0
      %1031 = vmatprep.subr.mxu0 0.0
      %1032 = vmatpush1.msra.mxu0 0.0
      %1033 = vmatprep.mubr.f32.mxu0 0.0
      %v1034 = vand.u32 %v813, 4294901760
      %v1035 = vsub.f32 %v813, %v1034
      %1036 = vmatmul.mubr.f32.gmra.mrb[0].mxu0 %v1035
      %v1037 = vpop.f32.mrb[0].mxu0
      %v1038 = vadd.f32 %v964, %v1037
      %v1039 = vpop.f32.mrb[0].mxu0
      %1040 = vdwg.mxu0
      %1041 = vmatprep.subr.mxu0 0.0
      %v1042 = vand.u32 %v327, 4294901760
      %1043 = vmatpush1.msra.mxu0 %v1042
      %1044 = vmatprep.subr.mxu0 0.0
      %1045 = vmatpush1.msra.mxu0 0.0
      %1046 = vmatprep.subr.mxu0 0.0
      %1047 = vmatpush1.msra.mxu0 0.0
      %1048 = vmatprep.subr.mxu0 0.0
      %1049 = vmatpush1.msra.mxu0 0.0
      %1050 = vmatprep.subr.mxu0 0.0
      %1051 = vmatpush1.msra.mxu0 0.0
      %1052 = vmatprep.subr.mxu0 0.0
      %1053 = vmatpush1.msra.mxu0 0.0
      %1054 = vmatprep.subr.mxu0 0.0
      %1055 = vmatpush1.msra.mxu0 0.0
      %1056 = vmatprep.subr.mxu0 0.0
      %1057 = vmatpush1.msra.mxu0 0.0
      %1058 = vmatprep.subr.mxu0 0.0
      %1059 = vmatpush1.msra.mxu0 0.0
      %1060 = vmatprep.subr.mxu0 0.0
      %1061 = vmatpush1.msra.mxu0 0.0
      %1062 = vmatprep.subr.mxu0 0.0
      %1063 = vmatpush1.msra.mxu0 0.0
      %1064 = vmatprep.subr.mxu0 0.0
      %1065 = vmatpush1.msra.mxu0 0.0
      %1066 = vmatprep.subr.mxu0 0.0
      %1067 = vmatpush1.msra.mxu0 0.0
      %1068 = vmatprep.subr.mxu0 0.0
      %1069 = vmatpush1.msra.mxu0 0.0
      %1070 = vmatprep.subr.mxu0 0.0
      %1071 = vmatpush1.msra.mxu0 0.0
      %1072 = vmatprep.subr.mxu0 0.0
      %1073 = vmatpush1.msra.mxu0 0.0
      %1074 = vmatprep.subr.mxu0 0.0
      %1075 = vmatpush1.msra.mxu0 0.0
      %1076 = vmatprep.subr.mxu0 0.0
      %1077 = vmatpush1.msra.mxu0 0.0
      %1078 = vmatprep.subr.mxu0 0.0
      %1079 = vmatpush1.msra.mxu0 0.0
      %1080 = vmatprep.subr.mxu0 0.0
      %1081 = vmatpush1.msra.mxu0 0.0
      %1082 = vmatprep.subr.mxu0 0.0
      %1083 = vmatpush1.msra.mxu0 0.0
      %1084 = vmatprep.subr.mxu0 0.0
      %1085 = vmatpush1.msra.mxu0 0.0
      %1086 = vmatprep.subr.mxu0 0.0
      %1087 = vmatpush1.msra.mxu0 0.0
      %1088 = vmatprep.subr.mxu0 0.0
      %1089 = vmatpush1.msra.mxu0 0.0
      %1090 = vmatprep.subr.mxu0 0.0
      %1091 = vmatpush1.msra.mxu0 0.0
      %1092 = vmatprep.subr.mxu0 0.0
      %1093 = vmatpush1.msra.mxu0 0.0
      %1094 = vmatprep.subr.mxu0 0.0
      %1095 = vmatpush1.msra.mxu0 0.0
      %1096 = vmatprep.subr.mxu0 0.0
      %1097 = vmatpush1.msra.mxu0 0.0
      %1098 = vmatprep.subr.mxu0 0.0
      %1099 = vmatpush1.msra.mxu0 0.0
      %1100 = vmatprep.subr.mxu0 0.0
      %1101 = vmatpush1.msra.mxu0 0.0
      %1102 = vmatprep.subr.mxu0 0.0
      %1103 = vmatpush1.msra.mxu0 0.0
      %1104 = vmatprep.subr.mxu0 0.0
      %1105 = vmatpush1.msra.mxu0 0.0
      %1106 = vmatprep.mubr.f32.mxu0 0.0
      %v1107 = vand.u32 %v813, 4294901760
      %v1108 = vsub.f32 %v813, %v1107
      %v1109 = vand.u32 %v1108, 4294901760
      %1110 = vmatmul.mubr.f32.gmra.mrb[0].mxu0 %v1109
      %v1111 = vpop.f32.mrb[0].mxu0
      %v1112 = vadd.f32 %v1038, %v1111
      %v1113 = vpop.f32.mrb[0].mxu0
      %1114 = vdwg.mxu0
      %1115 = vmatprep.subr.mxu0 0.0
      %v1116 = vand.u32 %v327, 4294901760
      %v1117 = vsub.f32 %v327, %v1116
      %v1118 = vand.u32 %v1117, 4294901760
      %1119 = vmatpush1.msra.mxu0 %v1118
      %1120 = vmatprep.subr.mxu0 0.0
      %1121 = vmatpush1.msra.mxu0 0.0
      %1122 = vmatprep.subr.mxu0 0.0
      %1123 = vmatpush1.msra.mxu0 0.0
      %1124 = vmatprep.subr.mxu0 0.0
      %1125 = vmatpush1.msra.mxu0 0.0
      %1126 = vmatprep.subr.mxu0 0.0
      %1127 = vmatpush1.msra.mxu0 0.0
      %1128 = vmatprep.subr.mxu0 0.0
      %1129 = vmatpush1.msra.mxu0 0.0
      %1130 = vmatprep.subr.mxu0 0.0
      %1131 = vmatpush1.msra.mxu0 0.0
      %1132 = vmatprep.subr.mxu0 0.0
      %1133 = vmatpush1.msra.mxu0 0.0
      %1134 = vmatprep.subr.mxu0 0.0
      %1135 = vmatpush1.msra.mxu0 0.0
      %1136 = vmatprep.subr.mxu0 0.0
      %1137 = vmatpush1.msra.mxu0 0.0
      %1138 = vmatprep.subr.mxu0 0.0
      %1139 = vmatpush1.msra.mxu0 0.0
      %1140 = vmatprep.subr.mxu0 0.0
      %1141 = vmatpush1.msra.mxu0 0.0
      %1142 = vmatprep.subr.mxu0 0.0
      %1143 = vmatpush1.msra.mxu0 0.0
      %1144 = vmatprep.subr.mxu0 0.0
      %1145 = vmatpush1.msra.mxu0 0.0
      %1146 = vmatprep.subr.mxu0 0.0
      %1147 = vmatpush1.msra.mxu0 0.0
      %1148 = vmatprep.subr.mxu0 0.0
      %1149 = vmatpush1.msra.mxu0 0.0
      %1150 = vmatprep.subr.mxu0 0.0
      %1151 = vmatpush1.msra.mxu0 0.0
      %1152 = vmatprep.subr.mxu0 0.0
      %1153 = vmatpush1.msra.mxu0 0.0
      %1154 = vmatprep.subr.mxu0 0.0
      %1155 = vmatpush1.msra.mxu0 0.0
      %1156 = vmatprep.subr.mxu0 0.0
      %1157 = vmatpush1.msra.mxu0 0.0
      %1158 = vmatprep.subr.mxu0 0.0
      %1159 = vmatpush1.msra.mxu0 0.0
      %1160 = vmatprep.subr.mxu0 0.0
      %1161 = vmatpush1.msra.mxu0 0.0
      %1162 = vmatprep.subr.mxu0 0.0
      %1163 = vmatpush1.msra.mxu0 0.0
      %1164 = vmatprep.subr.mxu0 0.0
      %1165 = vmatpush1.msra.mxu0 0.0
      %1166 = vmatprep.subr.mxu0 0.0
      %1167 = vmatpush1.msra.mxu0 0.0
      %1168 = vmatprep.subr.mxu0 0.0
      %1169 = vmatpush1.msra.mxu0 0.0
      %1170 = vmatprep.subr.mxu0 0.0
      %1171 = vmatpush1.msra.mxu0 0.0
      %1172 = vmatprep.subr.mxu0 0.0
      %1173 = vmatpush1.msra.mxu0 0.0
      %1174 = vmatprep.subr.mxu0 0.0
      %1175 = vmatpush1.msra.mxu0 0.0
      %1176 = vmatprep.subr.mxu0 0.0
      %1177 = vmatpush1.msra.mxu0 0.0
      %1178 = vmatprep.subr.mxu0 0.0
      %1179 = vmatpush1.msra.mxu0 0.0
      %1180 = vmatprep.subr.mxu0 0.0
      %1181 = vmatpush1.msra.mxu0 0.0
      %1182 = vmatprep.mubr.f32.mxu0 0.0
      %v1183 = vand.u32 %v813, 4294901760
      %1184 = vmatmul.mubr.f32.gmra.mrb[0].mxu0 %v1183
      %v1185 = vpop.f32.mrb[0].mxu0
      %v1186 = vadd.f32 %v1112, %v1185
      %v1187 = vpop.f32.mrb[0].mxu0
      %1188 = vdwg.mxu0
      %1189 = vmatprep.subr.mxu0 0.0
      %v1190 = vand.u32 %v327, 4294901760
      %1191 = vmatpush1.msra.mxu0 %v1190
      %1192 = vmatprep.subr.mxu0 0.0
      %1193 = vmatpush1.msra.mxu0 0.0
      %1194 = vmatprep.subr.mxu0 0.0
      %1195 = vmatpush1.msra.mxu0 0.0
      %1196 = vmatprep.subr.mxu0 0.0
      %1197 = vmatpush1.msra.mxu0 0.0
      %1198 = vmatprep.subr.mxu0 0.0
      %1199 = vmatpush1.msra.mxu0 0.0
      %1200 = vmatprep.subr.mxu0 0.0
      %1201 = vmatpush1.msra.mxu0 0.0
      %1202 = vmatprep.subr.mxu0 0.0
      %1203 = vmatpush1.msra.mxu0 0.0
      %1204 = vmatprep.subr.mxu0 0.0
      %1205 = vmatpush1.msra.mxu0 0.0
      %1206 = vmatprep.subr.mxu0 0.0
      %1207 = vmatpush1.msra.mxu0 0.0
      %1208 = vmatprep.subr.mxu0 0.0
      %1209 = vmatpush1.msra.mxu0 0.0
      %1210 = vmatprep.subr.mxu0 0.0
      %1211 = vmatpush1.msra.mxu0 0.0
      %1212 = vmatprep.subr.mxu0 0.0
      %1213 = vmatpush1.msra.mxu0 0.0
      %1214 = vmatprep.subr.mxu0 0.0
      %1215 = vmatpush1.msra.mxu0 0.0
      %1216 = vmatprep.subr.mxu0 0.0
      %1217 = vmatpush1.msra.mxu0 0.0
      %1218 = vmatprep.subr.mxu0 0.0
      %1219 = vmatpush1.msra.mxu0 0.0
      %1220 = vmatprep.subr.mxu0 0.0
      %1221 = vmatpush1.msra.mxu0 0.0
      %1222 = vmatprep.subr.mxu0 0.0
      %1223 = vmatpush1.msra.mxu0 0.0
      %1224 = vmatprep.subr.mxu0 0.0
      %1225 = vmatpush1.msra.mxu0 0.0
      %1226 = vmatprep.subr.mxu0 0.0
      %1227 = vmatpush1.msra.mxu0 0.0
      %1228 = vmatprep.subr.mxu0 0.0
      %1229 = vmatpush1.msra.mxu0 0.0
      %1230 = vmatprep.subr.mxu0 0.0
      %1231 = vmatpush1.msra.mxu0 0.0
      %1232 = vmatprep.subr.mxu0 0.0
      %1233 = vmatpush1.msra.mxu0 0.0
      %1234 = vmatprep.subr.mxu0 0.0
      %1235 = vmatpush1.msra.mxu0 0.0
      %1236 = vmatprep.subr.mxu0 0.0
      %1237 = vmatpush1.msra.mxu0 0.0
      %1238 = vmatprep.subr.mxu0 0.0
      %1239 = vmatpush1.msra.mxu0 0.0
      %1240 = vmatprep.subr.mxu0 0.0
      %1241 = vmatpush1.msra.mxu0 0.0
      %1242 = vmatprep.subr.mxu0 0.0
      %1243 = vmatpush1.msra.mxu0 0.0
      %1244 = vmatprep.subr.mxu0 0.0
      %1245 = vmatpush1.msra.mxu0 0.0
      %1246 = vmatprep.subr.mxu0 0.0
      %1247 = vmatpush1.msra.mxu0 0.0
      %1248 = vmatprep.subr.mxu0 0.0
      %1249 = vmatpush1.msra.mxu0 0.0
      %1250 = vmatprep.subr.mxu0 0.0
      %1251 = vmatpush1.msra.mxu0 0.0
      %1252 = vmatprep.subr.mxu0 0.0
      %1253 = vmatpush1.msra.mxu0 0.0
      %1254 = vmatprep.mubr.f32.mxu0 0.0
      %v1255 = vand.u32 %v813, 4294901760
      %1256 = vmatmul.mubr.f32.gmra.mrb[0].mxu0 %v1255
      %v1257 = vpop.f32.mrb[0].mxu0
      %v1258 = vadd.f32 %v1186, %v1257
      %v1259 = vpop.f32.mrb[0].mxu0
      %1260 = vdwg.mxu0
      %v1261 = vadd.f32 %v811, %v1258
      %1262 = vst.msk [vmem:[#allocation4] sm:$0xff] %vm328, %v1261
      %1263 = vst.msk [vmem:[#allocation2] sm:$0xff] %vm803, %v785
      // Predicated region
      $region41: #{multi_head_attention_l.3} parent=35 // pred_check
        %p1264 = pneg %p315
      $region42: #{multi_head_attention_l.3} parent=35 // pred_check_branch
        %1266 = sbr.rel (%p1264) target = $region44
      $region43: #{multi_head_attention_l.3} parent=35 // pred_region
        %v1267 = vld [vmem:[#allocation3] sm:$0xff]
        %v1268 = vrcp.pop %v1267
        %v1269 = vmul.f32 %v1267, %v1268
        %v1270 = vsub.f32 2.0, %v1269
        %v1271 = vmul.f32 %v1268, %v1270
        %v1272 = vld [vmem:[#allocation4] sm:$0xff]
        %1274 = vset.pattern.permute.xlu0 0
        %1275 = vperm.xlu0 %1274, %v1271
        %v1276 = vpop.permute.xlu0 %1275
        %v1278 = vmul.f32 %v1272, %v1276
        %v1279 = vld [vmem:[%s307] sm:$0xff]
        %v1280 = vadd.f32 %v1278, %v1279
        %v1281 = vmax.f32 %v1280, 0.0
        %1282 = vst.msk [vmem:[%s314] sm:$0xff] %vm328, %v1281
      $region44: #{multi_head_attention_l.3} parent=35 // pred_fallthru
        _
      %p1283 = scmp.lt.s32.totalorder %s20, 7
      %s1284 = scalar_select %p1283, %s20, 7
      %p1285 = scmp.lt.s32.totalorder %s21, 0
      %s1286 = scalar_select %p1285, %s21, 0
      %s1287 = sadd.s32 %s1286, %s1284
      %s1288 = smul.addr %s1287, 8
      %s1289 = scalar_lea.vmem %s4, %s1288
      // Predicated region
      $region45: #{multi_head_attention_l.3} parent=35 // pred_check
        %p1290 = pneg %p166
      $region46: #{multi_head_attention_l.3} parent=35 // pred_check_branch
        %1292 = sbr.rel (%p1290) target = $region48
      $region47: #{multi_head_attention_l.3} parent=35 // pred_region
        _
      $region48: #{multi_head_attention_l.3} parent=35 // pred_fallthru
        _
    $region36: #{multi_head_attention_l.3} parent=5 // pred_fallthru
      _
    %p1293 = scmp.le.s32.totalorder 2, %s10
    // Predicated region
    $region49: #{multi_head_attention_l.3} parent=5 // pred_check
      %p1294 = pneg %p1293
    $region50: #{multi_head_attention_l.3} parent=5 // pred_check_branch
      %1296 = sbr.rel (%p1294) target = $region52
    $region51: #{multi_head_attention_l.3} parent=5 // pred_region
      %s1297 = ssub.s32 %s10, 2
      // Predicated region
      $region53: #{multi_head_attention_l.3} parent=51 // pred_check
        %p1298 = pneg %p172
      $region54: #{multi_head_attention_l.3} parent=51 // pred_check_branch
        %1300 = sbr.rel (%p1298) target = $region56
      $region55: #{multi_head_attention_l.3} parent=51 // pred_region
        %p1301 = scmp.lt.s32.totalorder %s23, 7
        %s1302 = scalar_select %p1301, %s23, 7
        %p1303 = scmp.lt.s32.totalorder %s24, 0
        %s1304 = scalar_select %p1303, %s24, 0
        %s1305 = sadd.s32 %s1304, %s1302
        %s1306 = smul.addr %s1305, 8
        %s1307 = scalar_lea.vmem %s4, %s1306
      $region56: #{multi_head_attention_l.3} parent=51 // pred_fallthru
        _
    $region52: #{multi_head_attention_l.3} parent=5 // pred_fallthru
      _
  $region6: #{multi_head_attention_l.3} parent=0 // loop_footer
    %s14 = sadd.s32 1, %s10
  $region7: #{multi_head_attention_l.3} parent=0 // loop_footer_branch
    %9 = sbr.rel target = $region3
  $region8: #{multi_head_attention_l.3} parent=0 // loop_exit
    _

// kernel: multi_head_attention_l.2
$region0: #{multi_head_attention_l.2}
  #allocation0 [shape = 'u32[]', space=smem, size = 0x4, offset = 0x4, fixed_abs, tag = 'smem constant byte address 0x4 - core index']
  #allocation1 [shape = 'u32[144,128]{1,0:T(1,128)}', space=vmem, size = 0x12000, scoped, tag = 'internal scratch']
  %s0 = inlined_call_operand.vmem [shape: f32[16,32], index: 0, kind: input, shape index: {}]
  %s1 = inlined_call_operand.vmem [shape: f32[16,32], index: 1, kind: input, shape index: {}]
  %s2 = inlined_call_operand.vmem [shape: f32[16,32], index: 2, kind: input, shape index: {}]
  %s3 = inlined_call_operand.vmem [shape: f32[32,32], index: 3, kind: input, shape index: {}]
  %s4 = inlined_call_operand.vmem [shape: f32[1,32], index: 4, kind: input, shape index: {}]
  %s5 = inlined_call_operand.vmem [shape: f32[32,32], index: 5, kind: input, shape index: {}]
  %s6 = inlined_call_operand.vmem [shape: f32[1,32], index: 6, kind: input, shape index: {}]
  %s7 = inlined_call_operand.vmem [shape: f32[32,64], index: 7, kind: input, shape index: {}]
  %s8 = inlined_call_operand.vmem [shape: f32[1,64], index: 8, kind: input, shape index: {}]
  %s9 = inlined_call_operand.vmem [shape: f32[16,32], index: 9, kind: output, shape index: {0}]
  %s10 = inlined_call_operand.vmem [shape: f32[16,32], index: 10, kind: output, shape index: {1}]
  %s11 = inlined_call_operand.vmem [shape: f32[16,64], index: 11, kind: output, shape index: {2}]
  %12 = xla_tuple %s9, %s10, %s11
  %s13 = sld [smem:[#allocation0]]
  $region62: #{multi_head_attention_l.2} parent=0
    _
  %s15 = ssub.s32 1, %s13
  %s16 = scalar_select 0, %s15, %s13
  // Predicated region
  $region2: #{multi_head_attention_l.2} parent=0 // pred_check
    _
  $region3: #{multi_head_attention_l.2} parent=0 // pred_check_branch
    %18 = sbr.rel (0) target = $region5
  $region4: #{multi_head_attention_l.2} parent=0 // pred_region
    _
  $region5: #{multi_head_attention_l.2} parent=0 // pred_fallthru
    _
  // Predicated region
  $region6: #{multi_head_attention_l.2} parent=0 // pred_check
    _
  $region7: #{multi_head_attention_l.2} parent=0 // pred_check_branch
    %20 = sbr.rel (0) target = $region9
  $region8: #{multi_head_attention_l.2} parent=0 // pred_region
    _
  $region9: #{multi_head_attention_l.2} parent=0 // pred_fallthru
    _
  // Predicated region
  $region10: #{multi_head_attention_l.2} parent=0 // pred_check
    _
  $region11: #{multi_head_attention_l.2} parent=0 // pred_check_branch
    %22 = sbr.rel (0) target = $region13
  $region12: #{multi_head_attention_l.2} parent=0 // pred_region
    _
  $region13: #{multi_head_attention_l.2} parent=0 // pred_fallthru
    _
  // Predicated region
  $region14: #{multi_head_attention_l.2} parent=0 // pred_check
    _
  $region15: #{multi_head_attention_l.2} parent=0 // pred_check_branch
    %24 = sbr.rel (0) target = $region17
  $region16: #{multi_head_attention_l.2} parent=0 // pred_region
    _
  $region17: #{multi_head_attention_l.2} parent=0 // pred_fallthru
    _
  // Predicated region
  $region18: #{multi_head_attention_l.2} parent=0 // pred_check
    _
  $region19: #{multi_head_attention_l.2} parent=0 // pred_check_branch
    %26 = sbr.rel (0) target = $region21
  $region20: #{multi_head_attention_l.2} parent=0 // pred_region
    _
  $region21: #{multi_head_attention_l.2} parent=0 // pred_fallthru
    _
  // Predicated region
  $region22: #{multi_head_attention_l.2} parent=0 // pred_check
    _
  $region23: #{multi_head_attention_l.2} parent=0 // pred_check_branch
    %28 = sbr.rel (0) target = $region25
  $region24: #{multi_head_attention_l.2} parent=0 // pred_region
    _
  $region25: #{multi_head_attention_l.2} parent=0 // pred_fallthru
    _
  // Predicated region
  $region26: #{multi_head_attention_l.2} parent=0 // pred_check
    _
  $region27: #{multi_head_attention_l.2} parent=0 // pred_check_branch
    %30 = sbr.rel (0) target = $region29
  $region28: #{multi_head_attention_l.2} parent=0 // pred_region
    _
  $region29: #{multi_head_attention_l.2} parent=0 // pred_fallthru
    _
  // Predicated region
  $region30: #{multi_head_attention_l.2} parent=0 // pred_check
    _
  $region31: #{multi_head_attention_l.2} parent=0 // pred_check_branch
    %32 = sbr.rel (0) target = $region33
  $region32: #{multi_head_attention_l.2} parent=0 // pred_region
    _
  $region33: #{multi_head_attention_l.2} parent=0 // pred_fallthru
    _
  // Predicated region
  $region34: #{multi_head_attention_l.2} parent=0 // pred_check
    _
  $region35: #{multi_head_attention_l.2} parent=0 // pred_check_branch
    %34 = sbr.rel (0) target = $region37
  $region36: #{multi_head_attention_l.2} parent=0 // pred_region
    _
  $region37: #{multi_head_attention_l.2} parent=0 // pred_fallthru
    _
  %v35 = vld [vmem:[%s0] sm:$0xff]
  %v36 = vld [vmem:[%s0 + $0x8] sm:$0xff]
  %v37 = vld [vmem:[%s3] sm:$0xff]
  %v38 = vld [vmem:[%s3 + $0x8] sm:$0xff]
  %v39 = vld [vmem:[%s3 + $0x10] sm:$0xff]
  %v40 = vld [vmem:[%s3 + $0x18] sm:$0xff]
  %v41 = vld [vmem:[%s4] sm:$0x1]
  %v43 = vlaneseq
  %v44 = vshrl.u32 %v43, 7
  %v45 = vsub.s32 0, %v44
  %v46 = vrot.slane %v41, %v45
  %vm48 = vcmask 261120
  %v50 = vsel %vm48, %v35, 0
  %v53 = vsel %vm48, %v36, 0
  %55 = vmatprep.subr.mxu0 0.0
  %v56 = vand.u32 %v37, 4294901760
  %57 = vmatpush1.msra.mxu0 %v56
  %58 = vmatprep.subr.mxu0 0.0
  %v59 = vand.u32 %v38, 4294901760
  %60 = vmatpush1.msra.mxu0 %v59
  %61 = vmatprep.subr.mxu0 0.0
  %v62 = vand.u32 %v39, 4294901760
  %63 = vmatpush1.msra.mxu0 %v62
  %64 = vmatprep.subr.mxu0 0.0
  %v65 = vand.u32 %v40, 4294901760
  %66 = vmatpush1.msra.mxu0 %v65
  %67 = vmatprep.subr.mxu0 0.0
  %68 = vmatpush1.msra.mxu0 0.0
  %69 = vmatprep.subr.mxu0 0.0
  %70 = vmatpush1.msra.mxu0 0.0
  %71 = vmatprep.subr.mxu0 0.0
  %72 = vmatpush1.msra.mxu0 0.0
  %73 = vmatprep.subr.mxu0 0.0
  %74 = vmatpush1.msra.mxu0 0.0
  %75 = vmatprep.subr.mxu0 0.0
  %76 = vmatpush1.msra.mxu0 0.0
  %77 = vmatprep.subr.mxu0 0.0
  %78 = vmatpush1.msra.mxu0 0.0
  %79 = vmatprep.subr.mxu0 0.0
  %80 = vmatpush1.msra.mxu0 0.0
  %81 = vmatprep.subr.mxu0 0.0
  %82 = vmatpush1.msra.mxu0 0.0
  %83 = vmatprep.subr.mxu0 0.0
  %84 = vmatpush1.msra.mxu0 0.0
  %85 = vmatprep.subr.mxu0 0.0
  %86 = vmatpush1.msra.mxu0 0.0
  %87 = vmatprep.subr.mxu0 0.0
  %88 = vmatpush1.msra.mxu0 0.0
  %89 = vmatprep.subr.mxu0 0.0
  %90 = vmatpush1.msra.mxu0 0.0
  %91 = vmatprep.subr.mxu0 0.0
  %92 = vmatpush1.msra.mxu0 0.0
  %93 = vmatprep.subr.mxu0 0.0
  %94 = vmatpush1.msra.mxu0 0.0
  %95 = vmatprep.subr.mxu0 0.0
  %96 = vmatpush1.msra.mxu0 0.0
  %97 = vmatprep.subr.mxu0 0.0
  %98 = vmatpush1.msra.mxu0 0.0
  %99 = vmatprep.subr.mxu0 0.0
  %100 = vmatpush1.msra.mxu0 0.0
  %101 = vmatprep.subr.mxu0 0.0
  %102 = vmatpush1.msra.mxu0 0.0
  %103 = vmatprep.subr.mxu0 0.0
  %104 = vmatpush1.msra.mxu0 0.0
  %105 = vmatprep.subr.mxu0 0.0
  %106 = vmatpush1.msra.mxu0 0.0
  %107 = vmatprep.subr.mxu0 0.0
  %108 = vmatpush1.msra.mxu0 0.0
  %109 = vmatprep.subr.mxu0 0.0
  %110 = vmatpush1.msra.mxu0 0.0
  %111 = vmatprep.subr.mxu0 0.0
  %112 = vmatpush1.msra.mxu0 0.0
  %113 = vmatprep.subr.mxu0 0.0
  %114 = vmatpush1.msra.mxu0 0.0
  %115 = vmatprep.subr.mxu0 0.0
  %116 = vmatpush1.msra.mxu0 0.0
  %117 = vmatprep.subr.mxu0 0.0
  %118 = vmatpush1.msra.mxu0 0.0
  %119 = vmatprep.subr.mxu0 0.0
  %120 = vmatpush1.msra.mxu0 0.0
  %121 = vmatprep.subr.mxu0 0.0
  %122 = vmatpush1.msra.mxu0 0.0
  %123 = vmatprep.mubr.f32.mxu0 0.0
  %v124 = vand.u32 %v50, 4294901760
  %v125 = vsub.f32 %v50, %v124
  %v126 = vand.u32 %v125, 4294901760
  %v127 = vsub.f32 %v125, %v126
  %v128 = vand.u32 %v127, 4294901760
  %129 = vmatmul.mubr.f32.gmra.mrb[0].mxu0 %v128
  %v130 = vpop.f32.mrb[0].mxu0
  %v131 = vadd.f32 %v46, %v130
  %v132 = vpop.f32.mrb[0].mxu0
  %133 = vmatprep.mubr.f32.mxu0 0.0
  %v134 = vand.u32 %v53, 4294901760
  %v135 = vsub.f32 %v53, %v134
  %v136 = vand.u32 %v135, 4294901760
  %v137 = vsub.f32 %v135, %v136
  %v138 = vand.u32 %v137, 4294901760
  %139 = vmatmul.mubr.f32.gmra.mrb[0].mxu0 %v138
  %v140 = vpop.f32.mrb[0].mxu0
  %v141 = vadd.f32 %v46, %v140
  %v142 = vpop.f32.mrb[0].mxu0
  %143 = vdwg.mxu0
  %144 = vmatprep.subr.mxu0 0.0
  %v145 = vand.u32 %v37, 4294901760
  %v146 = vsub.f32 %v37, %v145
  %v147 = vand.u32 %v146, 4294901760
  %v148 = vsub.f32 %v146, %v147
  %v149 = vand.u32 %v148, 4294901760
  %150 = vmatpush1.msra.mxu0 %v149
  %151 = vmatprep.subr.mxu0 0.0
  %v152 = vand.u32 %v38, 4294901760
  %v153 = vsub.f32 %v38, %v152
  %v154 = vand.u32 %v153, 4294901760
  %v155 = vsub.f32 %v153, %v154
  %v156 = vand.u32 %v155, 4294901760
  %157 = vmatpush1.msra.mxu0 %v156
  %158 = vmatprep.subr.mxu0 0.0
  %v159 = vand.u32 %v39, 4294901760
  %v160 = vsub.f32 %v39, %v159
  %v161 = vand.u32 %v160, 4294901760
  %v162 = vsub.f32 %v160, %v161
  %v163 = vand.u32 %v162, 4294901760
  %164 = vmatpush1.msra.mxu0 %v163
  %165 = vmatprep.subr.mxu0 0.0
  %v166 = vand.u32 %v40, 4294901760
  %v167 = vsub.f32 %v40, %v166
  %v168 = vand.u32 %v167, 4294901760
  %v169 = vsub.f32 %v167, %v168
  %v170 = vand.u32 %v169, 4294901760
  %171 = vmatpush1.msra.mxu0 %v170
  %172 = vmatprep.subr.mxu0 0.0
  %173 = vmatpush1.msra.mxu0 0.0
  %174 = vmatprep.subr.mxu0 0.0
  %175 = vmatpush1.msra.mxu0 0.0
  %176 = vmatprep.subr.mxu0 0.0
  %177 = vmatpush1.msra.mxu0 0.0
  %178 = vmatprep.subr.mxu0 0.0
  %179 = vmatpush1.msra.mxu0 0.0
  %180 = vmatprep.subr.mxu0 0.0
  %181 = vmatpush1.msra.mxu0 0.0
  %182 = vmatprep.subr.mxu0 0.0
  %183 = vmatpush1.msra.mxu0 0.0
  %184 = vmatprep.subr.mxu0 0.0
  %185 = vmatpush1.msra.mxu0 0.0
  %186 = vmatprep.subr.mxu0 0.0
  %187 = vmatpush1.msra.mxu0 0.0
  %188 = vmatprep.subr.mxu0 0.0
  %189 = vmatpush1.msra.mxu0 0.0
  %190 = vmatprep.subr.mxu0 0.0
  %191 = vmatpush1.msra.mxu0 0.0
  %192 = vmatprep.subr.mxu0 0.0
  %193 = vmatpush1.msra.mxu0 0.0
  %194 = vmatprep.subr.mxu0 0.0
  %195 = vmatpush1.msra.mxu0 0.0
  %196 = vmatprep.subr.mxu0 0.0
  %197 = vmatpush1.msra.mxu0 0.0
  %198 = vmatprep.subr.mxu0 0.0
  %199 = vmatpush1.msra.mxu0 0.0
  %200 = vmatprep.subr.mxu0 0.0
  %201 = vmatpush1.msra.mxu0 0.0
  %202 = vmatprep.subr.mxu0 0.0
  %203 = vmatpush1.msra.mxu0 0.0
  %204 = vmatprep.subr.mxu0 0.0
  %205 = vmatpush1.msra.mxu0 0.0
  %206 = vmatprep.subr.mxu0 0.0
  %207 = vmatpush1.msra.mxu0 0.0
  %208 = vmatprep.subr.mxu0 0.0
  %209 = vmatpush1.msra.mxu0 0.0
  %210 = vmatprep.subr.mxu0 0.0
  %211 = vmatpush1.msra.mxu0 0.0
  %212 = vmatprep.subr.mxu0 0.0
  %213 = vmatpush1.msra.mxu0 0.0
  %214 = vmatprep.subr.mxu0 0.0
  %215 = vmatpush1.msra.mxu0 0.0
  %216 = vmatprep.subr.mxu0 0.0
  %217 = vmatpush1.msra.mxu0 0.0
  %218 = vmatprep.subr.mxu0 0.0
  %219 = vmatpush1.msra.mxu0 0.0
  %220 = vmatprep.subr.mxu0 0.0
  %221 = vmatpush1.msra.mxu0 0.0
  %222 = vmatprep.subr.mxu0 0.0
  %223 = vmatpush1.msra.mxu0 0.0
  %224 = vmatprep.subr.mxu0 0.0
  %225 = vmatpush1.msra.mxu0 0.0
  %226 = vmatprep.subr.mxu0 0.0
  %227 = vmatpush1.msra.mxu0 0.0
  %228 = vmatprep.mubr.f32.mxu0 0.0
  %v229 = vand.u32 %v50, 4294901760
  %230 = vmatmul.mubr.f32.gmra.mrb[0].mxu0 %v229
  %v231 = vpop.f32.mrb[0].mxu0
  %v232 = vadd.f32 %v131, %v231
  %v233 = vpop.f32.mrb[0].mxu0
  %234 = vmatprep.mubr.f32.mxu0 0.0
  %v235 = vand.u32 %v53, 4294901760
  %236 = vmatmul.mubr.f32.gmra.mrb[0].mxu0 %v235
  %v237 = vpop.f32.mrb[0].mxu0
  %v238 = vadd.f32 %v141, %v237
  %v239 = vpop.f32.mrb[0].mxu0
  %240 = vdwg.mxu0
  %241 = vmatprep.subr.mxu0 0.0
  %v242 = vand.u32 %v37, 4294901760
  %v243 = vsub.f32 %v37, %v242
  %244 = vmatpush1.msra.mxu0 %v243
  %245 = vmatprep.subr.mxu0 0.0
  %v246 = vand.u32 %v38, 4294901760
  %v247 = vsub.f32 %v38, %v246
  %248 = vmatpush1.msra.mxu0 %v247
  %249 = vmatprep.subr.mxu0 0.0
  %v250 = vand.u32 %v39, 4294901760
  %v251 = vsub.f32 %v39, %v250
  %252 = vmatpush1.msra.mxu0 %v251
  %253 = vmatprep.subr.mxu0 0.0
  %v254 = vand.u32 %v40, 4294901760
  %v255 = vsub.f32 %v40, %v254
  %256 = vmatpush1.msra.mxu0 %v255
  %257 = vmatprep.subr.mxu0 0.0
  %258 = vmatpush1.msra.mxu0 0.0
  %259 = vmatprep.subr.mxu0 0.0
  %260 = vmatpush1.msra.mxu0 0.0
  %261 = vmatprep.subr.mxu0 0.0
  %262 = vmatpush1.msra.mxu0 0.0
  %263 = vmatprep.subr.mxu0 0.0
  %264 = vmatpush1.msra.mxu0 0.0
  %265 = vmatprep.subr.mxu0 0.0
  %266 = vmatpush1.msra.mxu0 0.0
  %267 = vmatprep.subr.mxu0 0.0
  %268 = vmatpush1.msra.mxu0 0.0
  %269 = vmatprep.subr.mxu0 0.0
  %270 = vmatpush1.msra.mxu0 0.0
  %271 = vmatprep.subr.mxu0 0.0
  %272 = vmatpush1.msra.mxu0 0.0
  %273 = vmatprep.subr.mxu0 0.0
  %274 = vmatpush1.msra.mxu0 0.0
  %275 = vmatprep.subr.mxu0 0.0
  %276 = vmatpush1.msra.mxu0 0.0
  %277 = vmatprep.subr.mxu0 0.0
  %278 = vmatpush1.msra.mxu0 0.0
  %279 = vmatprep.subr.mxu0 0.0
  %280 = vmatpush1.msra.mxu0 0.0
  %281 = vmatprep.subr.mxu0 0.0
  %282 = vmatpush1.msra.mxu0 0.0
  %283 = vmatprep.subr.mxu0 0.0
  %284 = vmatpush1.msra.mxu0 0.0
  %285 = vmatprep.subr.mxu0 0.0
  %286 = vmatpush1.msra.mxu0 0.0
  %287 = vmatprep.subr.mxu0 0.0
  %288 = vmatpush1.msra.mxu0 0.0
  %289 = vmatprep.subr.mxu0 0.0
  %290 = vmatpush1.msra.mxu0 0.0
  %291 = vmatprep.subr.mxu0 0.0
  %292 = vmatpush1.msra.mxu0 0.0
  %293 = vmatprep.subr.mxu0 0.0
  %294 = vmatpush1.msra.mxu0 0.0
  %295 = vmatprep.subr.mxu0 0.0
  %296 = vmatpush1.msra.mxu0 0.0
  %297 = vmatprep.subr.mxu0 0.0
  %298 = vmatpush1.msra.mxu0 0.0
  %299 = vmatprep.subr.mxu0 0.0
  %300 = vmatpush1.msra.mxu0 0.0
  %301 = vmatprep.subr.mxu0 0.0
  %302 = vmatpush1.msra.mxu0 0.0
  %303 = vmatprep.subr.mxu0 0.0
  %304 = vmatpush1.msra.mxu0 0.0
  %305 = vmatprep.subr.mxu0 0.0
  %306 = vmatpush1.msra.mxu0 0.0
  %307 = vmatprep.subr.mxu0 0.0
  %308 = vmatpush1.msra.mxu0 0.0
  %309 = vmatprep.subr.mxu0 0.0
  %310 = vmatpush1.msra.mxu0 0.0
  %311 = vmatprep.subr.mxu0 0.0
  %312 = vmatpush1.msra.mxu0 0.0
  %313 = vmatprep.mubr.f32.mxu0 0.0
  %v314 = vand.u32 %v50, 4294901760
  %v315 = vsub.f32 %v50, %v314
  %316 = vmatmul.mubr.f32.gmra.mrb[0].mxu0 %v315
  %v317 = vpop.f32.mrb[0].mxu0
  %v318 = vadd.f32 %v232, %v317
  %v319 = vpop.f32.mrb[0].mxu0
  %320 = vmatprep.mubr.f32.mxu0 0.0
  %v321 = vand.u32 %v53, 4294901760
  %v322 = vsub.f32 %v53, %v321
  %323 = vmatmul.mubr.f32.gmra.mrb[0].mxu0 %v322
  %v324 = vpop.f32.mrb[0].mxu0
  %v325 = vadd.f32 %v238, %v324
  %v326 = vpop.f32.mrb[0].mxu0
  %327 = vdwg.mxu0
  %328 = vmatprep.subr.mxu0 0.0
  %v329 = vand.u32 %v37, 4294901760
  %330 = vmatpush1.msra.mxu0 %v329
  %331 = vmatprep.subr.mxu0 0.0
  %v332 = vand.u32 %v38, 4294901760
  %333 = vmatpush1.msra.mxu0 %v332
  %334 = vmatprep.subr.mxu0 0.0
  %v335 = vand.u32 %v39, 4294901760
  %336 = vmatpush1.msra.mxu0 %v335
  %337 = vmatprep.subr.mxu0 0.0
  %v338 = vand.u32 %v40, 4294901760
  %339 = vmatpush1.msra.mxu0 %v338
  %340 = vmatprep.subr.mxu0 0.0
  %341 = vmatpush1.msra.mxu0 0.0
  %342 = vmatprep.subr.mxu0 0.0
  %343 = vmatpush1.msra.mxu0 0.0
  %344 = vmatprep.subr.mxu0 0.0
  %345 = vmatpush1.msra.mxu0 0.0
  %346 = vmatprep.subr.mxu0 0.0
  %347 = vmatpush1.msra.mxu0 0.0
  %348 = vmatprep.subr.mxu0 0.0
  %349 = vmatpush1.msra.mxu0 0.0
  %350 = vmatprep.subr.mxu0 0.0
  %351 = vmatpush1.msra.mxu0 0.0
  %352 = vmatprep.subr.mxu0 0.0
  %353 = vmatpush1.msra.mxu0 0.0
  %354 = vmatprep.subr.mxu0 0.0
  %355 = vmatpush1.msra.mxu0 0.0
  %356 = vmatprep.subr.mxu0 0.0
  %357 = vmatpush1.msra.mxu0 0.0
  %358 = vmatprep.subr.mxu0 0.0
  %359 = vmatpush1.msra.mxu0 0.0
  %360 = vmatprep.subr.mxu0 0.0
  %361 = vmatpush1.msra.mxu0 0.0
  %362 = vmatprep.subr.mxu0 0.0
  %363 = vmatpush1.msra.mxu0 0.0
  %364 = vmatprep.subr.mxu0 0.0
  %365 = vmatpush1.msra.mxu0 0.0
  %366 = vmatprep.subr.mxu0 0.0
  %367 = vmatpush1.msra.mxu0 0.0
  %368 = vmatprep.subr.mxu0 0.0
  %369 = vmatpush1.msra.mxu0 0.0
  %370 = vmatprep.subr.mxu0 0.0
  %371 = vmatpush1.msra.mxu0 0.0
  %372 = vmatprep.subr.mxu0 0.0
  %373 = vmatpush1.msra.mxu0 0.0
  %374 = vmatprep.subr.mxu0 0.0
  %375 = vmatpush1.msra.mxu0 0.0
  %376 = vmatprep.subr.mxu0 0.0
  %377 = vmatpush1.msra.mxu0 0.0
  %378 = vmatprep.subr.mxu0 0.0
  %379 = vmatpush1.msra.mxu0 0.0
  %380 = vmatprep.subr.mxu0 0.0
  %381 = vmatpush1.msra.mxu0 0.0
  %382 = vmatprep.subr.mxu0 0.0
  %383 = vmatpush1.msra.mxu0 0.0
  %384 = vmatprep.subr.mxu0 0.0
  %385 = vmatpush1.msra.mxu0 0.0
  %386 = vmatprep.subr.mxu0 0.0
  %387 = vmatpush1.msra.mxu0 0.0
  %388 = vmatprep.subr.mxu0 0.0
  %389 = vmatpush1.msra.mxu0 0.0
  %390 = vmatprep.subr.mxu0 0.0
  %391 = vmatpush1.msra.mxu0 0.0
  %392 = vmatprep.subr.mxu0 0.0
  %393 = vmatpush1.msra.mxu0 0.0
  %394 = vmatprep.subr.mxu0 0.0
  %395 = vmatpush1.msra.mxu0 0.0
  %396 = vmatprep.mubr.f32.mxu0 0.0
  %v397 = vand.u32 %v50, 4294901760
  %v398 = vsub.f32 %v50, %v397
  %v399 = vand.u32 %v398, 4294901760
  %400 = vmatmul.mubr.f32.gmra.mrb[0].mxu0 %v399
  %v401 = vpop.f32.mrb[0].mxu0
  %v402 = vadd.f32 %v318, %v401
  %v403 = vpop.f32.mrb[0].mxu0
  %404 = vmatprep.mubr.f32.mxu0 0.0
  %v405 = vand.u32 %v53, 4294901760
  %v406 = vsub.f32 %v53, %v405
  %v407 = vand.u32 %v406, 4294901760
  %408 = vmatmul.mubr.f32.gmra.mrb[0].mxu0 %v407
  %v409 = vpop.f32.mrb[0].mxu0
  %v410 = vadd.f32 %v325, %v409
  %v411 = vpop.f32.mrb[0].mxu0
  %412 = vdwg.mxu0
  %413 = vmatprep.subr.mxu0 0.0
  %v414 = vand.u32 %v37, 4294901760
  %v415 = vsub.f32 %v37, %v414
  %v416 = vand.u32 %v415, 4294901760
  %417 = vmatpush1.msra.mxu0 %v416
  %418 = vmatprep.subr.mxu0 0.0
  %v419 = vand.u32 %v38, 4294901760
  %v420 = vsub.f32 %v38, %v419
  %v421 = vand.u32 %v420, 4294901760
  %422 = vmatpush1.msra.mxu0 %v421
  %423 = vmatprep.subr.mxu0 0.0
  %v424 = vand.u32 %v39, 4294901760
  %v425 = vsub.f32 %v39, %v424
  %v426 = vand.u32 %v425, 4294901760
  %427 = vmatpush1.msra.mxu0 %v426
  %428 = vmatprep.subr.mxu0 0.0
  %v429 = vand.u32 %v40, 4294901760
  %v430 = vsub.f32 %v40, %v429
  %v431 = vand.u32 %v430, 4294901760
  %432 = vmatpush1.msra.mxu0 %v431
  %433 = vmatprep.subr.mxu0 0.0
  %434 = vmatpush1.msra.mxu0 0.0
  %435 = vmatprep.subr.mxu0 0.0
  %436 = vmatpush1.msra.mxu0 0.0
  %437 = vmatprep.subr.mxu0 0.0
  %438 = vmatpush1.msra.mxu0 0.0
  %439 = vmatprep.subr.mxu0 0.0
  %440 = vmatpush1.msra.mxu0 0.0
  %441 = vmatprep.subr.mxu0 0.0
  %442 = vmatpush1.msra.mxu0 0.0
  %443 = vmatprep.subr.mxu0 0.0
  %444 = vmatpush1.msra.mxu0 0.0
  %445 = vmatprep.subr.mxu0 0.0
  %446 = vmatpush1.msra.mxu0 0.0
  %447 = vmatprep.subr.mxu0 0.0
  %448 = vmatpush1.msra.mxu0 0.0
  %449 = vmatprep.subr.mxu0 0.0
  %450 = vmatpush1.msra.mxu0 0.0
  %451 = vmatprep.subr.mxu0 0.0
  %452 = vmatpush1.msra.mxu0 0.0
  %453 = vmatprep.subr.mxu0 0.0
  %454 = vmatpush1.msra.mxu0 0.0
  %455 = vmatprep.subr.mxu0 0.0
  %456 = vmatpush1.msra.mxu0 0.0
  %457 = vmatprep.subr.mxu0 0.0
  %458 = vmatpush1.msra.mxu0 0.0
  %459 = vmatprep.subr.mxu0 0.0
  %460 = vmatpush1.msra.mxu0 0.0
  %461 = vmatprep.subr.mxu0 0.0
  %462 = vmatpush1.msra.mxu0 0.0
  %463 = vmatprep.subr.mxu0 0.0
  %464 = vmatpush1.msra.mxu0 0.0
  %465 = vmatprep.subr.mxu0 0.0
  %466 = vmatpush1.msra.mxu0 0.0
  %467 = vmatprep.subr.mxu0 0.0
  %468 = vmatpush1.msra.mxu0 0.0
  %469 = vmatprep.subr.mxu0 0.0
  %470 = vmatpush1.msra.mxu0 0.0
  %471 = vmatprep.subr.mxu0 0.0
  %472 = vmatpush1.msra.mxu0 0.0
  %473 = vmatprep.subr.mxu0 0.0
  %474 = vmatpush1.msra.mxu0 0.0
  %475 = vmatprep.subr.mxu0 0.0
  %476 = vmatpush1.msra.mxu0 0.0
  %477 = vmatprep.subr.mxu0 0.0
  %478 = vmatpush1.msra.mxu0 0.0
  %479 = vmatprep.subr.mxu0 0.0
  %480 = vmatpush1.msra.mxu0 0.0
  %481 = vmatprep.subr.mxu0 0.0
  %482 = vmatpush1.msra.mxu0 0.0
  %483 = vmatprep.subr.mxu0 0.0
  %484 = vmatpush1.msra.mxu0 0.0
  %485 = vmatprep.subr.mxu0 0.0
  %486 = vmatpush1.msra.mxu0 0.0
  %487 = vmatprep.subr.mxu0 0.0
  %488 = vmatpush1.msra.mxu0 0.0
  %489 = vmatprep.mubr.f32.mxu0 0.0
  %v490 = vand.u32 %v50, 4294901760
  %491 = vmatmul.mubr.f32.gmra.mrb[0].mxu0 %v490
  %v492 = vpop.f32.mrb[0].mxu0
  %v493 = vadd.f32 %v402, %v492
  %v494 = vpop.f32.mrb[0].mxu0
  %495 = vmatprep.mubr.f32.mxu0 0.0
  %v496 = vand.u32 %v53, 4294901760
  %497 = vmatmul.mubr.f32.gmra.mrb[0].mxu0 %v496
  %v498 = vpop.f32.mrb[0].mxu0
  %v499 = vadd.f32 %v410, %v498
  %v500 = vpop.f32.mrb[0].mxu0
  %501 = vdwg.mxu0
  %502 = vmatprep.subr.mxu0 0.0
  %v503 = vand.u32 %v37, 4294901760
  %504 = vmatpush1.msra.mxu0 %v503
  %505 = vmatprep.subr.mxu0 0.0
  %v506 = vand.u32 %v38, 4294901760
  %507 = vmatpush1.msra.mxu0 %v506
  %508 = vmatprep.subr.mxu0 0.0
  %v509 = vand.u32 %v39, 4294901760
  %510 = vmatpush1.msra.mxu0 %v509
  %511 = vmatprep.subr.mxu0 0.0
  %v512 = vand.u32 %v40, 4294901760
  %513 = vmatpush1.msra.mxu0 %v512
  %514 = vmatprep.subr.mxu0 0.0
  %515 = vmatpush1.msra.mxu0 0.0
  %516 = vmatprep.subr.mxu0 0.0
  %517 = vmatpush1.msra.mxu0 0.0
  %518 = vmatprep.subr.mxu0 0.0
  %519 = vmatpush1.msra.mxu0 0.0
  %520 = vmatprep.subr.mxu0 0.0
  %521 = vmatpush1.msra.mxu0 0.0
  %522 = vmatprep.subr.mxu0 0.0
  %523 = vmatpush1.msra.mxu0 0.0
  %524 = vmatprep.subr.mxu0 0.0
  %525 = vmatpush1.msra.mxu0 0.0
  %526 = vmatprep.subr.mxu0 0.0
  %527 = vmatpush1.msra.mxu0 0.0
  %528 = vmatprep.subr.mxu0 0.0
  %529 = vmatpush1.msra.mxu0 0.0
  %530 = vmatprep.subr.mxu0 0.0
  %531 = vmatpush1.msra.mxu0 0.0
  %532 = vmatprep.subr.mxu0 0.0
  %533 = vmatpush1.msra.mxu0 0.0
  %534 = vmatprep.subr.mxu0 0.0
  %535 = vmatpush1.msra.mxu0 0.0
  %536 = vmatprep.subr.mxu0 0.0
  %537 = vmatpush1.msra.mxu0 0.0
  %538 = vmatprep.subr.mxu0 0.0
  %539 = vmatpush1.msra.mxu0 0.0
  %540 = vmatprep.subr.mxu0 0.0
  %541 = vmatpush1.msra.mxu0 0.0
  %542 = vmatprep.subr.mxu0 0.0
  %543 = vmatpush1.msra.mxu0 0.0
  %544 = vmatprep.subr.mxu0 0.0
  %545 = vmatpush1.msra.mxu0 0.0
  %546 = vmatprep.subr.mxu0 0.0
  %547 = vmatpush1.msra.mxu0 0.0
  %548 = vmatprep.subr.mxu0 0.0
  %549 = vmatpush1.msra.mxu0 0.0
  %550 = vmatprep.subr.mxu0 0.0
  %551 = vmatpush1.msra.mxu0 0.0
  %552 = vmatprep.subr.mxu0 0.0
  %553 = vmatpush1.msra.mxu0 0.0
  %554 = vmatprep.subr.mxu0 0.0
  %555 = vmatpush1.msra.mxu0 0.0
  %556 = vmatprep.subr.mxu0 0.0
  %557 = vmatpush1.msra.mxu0 0.0
  %558 = vmatprep.subr.mxu0 0.0
  %559 = vmatpush1.msra.mxu0 0.0
  %560 = vmatprep.subr.mxu0 0.0
  %561 = vmatpush1.msra.mxu0 0.0
  %562 = vmatprep.subr.mxu0 0.0
  %563 = vmatpush1.msra.mxu0 0.0
  %564 = vmatprep.subr.mxu0 0.0
  %565 = vmatpush1.msra.mxu0 0.0
  %566 = vmatprep.subr.mxu0 0.0
  %567 = vmatpush1.msra.mxu0 0.0
  %568 = vmatprep.subr.mxu0 0.0
  %569 = vmatpush1.msra.mxu0 0.0
  %570 = vmatprep.mubr.f32.mxu0 0.0
  %v571 = vand.u32 %v50, 4294901760
  %572 = vmatmul.mubr.f32.gmra.mrb[0].mxu0 %v571
  %v573 = vpop.f32.mrb[0].mxu0
  %v574 = vadd.f32 %v493, %v573
  %v575 = vpop.f32.mrb[0].mxu0
  %576 = vmatprep.mubr.f32.mxu0 0.0
  %v577 = vand.u32 %v53, 4294901760
  %578 = vmatmul.mubr.f32.gmra.mrb[0].mxu0 %v577
  %v579 = vpop.f32.mrb[0].mxu0
  %v580 = vadd.f32 %v499, %v579
  %v581 = vpop.f32.mrb[0].mxu0
  %582 = vdwg.mxu0
  %583 = vst.msk [vmem:[%s9] sm:$0xff] %vm48, %v574
  %584 = vst.msk [vmem:[%s9 + $0x8] sm:$0xff] %vm48, %v580
  %v585 = vld [vmem:[%s1] sm:$0xff]
  %v586 = vld [vmem:[%s1 + $0x8] sm:$0xff]
  %v587 = vld [vmem:[%s5] sm:$0xff]
  %v588 = vld [vmem:[%s5 + $0x8] sm:$0xff]
  %v589 = vld [vmem:[%s5 + $0x10] sm:$0xff]
  %v590 = vld [vmem:[%s5 + $0x18] sm:$0xff]
  %v591 = vld [vmem:[%s6] sm:$0x1]
  %v593 = vlaneseq
  %v594 = vshrl.u32 %v593, 7
  %v595 = vsub.s32 0, %v594
  %v596 = vrot.slane %v591, %v595
  %v599 = vsel %vm48, %v585, 0
  %v602 = vsel %vm48, %v586, 0
  %604 = vmatprep.subr.mxu0 0.0
  %v605 = vand.u32 %v587, 4294901760
  %606 = vmatpush1.msra.mxu0 %v605
  %607 = vmatprep.subr.mxu0 0.0
  %v608 = vand.u32 %v588, 4294901760
  %609 = vmatpush1.msra.mxu0 %v608
  %610 = vmatprep.subr.mxu0 0.0
  %v611 = vand.u32 %v589, 4294901760
  %612 = vmatpush1.msra.mxu0 %v611
  %613 = vmatprep.subr.mxu0 0.0
  %v614 = vand.u32 %v590, 4294901760
  %615 = vmatpush1.msra.mxu0 %v614
  %616 = vmatprep.subr.mxu0 0.0
  %617 = vmatpush1.msra.mxu0 0.0
  %618 = vmatprep.subr.mxu0 0.0
  %619 = vmatpush1.msra.mxu0 0.0
  %620 = vmatprep.subr.mxu0 0.0
  %621 = vmatpush1.msra.mxu0 0.0
  %622 = vmatprep.subr.mxu0 0.0
  %623 = vmatpush1.msra.mxu0 0.0
  %624 = vmatprep.subr.mxu0 0.0
  %625 = vmatpush1.msra.mxu0 0.0
  %626 = vmatprep.subr.mxu0 0.0
  %627 = vmatpush1.msra.mxu0 0.0
  %628 = vmatprep.subr.mxu0 0.0
  %629 = vmatpush1.msra.mxu0 0.0
  %630 = vmatprep.subr.mxu0 0.0
  %631 = vmatpush1.msra.mxu0 0.0
  %632 = vmatprep.subr.mxu0 0.0
  %633 = vmatpush1.msra.mxu0 0.0
  %634 = vmatprep.subr.mxu0 0.0
  %635 = vmatpush1.msra.mxu0 0.0
  %636 = vmatprep.subr.mxu0 0.0
  %637 = vmatpush1.msra.mxu0 0.0
  %638 = vmatprep.subr.mxu0 0.0
  %639 = vmatpush1.msra.mxu0 0.0
  %640 = vmatprep.subr.mxu0 0.0
  %641 = vmatpush1.msra.mxu0 0.0
  %642 = vmatprep.subr.mxu0 0.0
  %643 = vmatpush1.msra.mxu0 0.0
  %644 = vmatprep.subr.mxu0 0.0
  %645 = vmatpush1.msra.mxu0 0.0
  %646 = vmatprep.subr.mxu0 0.0
  %647 = vmatpush1.msra.mxu0 0.0
  %648 = vmatprep.subr.mxu0 0.0
  %649 = vmatpush1.msra.mxu0 0.0
  %650 = vmatprep.subr.mxu0 0.0
  %651 = vmatpush1.msra.mxu0 0.0
  %652 = vmatprep.subr.mxu0 0.0
  %653 = vmatpush1.msra.mxu0 0.0
  %654 = vmatprep.subr.mxu0 0.0
  %655 = vmatpush1.msra.mxu0 0.0
  %656 = vmatprep.subr.mxu0 0.0
  %657 = vmatpush1.msra.mxu0 0.0
  %658 = vmatprep.subr.mxu0 0.0
  %659 = vmatpush1.msra.mxu0 0.0
  %660 = vmatprep.subr.mxu0 0.0
  %661 = vmatpush1.msra.mxu0 0.0
  %662 = vmatprep.subr.mxu0 0.0
  %663 = vmatpush1.msra.mxu0 0.0
  %664 = vmatprep.subr.mxu0 0.0
  %665 = vmatpush1.msra.mxu0 0.0
  %666 = vmatprep.subr.mxu0 0.0
  %667 = vmatpush1.msra.mxu0 0.0
  %668 = vmatprep.subr.mxu0 0.0
  %669 = vmatpush1.msra.mxu0 0.0
  %670 = vmatprep.subr.mxu0 0.0
  %671 = vmatpush1.msra.mxu0 0.0
  %672 = vmatprep.mubr.f32.mxu0 0.0
  %v673 = vand.u32 %v599, 4294901760
  %v674 = vsub.f32 %v599, %v673
  %v675 = vand.u32 %v674, 4294901760
  %v676 = vsub.f32 %v674, %v675
  %v677 = vand.u32 %v676, 4294901760
  %678 = vmatmul.mubr.f32.gmra.mrb[0].mxu0 %v677
  %v679 = vpop.f32.mrb[0].mxu0
  %v680 = vadd.f32 %v596, %v679
  %v681 = vpop.f32.mrb[0].mxu0
  %682 = vmatprep.mubr.f32.mxu0 0.0
  %v683 = vand.u32 %v602, 4294901760
  %v684 = vsub.f32 %v602, %v683
  %v685 = vand.u32 %v684, 4294901760
  %v686 = vsub.f32 %v684, %v685
  %v687 = vand.u32 %v686, 4294901760
  %688 = vmatmul.mubr.f32.gmra.mrb[0].mxu0 %v687
  %v689 = vpop.f32.mrb[0].mxu0
  %v690 = vadd.f32 %v596, %v689
  %v691 = vpop.f32.mrb[0].mxu0
  %692 = vdwg.mxu0
  %693 = vmatprep.subr.mxu0 0.0
  %v694 = vand.u32 %v587, 4294901760
  %v695 = vsub.f32 %v587, %v694
  %v696 = vand.u32 %v695, 4294901760
  %v697 = vsub.f32 %v695, %v696
  %v698 = vand.u32 %v697, 4294901760
  %699 = vmatpush1.msra.mxu0 %v698
  %700 = vmatprep.subr.mxu0 0.0
  %v701 = vand.u32 %v588, 4294901760
  %v702 = vsub.f32 %v588, %v701
  %v703 = vand.u32 %v702, 4294901760
  %v704 = vsub.f32 %v702, %v703
  %v705 = vand.u32 %v704, 4294901760
  %706 = vmatpush1.msra.mxu0 %v705
  %707 = vmatprep.subr.mxu0 0.0
  %v708 = vand.u32 %v589, 4294901760
  %v709 = vsub.f32 %v589, %v708
  %v710 = vand.u32 %v709, 4294901760
  %v711 = vsub.f32 %v709, %v710
  %v712 = vand.u32 %v711, 4294901760
  %713 = vmatpush1.msra.mxu0 %v712
  %714 = vmatprep.subr.mxu0 0.0
  %v715 = vand.u32 %v590, 4294901760
  %v716 = vsub.f32 %v590, %v715
  %v717 = vand.u32 %v716, 4294901760
  %v718 = vsub.f32 %v716, %v717
  %v719 = vand.u32 %v718, 4294901760
  %720 = vmatpush1.msra.mxu0 %v719
  %721 = vmatprep.subr.mxu0 0.0
  %722 = vmatpush1.msra.mxu0 0.0
  %723 = vmatprep.subr.mxu0 0.0
  %724 = vmatpush1.msra.mxu0 0.0
  %725 = vmatprep.subr.mxu0 0.0
  %726 = vmatpush1.msra.mxu0 0.0
  %727 = vmatprep.subr.mxu0 0.0
  %728 = vmatpush1.msra.mxu0 0.0
  %729 = vmatprep.subr.mxu0 0.0
  %730 = vmatpush1.msra.mxu0 0.0
  %731 = vmatprep.subr.mxu0 0.0
  %732 = vmatpush1.msra.mxu0 0.0
  %733 = vmatprep.subr.mxu0 0.0
  %734 = vmatpush1.msra.mxu0 0.0
  %735 = vmatprep.subr.mxu0 0.0
  %736 = vmatpush1.msra.mxu0 0.0
  %737 = vmatprep.subr.mxu0 0.0
  %738 = vmatpush1.msra.mxu0 0.0
  %739 = vmatprep.subr.mxu0 0.0
  %740 = vmatpush1.msra.mxu0 0.0
  %741 = vmatprep.subr.mxu0 0.0
  %742 = vmatpush1.msra.mxu0 0.0
  %743 = vmatprep.subr.mxu0 0.0
  %744 = vmatpush1.msra.mxu0 0.0
  %745 = vmatprep.subr.mxu0 0.0
  %746 = vmatpush1.msra.mxu0 0.0
  %747 = vmatprep.subr.mxu0 0.0
  %748 = vmatpush1.msra.mxu0 0.0
  %749 = vmatprep.subr.mxu0 0.0
  %750 = vmatpush1.msra.mxu0 0.0
  %751 = vmatprep.subr.mxu0 0.0
  %752 = vmatpush1.msra.mxu0 0.0
  %753 = vmatprep.subr.mxu0 0.0
  %754 = vmatpush1.msra.mxu0 0.0
  %755 = vmatprep.subr.mxu0 0.0
  %756 = vmatpush1.msra.mxu0 0.0
  %757 = vmatprep.subr.mxu0 0.0
  %758 = vmatpush1.msra.mxu0 0.0
  %759 = vmatprep.subr.mxu0 0.0
  %760 = vmatpush1.msra.mxu0 0.0
  %761 = vmatprep.subr.mxu0 0.0
  %762 = vmatpush1.msra.mxu0 0.0
  %763 = vmatprep.subr.mxu0 0.0
  %764 = vmatpush1.msra.mxu0 0.0
  %765 = vmatprep.subr.mxu0 0.0
  %766 = vmatpush1.msra.mxu0 0.0
  %767 = vmatprep.subr.mxu0 0.0
  %768 = vmatpush1.msra.mxu0 0.0
  %769 = vmatprep.subr.mxu0 0.0
  %770 = vmatpush1.msra.mxu0 0.0
  %771 = vmatprep.subr.mxu0 0.0
  %772 = vmatpush1.msra.mxu0 0.0
  %773 = vmatprep.subr.mxu0 0.0
  %774 = vmatpush1.msra.mxu0 0.0
  %775 = vmatprep.subr.mxu0 0.0
  %776 = vmatpush1.msra.mxu0 0.0
  %777 = vmatprep.mubr.f32.mxu0 0.0
  %v778 = vand.u32 %v599, 4294901760
  %779 = vmatmul.mubr.f32.gmra.mrb[0].mxu0 %v778
  %v780 = vpop.f32.mrb[0].mxu0
  %v781 = vadd.f32 %v680, %v780
  %v782 = vpop.f32.mrb[0].mxu0
  %783 = vmatprep.mubr.f32.mxu0 0.0
  %v784 = vand.u32 %v602, 4294901760
  %785 = vmatmul.mubr.f32.gmra.mrb[0].mxu0 %v784
  %v786 = vpop.f32.mrb[0].mxu0
  %v787 = vadd.f32 %v690, %v786
  %v788 = vpop.f32.mrb[0].mxu0
  %789 = vdwg.mxu0
  %790 = vmatprep.subr.mxu0 0.0
  %v791 = vand.u32 %v587, 4294901760
  %v792 = vsub.f32 %v587, %v791
  %793 = vmatpush1.msra.mxu0 %v792
  %794 = vmatprep.subr.mxu0 0.0
  %v795 = vand.u32 %v588, 4294901760
  %v796 = vsub.f32 %v588, %v795
  %797 = vmatpush1.msra.mxu0 %v796
  %798 = vmatprep.subr.mxu0 0.0
  %v799 = vand.u32 %v589, 4294901760
  %v800 = vsub.f32 %v589, %v799
  %801 = vmatpush1.msra.mxu0 %v800
  %802 = vmatprep.subr.mxu0 0.0
  %v803 = vand.u32 %v590, 4294901760
  %v804 = vsub.f32 %v590, %v803
  %805 = vmatpush1.msra.mxu0 %v804
  %806 = vmatprep.subr.mxu0 0.0
  %807 = vmatpush1.msra.mxu0 0.0
  %808 = vmatprep.subr.mxu0 0.0
  %809 = vmatpush1.msra.mxu0 0.0
  %810 = vmatprep.subr.mxu0 0.0
  %811 = vmatpush1.msra.mxu0 0.0
  %812 = vmatprep.subr.mxu0 0.0
  %813 = vmatpush1.msra.mxu0 0.0
  %814 = vmatprep.subr.mxu0 0.0
  %815 = vmatpush1.msra.mxu0 0.0
  %816 = vmatprep.subr.mxu0 0.0
  %817 = vmatpush1.msra.mxu0 0.0
  %818 = vmatprep.subr.mxu0 0.0
  %819 = vmatpush1.msra.mxu0 0.0
  %820 = vmatprep.subr.mxu0 0.0
  %821 = vmatpush1.msra.mxu0 0.0
  %822 = vmatprep.subr.mxu0 0.0
  %823 = vmatpush1.msra.mxu0 0.0
  %824 = vmatprep.subr.mxu0 0.0
  %825 = vmatpush1.msra.mxu0 0.0
  %826 = vmatprep.subr.mxu0 0.0
  %827 = vmatpush1.msra.mxu0 0.0
  %828 = vmatprep.subr.mxu0 0.0
  %829 = vmatpush1.msra.mxu0 0.0
  %830 = vmatprep.subr.mxu0 0.0
  %831 = vmatpush1.msra.mxu0 0.0
  %832 = vmatprep.subr.mxu0 0.0
  %833 = vmatpush1.msra.mxu0 0.0
  %834 = vmatprep.subr.mxu0 0.0
  %835 = vmatpush1.msra.mxu0 0.0
  %836 = vmatprep.subr.mxu0 0.0
  %837 = vmatpush1.msra.mxu0 0.0
  %838 = vmatprep.subr.mxu0 0.0
  %839 = vmatpush1.msra.mxu0 0.0
  %840 = vmatprep.subr.mxu0 0.0
  %841 = vmatpush1.msra.mxu0 0.0
  %842 = vmatprep.subr.mxu0 0.0
  %843 = vmatpush1.msra.mxu0 0.0
  %844 = vmatprep.subr.mxu0 0.0
  %845 = vmatpush1.msra.mxu0 0.0
  %846 = vmatprep.subr.mxu0 0.0
  %847 = vmatpush1.msra.mxu0 0.0
  %848 = vmatprep.subr.mxu0 0.0
  %849 = vmatpush1.msra.mxu0 0.0
  %850 = vmatprep.subr.mxu0 0.0
  %851 = vmatpush1.msra.mxu0 0.0
  %852 = vmatprep.subr.mxu0 0.0
  %853 = vmatpush1.msra.mxu0 0.0
  %854 = vmatprep.subr.mxu0 0.0
  %855 = vmatpush1.msra.mxu0 0.0
  %856 = vmatprep.subr.mxu0 0.0
  %857 = vmatpush1.msra.mxu0 0.0
  %858 = vmatprep.subr.mxu0 0.0
  %859 = vmatpush1.msra.mxu0 0.0
  %860 = vmatprep.subr.mxu0 0.0
  %861 = vmatpush1.msra.mxu0 0.0
  %862 = vmatprep.mubr.f32.mxu0 0.0
  %v863 = vand.u32 %v599, 4294901760
  %v864 = vsub.f32 %v599, %v863
  %865 = vmatmul.mubr.f32.gmra.mrb[0].mxu0 %v864
  %v866 = vpop.f32.mrb[0].mxu0
  %v867 = vadd.f32 %v781, %v866
  %v868 = vpop.f32.mrb[0].mxu0
  %869 = vmatprep.mubr.f32.mxu0 0.0
  %v870 = vand.u32 %v602, 4294901760
  %v871 = vsub.f32 %v602, %v870
  %872 = vmatmul.mubr.f32.gmra.mrb[0].mxu0 %v871
  %v873 = vpop.f32.mrb[0].mxu0
  %v874 = vadd.f32 %v787, %v873
  %v875 = vpop.f32.mrb[0].mxu0
  %876 = vdwg.mxu0
  %877 = vmatprep.subr.mxu0 0.0
  %v878 = vand.u32 %v587, 4294901760
  %879 = vmatpush1.msra.mxu0 %v878
  %880 = vmatprep.subr.mxu0 0.0
  %v881 = vand.u32 %v588, 4294901760
  %882 = vmatpush1.msra.mxu0 %v881
  %883 = vmatprep.subr.mxu0 0.0
  %v884 = vand.u32 %v589, 4294901760
  %885 = vmatpush1.msra.mxu0 %v884
  %886 = vmatprep.subr.mxu0 0.0
  %v887 = vand.u32 %v590, 4294901760
  %888 = vmatpush1.msra.mxu0 %v887
  %889 = vmatprep.subr.mxu0 0.0
  %890 = vmatpush1.msra.mxu0 0.0
  %891 = vmatprep.subr.mxu0 0.0
  %892 = vmatpush1.msra.mxu0 0.0
  %893 = vmatprep.subr.mxu0 0.0
  %894 = vmatpush1.msra.mxu0 0.0
  %895 = vmatprep.subr.mxu0 0.0
  %896 = vmatpush1.msra.mxu0 0.0
  %897 = vmatprep.subr.mxu0 0.0
  %898 = vmatpush1.msra.mxu0 0.0
  %899 = vmatprep.subr.mxu0 0.0
  %900 = vmatpush1.msra.mxu0 0.0
  %901 = vmatprep.subr.mxu0 0.0
  %902 = vmatpush1.msra.mxu0 0.0
  %903 = vmatprep.subr.mxu0 0.0
  %904 = vmatpush1.msra.mxu0 0.0
  %905 = vmatprep.subr.mxu0 0.0
  %906 = vmatpush1.msra.mxu0 0.0
  %907 = vmatprep.subr.mxu0 0.0
  %908 = vmatpush1.msra.mxu0 0.0
  %909 = vmatprep.subr.mxu0 0.0
  %910 = vmatpush1.msra.mxu0 0.0
  %911 = vmatprep.subr.mxu0 0.0
  %912 = vmatpush1.msra.mxu0 0.0
  %913 = vmatprep.subr.mxu0 0.0
  %914 = vmatpush1.msra.mxu0 0.0
  %915 = vmatprep.subr.mxu0 0.0
  %916 = vmatpush1.msra.mxu0 0.0
  %917 = vmatprep.subr.mxu0 0.0
  %918 = vmatpush1.msra.mxu0 0.0
  %919 = vmatprep.subr.mxu0 0.0
  %920 = vmatpush1.msra.mxu0 0.0
  %921 = vmatprep.subr.mxu0 0.0
  %922 = vmatpush1.msra.mxu0 0.0
  %923 = vmatprep.subr.mxu0 0.0
  %924 = vmatpush1.msra.mxu0 0.0
  %925 = vmatprep.subr.mxu0 0.0
  %926 = vmatpush1.msra.mxu0 0.0
  %927 = vmatprep.subr.mxu0 0.0
  %928 = vmatpush1.msra.mxu0 0.0
  %929 = vmatprep.subr.mxu0 0.0
  %930 = vmatpush1.msra.mxu0 0.0
  %931 = vmatprep.subr.mxu0 0.0
  %932 = vmatpush1.msra.mxu0 0.0
  %933 = vmatprep.subr.mxu0 0.0
  %934 = vmatpush1.msra.mxu0 0.0
  %935 = vmatprep.subr.mxu0 0.0
  %936 = vmatpush1.msra.mxu0 0.0
  %937 = vmatprep.subr.mxu0 0.0
  %938 = vmatpush1.msra.mxu0 0.0
  %939 = vmatprep.subr.mxu0 0.0
  %940 = vmatpush1.msra.mxu0 0.0
  %941 = vmatprep.subr.mxu0 0.0
  %942 = vmatpush1.msra.mxu0 0.0
  %943 = vmatprep.subr.mxu0 0.0
  %944 = vmatpush1.msra.mxu0 0.0
  %945 = vmatprep.mubr.f32.mxu0 0.0
  %v946 = vand.u32 %v599, 4294901760
  %v947 = vsub.f32 %v599, %v946
  %v948 = vand.u32 %v947, 4294901760
  %949 = vmatmul.mubr.f32.gmra.mrb[0].mxu0 %v948
  %v950 = vpop.f32.mrb[0].mxu0
  %v951 = vadd.f32 %v867, %v950
  %v952 = vpop.f32.mrb[0].mxu0
  %953 = vmatprep.mubr.f32.mxu0 0.0
  %v954 = vand.u32 %v602, 4294901760
  %v955 = vsub.f32 %v602, %v954
  %v956 = vand.u32 %v955, 4294901760
  %957 = vmatmul.mubr.f32.gmra.mrb[0].mxu0 %v956
  %v958 = vpop.f32.mrb[0].mxu0
  %v959 = vadd.f32 %v874, %v958
  %v960 = vpop.f32.mrb[0].mxu0
  %961 = vdwg.mxu0
  %962 = vmatprep.subr.mxu0 0.0
  %v963 = vand.u32 %v587, 4294901760
  %v964 = vsub.f32 %v587, %v963
  %v965 = vand.u32 %v964, 4294901760
  %966 = vmatpush1.msra.mxu0 %v965
  %967 = vmatprep.subr.mxu0 0.0
  %v968 = vand.u32 %v588, 4294901760
  %v969 = vsub.f32 %v588, %v968
  %v970 = vand.u32 %v969, 4294901760
  %971 = vmatpush1.msra.mxu0 %v970
  %972 = vmatprep.subr.mxu0 0.0
  %v973 = vand.u32 %v589, 4294901760
  %v974 = vsub.f32 %v589, %v973
  %v975 = vand.u32 %v974, 4294901760
  %976 = vmatpush1.msra.mxu0 %v975
  %977 = vmatprep.subr.mxu0 0.0
  %v978 = vand.u32 %v590, 4294901760
  %v979 = vsub.f32 %v590, %v978
  %v980 = vand.u32 %v979, 4294901760
  %981 = vmatpush1.msra.mxu0 %v980
  %982 = vmatprep.subr.mxu0 0.0
  %983 = vmatpush1.msra.mxu0 0.0
  %984 = vmatprep.subr.mxu0 0.0
  %985 = vmatpush1.msra.mxu0 0.0
  %986 = vmatprep.subr.mxu0 0.0
  %987 = vmatpush1.msra.mxu0 0.0
  %988 = vmatprep.subr.mxu0 0.0
  %989 = vmatpush1.msra.mxu0 0.0
  %990 = vmatprep.subr.mxu0 0.0
  %991 = vmatpush1.msra.mxu0 0.0
  %992 = vmatprep.subr.mxu0 0.0
  %993 = vmatpush1.msra.mxu0 0.0
  %994 = vmatprep.subr.mxu0 0.0
  %995 = vmatpush1.msra.mxu0 0.0
  %996 = vmatprep.subr.mxu0 0.0
  %997 = vmatpush1.msra.mxu0 0.0
  %998 = vmatprep.subr.mxu0 0.0
  %999 = vmatpush1.msra.mxu0 0.0
  %1000 = vmatprep.subr.mxu0 0.0
  %1001 = vmatpush1.msra.mxu0 0.0
  %1002 = vmatprep.subr.mxu0 0.0
  %1003 = vmatpush1.msra.mxu0 0.0
  %1004 = vmatprep.subr.mxu0 0.0
  %1005 = vmatpush1.msra.mxu0 0.0
  %1006 = vmatprep.subr.mxu0 0.0
  %1007 = vmatpush1.msra.mxu0 0.0
  %1008 = vmatprep.subr.mxu0 0.0
  %1009 = vmatpush1.msra.mxu0 0.0
  %1010 = vmatprep.subr.mxu0 0.0
  %1011 = vmatpush1.msra.mxu0 0.0
  %1012 = vmatprep.subr.mxu0 0.0
  %1013 = vmatpush1.msra.mxu0 0.0
  %1014 = vmatprep.subr.mxu0 0.0
  %1015 = vmatpush1.msra.mxu0 0.0
  %1016 = vmatprep.subr.mxu0 0.0
  %1017 = vmatpush1.msra.mxu0 0.0
  %1018 = vmatprep.subr.mxu0 0.0
  %1019 = vmatpush1.msra.mxu0 0.0
  %1020 = vmatprep.subr.mxu0 0.0
  %1021 = vmatpush1.msra.mxu0 0.0
  %1022 = vmatprep.subr.mxu0 0.0
  %1023 = vmatpush1.msra.mxu0 0.0
  %1024 = vmatprep.subr.mxu0 0.0
  %1025 = vmatpush1.msra.mxu0 0.0
  %1026 = vmatprep.subr.mxu0 0.0
  %1027 = vmatpush1.msra.mxu0 0.0
  %1028 = vmatprep.subr.mxu0 0.0
  %1029 = vmatpush1.msra.mxu0 0.0
  %1030 = vmatprep.subr.mxu0 0.0
  %1031 = vmatpush1.msra.mxu0 0.0
  %1032 = vmatprep.subr.mxu0 0.0
  %1033 = vmatpush1.msra.mxu0 0.0
  %1034 = vmatprep.subr.mxu0 0.0
  %1035 = vmatpush1.msra.mxu0 0.0
  %1036 = vmatprep.subr.mxu0 0.0
  %1037 = vmatpush1.msra.mxu0 0.0
  %1038 = vmatprep.mubr.f32.mxu0 0.0
  %v1039 = vand.u32 %v599, 4294901760
  %1040 = vmatmul.mubr.f32.gmra.mrb[0].mxu0 %v1039
  %v1041 = vpop.f32.mrb[0].mxu0
  %v1042 = vadd.f32 %v951, %v1041
  %v1043 = vpop.f32.mrb[0].mxu0
  %1044 = vmatprep.mubr.f32.mxu0 0.0
  %v1045 = vand.u32 %v602, 4294901760
  %1046 = vmatmul.mubr.f32.gmra.mrb[0].mxu0 %v1045
  %v1047 = vpop.f32.mrb[0].mxu0
  %v1048 = vadd.f32 %v959, %v1047
  %v1049 = vpop.f32.mrb[0].mxu0
  %1050 = vdwg.mxu0
  %1051 = vmatprep.subr.mxu0 0.0
  %v1052 = vand.u32 %v587, 4294901760
  %1053 = vmatpush1.msra.mxu0 %v1052
  %1054 = vmatprep.subr.mxu0 0.0
  %v1055 = vand.u32 %v588, 4294901760
  %1056 = vmatpush1.msra.mxu0 %v1055
  %1057 = vmatprep.subr.mxu0 0.0
  %v1058 = vand.u32 %v589, 4294901760
  %1059 = vmatpush1.msra.mxu0 %v1058
  %1060 = vmatprep.subr.mxu0 0.0
  %v1061 = vand.u32 %v590, 4294901760
  %1062 = vmatpush1.msra.mxu0 %v1061
  %1063 = vmatprep.subr.mxu0 0.0
  %1064 = vmatpush1.msra.mxu0 0.0
  %1065 = vmatprep.subr.mxu0 0.0
  %1066 = vmatpush1.msra.mxu0 0.0
  %1067 = vmatprep.subr.mxu0 0.0
  %1068 = vmatpush1.msra.mxu0 0.0
  %1069 = vmatprep.subr.mxu0 0.0
  %1070 = vmatpush1.msra.mxu0 0.0
  %1071 = vmatprep.subr.mxu0 0.0
  %1072 = vmatpush1.msra.mxu0 0.0
  %1073 = vmatprep.subr.mxu0 0.0
  %1074 = vmatpush1.msra.mxu0 0.0
  %1075 = vmatprep.subr.mxu0 0.0
  %1076 = vmatpush1.msra.mxu0 0.0
  %1077 = vmatprep.subr.mxu0 0.0
  %1078 = vmatpush1.msra.mxu0 0.0
  %1079 = vmatprep.subr.mxu0 0.0
  %1080 = vmatpush1.msra.mxu0 0.0
  %1081 = vmatprep.subr.mxu0 0.0
  %1082 = vmatpush1.msra.mxu0 0.0
  %1083 = vmatprep.subr.mxu0 0.0
  %1084 = vmatpush1.msra.mxu0 0.0
  %1085 = vmatprep.subr.mxu0 0.0
  %1086 = vmatpush1.msra.mxu0 0.0
  %1087 = vmatprep.subr.mxu0 0.0
  %1088 = vmatpush1.msra.mxu0 0.0
  %1089 = vmatprep.subr.mxu0 0.0
  %1090 = vmatpush1.msra.mxu0 0.0
  %1091 = vmatprep.subr.mxu0 0.0
  %1092 = vmatpush1.msra.mxu0 0.0
  %1093 = vmatprep.subr.mxu0 0.0
  %1094 = vmatpush1.msra.mxu0 0.0
  %1095 = vmatprep.subr.mxu0 0.0
  %1096 = vmatpush1.msra.mxu0 0.0
  %1097 = vmatprep.subr.mxu0 0.0
  %1098 = vmatpush1.msra.mxu0 0.0
  %1099 = vmatprep.subr.mxu0 0.0
  %1100 = vmatpush1.msra.mxu0 0.0
  %1101 = vmatprep.subr.mxu0 0.0
  %1102 = vmatpush1.msra.mxu0 0.0
  %1103 = vmatprep.subr.mxu0 0.0
  %1104 = vmatpush1.msra.mxu0 0.0
  %1105 = vmatprep.subr.mxu0 0.0
  %1106 = vmatpush1.msra.mxu0 0.0
  %1107 = vmatprep.subr.mxu0 0.0
  %1108 = vmatpush1.msra.mxu0 0.0
  %1109 = vmatprep.subr.mxu0 0.0
  %1110 = vmatpush1.msra.mxu0 0.0
  %1111 = vmatprep.subr.mxu0 0.0
  %1112 = vmatpush1.msra.mxu0 0.0
  %1113 = vmatprep.subr.mxu0 0.0
  %1114 = vmatpush1.msra.mxu0 0.0
  %1115 = vmatprep.subr.mxu0 0.0
  %1116 = vmatpush1.msra.mxu0 0.0
  %1117 = vmatprep.subr.mxu0 0.0
  %1118 = vmatpush1.msra.mxu0 0.0
  %1119 = vmatprep.mubr.f32.mxu0 0.0
  %v1120 = vand.u32 %v599, 4294901760
  %1121 = vmatmul.mubr.f32.gmra.mrb[0].mxu0 %v1120
  %v1122 = vpop.f32.mrb[0].mxu0
  %v1123 = vadd.f32 %v1042, %v1122
  %v1124 = vpop.f32.mrb[0].mxu0
  %1125 = vmatprep.mubr.f32.mxu0 0.0
  %v1126 = vand.u32 %v602, 4294901760
  %1127 = vmatmul.mubr.f32.gmra.mrb[0].mxu0 %v1126
  %v1128 = vpop.f32.mrb[0].mxu0
  %v1129 = vadd.f32 %v1048, %v1128
  %v1130 = vpop.f32.mrb[0].mxu0
  %1131 = vdwg.mxu0
  %1132 = vst.msk [vmem:[%s10] sm:$0xff] %vm48, %v1123
  %1133 = vst.msk [vmem:[%s10 + $0x8] sm:$0xff] %vm48, %v1129
  %v1134 = vld [vmem:[%s2] sm:$0xff]
  %v1135 = vld [vmem:[%s2 + $0x8] sm:$0xff]
  %v1136 = vld [vmem:[%s7] sm:$0xff]
  %v1137 = vld [vmem:[%s7 + $0x8] sm:$0xff]
  %v1138 = vld [vmem:[%s7 + $0x10] sm:$0xff]
  %v1139 = vld [vmem:[%s7 + $0x18] sm:$0xff]
  %v1140 = vld [vmem:[%s8] sm:$0x1]
  %v1142 = vlaneseq
  %v1143 = vshrl.u32 %v1142, 7
  %v1144 = vsub.s32 0, %v1143
  %v1145 = vrot.slane %v1140, %v1144
  %v1148 = vsel %vm48, %v1134, 0
  %v1151 = vsel %vm48, %v1135, 0
  %1153 = vmatprep.subr.mxu0 0.0
  %v1154 = vand.u32 %v1136, 4294901760
  %1155 = vmatpush1.msra.mxu0 %v1154
  %1156 = vmatprep.subr.mxu0 0.0
  %v1157 = vand.u32 %v1137, 4294901760
  %1158 = vmatpush1.msra.mxu0 %v1157
  %1159 = vmatprep.subr.mxu0 0.0
  %v1160 = vand.u32 %v1138, 4294901760
  %1161 = vmatpush1.msra.mxu0 %v1160
  %1162 = vmatprep.subr.mxu0 0.0
  %v1163 = vand.u32 %v1139, 4294901760
  %1164 = vmatpush1.msra.mxu0 %v1163
  %1165 = vmatprep.subr.mxu0 0.0
  %1166 = vmatpush1.msra.mxu0 0.0
  %1167 = vmatprep.subr.mxu0 0.0
  %1168 = vmatpush1.msra.mxu0 0.0
  %1169 = vmatprep.subr.mxu0 0.0
  %1170 = vmatpush1.msra.mxu0 0.0
  %1171 = vmatprep.subr.mxu0 0.0
  %1172 = vmatpush1.msra.mxu0 0.0
  %1173 = vmatprep.subr.mxu0 0.0
  %1174 = vmatpush1.msra.mxu0 0.0
  %1175 = vmatprep.subr.mxu0 0.0
  %1176 = vmatpush1.msra.mxu0 0.0
  %1177 = vmatprep.subr.mxu0 0.0
  %1178 = vmatpush1.msra.mxu0 0.0
  %1179 = vmatprep.subr.mxu0 0.0
  %1180 = vmatpush1.msra.mxu0 0.0
  %1181 = vmatprep.subr.mxu0 0.0
  %1182 = vmatpush1.msra.mxu0 0.0
  %1183 = vmatprep.subr.mxu0 0.0
  %1184 = vmatpush1.msra.mxu0 0.0
  %1185 = vmatprep.subr.mxu0 0.0
  %1186 = vmatpush1.msra.mxu0 0.0
  %1187 = vmatprep.subr.mxu0 0.0
  %1188 = vmatpush1.msra.mxu0 0.0
  %1189 = vmatprep.subr.mxu0 0.0
  %1190 = vmatpush1.msra.mxu0 0.0
  %1191 = vmatprep.subr.mxu0 0.0
  %1192 = vmatpush1.msra.mxu0 0.0
  %1193 = vmatprep.subr.mxu0 0.0
  %1194 = vmatpush1.msra.mxu0 0.0
  %1195 = vmatprep.subr.mxu0 0.0
  %1196 = vmatpush1.msra.mxu0 0.0
  %1197 = vmatprep.subr.mxu0 0.0
  %1198 = vmatpush1.msra.mxu0 0.0
  %1199 = vmatprep.subr.mxu0 0.0
  %1200 = vmatpush1.msra.mxu0 0.0
  %1201 = vmatprep.subr.mxu0 0.0
  %1202 = vmatpush1.msra.mxu0 0.0
  %1203 = vmatprep.subr.mxu0 0.0
  %1204 = vmatpush1.msra.mxu0 0.0
  %1205 = vmatprep.subr.mxu0 0.0
  %1206 = vmatpush1.msra.mxu0 0.0
  %1207 = vmatprep.subr.mxu0 0.0
  %1208 = vmatpush1.msra.mxu0 0.0
  %1209 = vmatprep.subr.mxu0 0.0
  %1210 = vmatpush1.msra.mxu0 0.0
  %1211 = vmatprep.subr.mxu0 0.0
  %1212 = vmatpush1.msra.mxu0 0.0
  %1213 = vmatprep.subr.mxu0 0.0
  %1214 = vmatpush1.msra.mxu0 0.0
  %1215 = vmatprep.subr.mxu0 0.0
  %1216 = vmatpush1.msra.mxu0 0.0
  %1217 = vmatprep.subr.mxu0 0.0
  %1218 = vmatpush1.msra.mxu0 0.0
  %1219 = vmatprep.subr.mxu0 0.0
  %1220 = vmatpush1.msra.mxu0 0.0
  %1221 = vmatprep.mubr.f32.mxu0 0.0
  %v1222 = vand.u32 %v1148, 4294901760
  %v1223 = vsub.f32 %v1148, %v1222
  %v1224 = vand.u32 %v1223, 4294901760
  %v1225 = vsub.f32 %v1223, %v1224
  %v1226 = vand.u32 %v1225, 4294901760
  %1227 = vmatmul.mubr.f32.gmra.mrb[0].mxu0 %v1226
  %v1228 = vpop.f32.mrb[0].mxu0
  %v1229 = vadd.f32 %v1145, %v1228
  %v1230 = vpop.f32.mrb[0].mxu0
  %1231 = vmatprep.mubr.f32.mxu0 0.0
  %v1232 = vand.u32 %v1151, 4294901760
  %v1233 = vsub.f32 %v1151, %v1232
  %v1234 = vand.u32 %v1233, 4294901760
  %v1235 = vsub.f32 %v1233, %v1234
  %v1236 = vand.u32 %v1235, 4294901760
  %1237 = vmatmul.mubr.f32.gmra.mrb[0].mxu0 %v1236
  %v1238 = vpop.f32.mrb[0].mxu0
  %v1239 = vadd.f32 %v1145, %v1238
  %v1240 = vpop.f32.mrb[0].mxu0
  %1241 = vdwg.mxu0
  %1242 = vmatprep.subr.mxu0 0.0
  %v1243 = vand.u32 %v1136, 4294901760
  %v1244 = vsub.f32 %v1136, %v1243
  %v1245 = vand.u32 %v1244, 4294901760
  %v1246 = vsub.f32 %v1244, %v1245
  %v1247 = vand.u32 %v1246, 4294901760
  %1248 = vmatpush1.msra.mxu0 %v1247
  %1249 = vmatprep.subr.mxu0 0.0
  %v1250 = vand.u32 %v1137, 4294901760
  %v1251 = vsub.f32 %v1137, %v1250
  %v1252 = vand.u32 %v1251, 4294901760
  %v1253 = vsub.f32 %v1251, %v1252
  %v1254 = vand.u32 %v1253, 4294901760
  %1255 = vmatpush1.msra.mxu0 %v1254
  %1256 = vmatprep.subr.mxu0 0.0
  %v1257 = vand.u32 %v1138, 4294901760
  %v1258 = vsub.f32 %v1138, %v1257
  %v1259 = vand.u32 %v1258, 4294901760
  %v1260 = vsub.f32 %v1258, %v1259
  %v1261 = vand.u32 %v1260, 4294901760
  %1262 = vmatpush1.msra.mxu0 %v1261
  %1263 = vmatprep.subr.mxu0 0.0
  %v1264 = vand.u32 %v1139, 4294901760
  %v1265 = vsub.f32 %v1139, %v1264
  %v1266 = vand.u32 %v1265, 4294901760
  %v1267 = vsub.f32 %v1265, %v1266
  %v1268 = vand.u32 %v1267, 4294901760
  %1269 = vmatpush1.msra.mxu0 %v1268
  %1270 = vmatprep.subr.mxu0 0.0
  %1271 = vmatpush1.msra.mxu0 0.0
  %1272 = vmatprep.subr.mxu0 0.0
  %1273 = vmatpush1.msra.mxu0 0.0
  %1274 = vmatprep.subr.mxu0 0.0
  %1275 = vmatpush1.msra.mxu0 0.0
  %1276 = vmatprep.subr.mxu0 0.0
  %1277 = vmatpush1.msra.mxu0 0.0
  %1278 = vmatprep.subr.mxu0 0.0
  %1279 = vmatpush1.msra.mxu0 0.0
  %1280 = vmatprep.subr.mxu0 0.0
  %1281 = vmatpush1.msra.mxu0 0.0
  %1282 = vmatprep.subr.mxu0 0.0
  %1283 = vmatpush1.msra.mxu0 0.0
  %1284 = vmatprep.subr.mxu0 0.0
  %1285 = vmatpush1.msra.mxu0 0.0
  %1286 = vmatprep.subr.mxu0 0.0
  %1287 = vmatpush1.msra.mxu0 0.0
  %1288 = vmatprep.subr.mxu0 0.0
  %1289 = vmatpush1.msra.mxu0 0.0
  %1290 = vmatprep.subr.mxu0 0.0
  %1291 = vmatpush1.msra.mxu0 0.0
  %1292 = vmatprep.subr.mxu0 0.0
  %1293 = vmatpush1.msra.mxu0 0.0
  %1294 = vmatprep.subr.mxu0 0.0
  %1295 = vmatpush1.msra.mxu0 0.0
  %1296 = vmatprep.subr.mxu0 0.0
  %1297 = vmatpush1.msra.mxu0 0.0
  %1298 = vmatprep.subr.mxu0 0.0
  %1299 = vmatpush1.msra.mxu0 0.0
  %1300 = vmatprep.subr.mxu0 0.0
  %1301 = vmatpush1.msra.mxu0 0.0
  %1302 = vmatprep.subr.mxu0 0.0
  %1303 = vmatpush1.msra.mxu0 0.0
  %1304 = vmatprep.subr.mxu0 0.0
  %1305 = vmatpush1.msra.mxu0 0.0
  %1306 = vmatprep.subr.mxu0 0.0
  %1307 = vmatpush1.msra.mxu0 0.0
  %1308 = vmatprep.subr.mxu0 0.0
  %1309 = vmatpush1.msra.mxu0 0.0
  %1310 = vmatprep.subr.mxu0 0.0
  %1311 = vmatpush1.msra.mxu0 0.0
  %1312 = vmatprep.subr.mxu0 0.0
  %1313 = vmatpush1.msra.mxu0 0.0
  %1314 = vmatprep.subr.mxu0 0.0
  %1315 = vmatpush1.msra.mxu0 0.0
  %1316 = vmatprep.subr.mxu0 0.0
  %1317 = vmatpush1.msra.mxu0 0.0
  %1318 = vmatprep.subr.mxu0 0.0
  %1319 = vmatpush1.msra.mxu0 0.0
  %1320 = vmatprep.subr.mxu0 0.0
  %1321 = vmatpush1.msra.mxu0 0.0
  %1322 = vmatprep.subr.mxu0 0.0
  %1323 = vmatpush1.msra.mxu0 0.0
  %1324 = vmatprep.subr.mxu0 0.0
  %1325 = vmatpush1.msra.mxu0 0.0
  %1326 = vmatprep.mubr.f32.mxu0 0.0
  %v1327 = vand.u32 %v1148, 4294901760
  %1328 = vmatmul.mubr.f32.gmra.mrb[0].mxu0 %v1327
  %v1329 = vpop.f32.mrb[0].mxu0
  %v1330 = vadd.f32 %v1229, %v1329
  %v1331 = vpop.f32.mrb[0].mxu0
  %1332 = vmatprep.mubr.f32.mxu0 0.0
  %v1333 = vand.u32 %v1151, 4294901760
  %1334 = vmatmul.mubr.f32.gmra.mrb[0].mxu0 %v1333
  %v1335 = vpop.f32.mrb[0].mxu0
  %v1336 = vadd.f32 %v1239, %v1335
  %v1337 = vpop.f32.mrb[0].mxu0
  %1338 = vdwg.mxu0
  %1339 = vmatprep.subr.mxu0 0.0
  %v1340 = vand.u32 %v1136, 4294901760
  %v1341 = vsub.f32 %v1136, %v1340
  %1342 = vmatpush1.msra.mxu0 %v1341
  %1343 = vmatprep.subr.mxu0 0.0
  %v1344 = vand.u32 %v1137, 4294901760
  %v1345 = vsub.f32 %v1137, %v1344
  %1346 = vmatpush1.msra.mxu0 %v1345
  %1347 = vmatprep.subr.mxu0 0.0
  %v1348 = vand.u32 %v1138, 4294901760
  %v1349 = vsub.f32 %v1138, %v1348
  %1350 = vmatpush1.msra.mxu0 %v1349
  %1351 = vmatprep.subr.mxu0 0.0
  %v1352 = vand.u32 %v1139, 4294901760
  %v1353 = vsub.f32 %v1139, %v1352
  %1354 = vmatpush1.msra.mxu0 %v1353
  %1355 = vmatprep.subr.mxu0 0.0
  %1356 = vmatpush1.msra.mxu0 0.0
  %1357 = vmatprep.subr.mxu0 0.0
  %1358 = vmatpush1.msra.mxu0 0.0
  %1359 = vmatprep.subr.mxu0 0.0
  %1360 = vmatpush1.msra.mxu0 0.0
  %1361 = vmatprep.subr.mxu0 0.0
  %1362 = vmatpush1.msra.mxu0 0.0
  %1363 = vmatprep.subr.mxu0 0.0
  %1364 = vmatpush1.msra.mxu0 0.0
  %1365 = vmatprep.subr.mxu0 0.0
  %1366 = vmatpush1.msra.mxu0 0.0
  %1367 = vmatprep.subr.mxu0 0.0
  %1368 = vmatpush1.msra.mxu0 0.0
  %1369 = vmatprep.subr.mxu0 0.0
  %1370 = vmatpush1.msra.mxu0 0.0
  %1371 = vmatprep.subr.mxu0 0.0
  %1372 = vmatpush1.msra.mxu0 0.0
  %1373 = vmatprep.subr.mxu0 0.0
  %1374 = vmatpush1.msra.mxu0 0.0
  %1375 = vmatprep.subr.mxu0 0.0
  %1376 = vmatpush1.msra.mxu0 0.0
  %1377 = vmatprep.subr.mxu0 0.0
  %1378 = vmatpush1.msra.mxu0 0.0
  %1379 = vmatprep.subr.mxu0 0.0
  %1380 = vmatpush1.msra.mxu0 0.0
  %1381 = vmatprep.subr.mxu0 0.0
  %1382 = vmatpush1.msra.mxu0 0.0
  %1383 = vmatprep.subr.mxu0 0.0
  %1384 = vmatpush1.msra.mxu0 0.0
  %1385 = vmatprep.subr.mxu0 0.0
  %1386 = vmatpush1.msra.mxu0 0.0
  %1387 = vmatprep.subr.mxu0 0.0
  %1388 = vmatpush1.msra.mxu0 0.0
  %1389 = vmatprep.subr.mxu0 0.0
  %1390 = vmatpush1.msra.mxu0 0.0
  %1391 = vmatprep.subr.mxu0 0.0
  %1392 = vmatpush1.msra.mxu0 0.0
  %1393 = vmatprep.subr.mxu0 0.0
  %1394 = vmatpush1.msra.mxu0 0.0
  %1395 = vmatprep.subr.mxu0 0.0
  %1396 = vmatpush1.msra.mxu0 0.0
  %1397 = vmatprep.subr.mxu0 0.0
  %1398 = vmatpush1.msra.mxu0 0.0
  %1399 = vmatprep.subr.mxu0 0.0
  %1400 = vmatpush1.msra.mxu0 0.0
  %1401 = vmatprep.subr.mxu0 0.0
  %1402 = vmatpush1.msra.mxu0 0.0
  %1403 = vmatprep.subr.mxu0 0.0
  %1404 = vmatpush1.msra.mxu0 0.0
  %1405 = vmatprep.subr.mxu0 0.0
  %1406 = vmatpush1.msra.mxu0 0.0
  %1407 = vmatprep.subr.mxu0 0.0
  %1408 = vmatpush1.msra.mxu0 0.0
  %1409 = vmatprep.subr.mxu0 0.0
  %1410 = vmatpush1.msra.mxu0 0.0
  %1411 = vmatprep.mubr.f32.mxu0 0.0
  %v1412 = vand.u32 %v1148, 4294901760
  %v1413 = vsub.f32 %v1148, %v1412
  %1414 = vmatmul.mubr.f32.gmra.mrb[0].mxu0 %v1413
  %v1415 = vpop.f32.mrb[0].mxu0
  %v1416 = vadd.f32 %v1330, %v1415
  %v1417 = vpop.f32.mrb[0].mxu0
  %1418 = vmatprep.mubr.f32.mxu0 0.0
  %v1419 = vand.u32 %v1151, 4294901760
  %v1420 = vsub.f32 %v1151, %v1419
  %1421 = vmatmul.mubr.f32.gmra.mrb[0].mxu0 %v1420
  %v1422 = vpop.f32.mrb[0].mxu0
  %v1423 = vadd.f32 %v1336, %v1422
  %v1424 = vpop.f32.mrb[0].mxu0
  %1425 = vdwg.mxu0
  %1426 = vmatprep.subr.mxu0 0.0
  %v1427 = vand.u32 %v1136, 4294901760
  %1428 = vmatpush1.msra.mxu0 %v1427
  %1429 = vmatprep.subr.mxu0 0.0
  %v1430 = vand.u32 %v1137, 4294901760
  %1431 = vmatpush1.msra.mxu0 %v1430
  %1432 = vmatprep.subr.mxu0 0.0
  %v1433 = vand.u32 %v1138, 4294901760
  %1434 = vmatpush1.msra.mxu0 %v1433
  %1435 = vmatprep.subr.mxu0 0.0
  %v1436 = vand.u32 %v1139, 4294901760
  %1437 = vmatpush1.msra.mxu0 %v1436
  %1438 = vmatprep.subr.mxu0 0.0
  %1439 = vmatpush1.msra.mxu0 0.0
  %1440 = vmatprep.subr.mxu0 0.0
  %1441 = vmatpush1.msra.mxu0 0.0
  %1442 = vmatprep.subr.mxu0 0.0
  %1443 = vmatpush1.msra.mxu0 0.0
  %1444 = vmatprep.subr.mxu0 0.0
  %1445 = vmatpush1.msra.mxu0 0.0
  %1446 = vmatprep.subr.mxu0 0.0
  %1447 = vmatpush1.msra.mxu0 0.0
  %1448 = vmatprep.subr.mxu0 0.0
  %1449 = vmatpush1.msra.mxu0 0.0
  %1450 = vmatprep.subr.mxu0 0.0
  %1451 = vmatpush1.msra.mxu0 0.0
  %1452 = vmatprep.subr.mxu0 0.0
  %1453 = vmatpush1.msra.mxu0 0.0
  %1454 = vmatprep.subr.mxu0 0.0
  %1455 = vmatpush1.msra.mxu0 0.0
  %1456 = vmatprep.subr.mxu0 0.0
  %1457 = vmatpush1.msra.mxu0 0.0
  %1458 = vmatprep.subr.mxu0 0.0
  %1459 = vmatpush1.msra.mxu0 0.0
  %1460 = vmatprep.subr.mxu0 0.0
  %1461 = vmatpush1.msra.mxu0 0.0
  %1462 = vmatprep.subr.mxu0 0.0
  %1463 = vmatpush1.msra.mxu0 0.0
  %1464 = vmatprep.subr.mxu0 0.0
  %1465 = vmatpush1.msra.mxu0 0.0
  %1466 = vmatprep.subr.mxu0 0.0
  %1467 = vmatpush1.msra.mxu0 0.0
  %1468 = vmatprep.subr.mxu0 0.0
  %1469 = vmatpush1.msra.mxu0 0.0
  %1470 = vmatprep.subr.mxu0 0.0
  %1471 = vmatpush1.msra.mxu0 0.0
  %1472 = vmatprep.subr.mxu0 0.0
  %1473 = vmatpush1.msra.mxu0 0.0
  %1474 = vmatprep.subr.mxu0 0.0
  %1475 = vmatpush1.msra.mxu0 0.0
  %1476 = vmatprep.subr.mxu0 0.0
  %1477 = vmatpush1.msra.mxu0 0.0
  %1478 = vmatprep.subr.mxu0 0.0
  %1479 = vmatpush1.msra.mxu0 0.0
  %1480 = vmatprep.subr.mxu0 0.0
  %1481 = vmatpush1.msra.mxu0 0.0
  %1482 = vmatprep.subr.mxu0 0.0
  %1483 = vmatpush1.msra.mxu0 0.0
  %1484 = vmatprep.subr.mxu0 0.0
  %1485 = vmatpush1.msra.mxu0 0.0
  %1486 = vmatprep.subr.mxu0 0.0
  %1487 = vmatpush1.msra.mxu0 0.0
  %1488 = vmatprep.subr.mxu0 0.0
  %1489 = vmatpush1.msra.mxu0 0.0
  %1490 = vmatprep.subr.mxu0 0.0
  %1491 = vmatpush1.msra.mxu0 0.0
  %1492 = vmatprep.subr.mxu0 0.0
  %1493 = vmatpush1.msra.mxu0 0.0
  %1494 = vmatprep.mubr.f32.mxu0 0.0
  %v1495 = vand.u32 %v1148, 4294901760
  %v1496 = vsub.f32 %v1148, %v1495
  %v1497 = vand.u32 %v1496, 4294901760
  %1498 = vmatmul.mubr.f32.gmra.mrb[0].mxu0 %v1497
  %v1499 = vpop.f32.mrb[0].mxu0
  %v1500 = vadd.f32 %v1416, %v1499
  %v1501 = vpop.f32.mrb[0].mxu0
  %1502 = vmatprep.mubr.f32.mxu0 0.0
  %v1503 = vand.u32 %v1151, 4294901760
  %v1504 = vsub.f32 %v1151, %v1503
  %v1505 = vand.u32 %v1504, 4294901760
  %1506 = vmatmul.mubr.f32.gmra.mrb[0].mxu0 %v1505
  %v1507 = vpop.f32.mrb[0].mxu0
  %v1508 = vadd.f32 %v1423, %v1507
  %v1509 = vpop.f32.mrb[0].mxu0
  %1510 = vdwg.mxu0
  %1511 = vmatprep.subr.mxu0 0.0
  %v1512 = vand.u32 %v1136, 4294901760
  %v1513 = vsub.f32 %v1136, %v1512
  %v1514 = vand.u32 %v1513, 4294901760
  %1515 = vmatpush1.msra.mxu0 %v1514
  %1516 = vmatprep.subr.mxu0 0.0
  %v1517 = vand.u32 %v1137, 4294901760
  %v1518 = vsub.f32 %v1137, %v1517
  %v1519 = vand.u32 %v1518, 4294901760
  %1520 = vmatpush1.msra.mxu0 %v1519
  %1521 = vmatprep.subr.mxu0 0.0
  %v1522 = vand.u32 %v1138, 4294901760
  %v1523 = vsub.f32 %v1138, %v1522
  %v1524 = vand.u32 %v1523, 4294901760
  %1525 = vmatpush1.msra.mxu0 %v1524
  %1526 = vmatprep.subr.mxu0 0.0
  %v1527 = vand.u32 %v1139, 4294901760
  %v1528 = vsub.f32 %v1139, %v1527
  %v1529 = vand.u32 %v1528, 4294901760
  %1530 = vmatpush1.msra.mxu0 %v1529
  %1531 = vmatprep.subr.mxu0 0.0
  %1532 = vmatpush1.msra.mxu0 0.0
  %1533 = vmatprep.subr.mxu0 0.0
  %1534 = vmatpush1.msra.mxu0 0.0
  %1535 = vmatprep.subr.mxu0 0.0
  %1536 = vmatpush1.msra.mxu0 0.0
  %1537 = vmatprep.subr.mxu0 0.0
  %1538 = vmatpush1.msra.mxu0 0.0
  %1539 = vmatprep.subr.mxu0 0.0
  %1540 = vmatpush1.msra.mxu0 0.0
  %1541 = vmatprep.subr.mxu0 0.0
  %1542 = vmatpush1.msra.mxu0 0.0
  %1543 = vmatprep.subr.mxu0 0.0
  %1544 = vmatpush1.msra.mxu0 0.0
  %1545 = vmatprep.subr.mxu0 0.0
  %1546 = vmatpush1.msra.mxu0 0.0
  %1547 = vmatprep.subr.mxu0 0.0
  %1548 = vmatpush1.msra.mxu0 0.0
  %1549 = vmatprep.subr.mxu0 0.0
  %1550 = vmatpush1.msra.mxu0 0.0
  %1551 = vmatprep.subr.mxu0 0.0
  %1552 = vmatpush1.msra.mxu0 0.0
  %1553 = vmatprep.subr.mxu0 0.0
  %1554 = vmatpush1.msra.mxu0 0.0
  %1555 = vmatprep.subr.mxu0 0.0
  %1556 = vmatpush1.msra.mxu0 0.0
  %1557 = vmatprep.subr.mxu0 0.0
  %1558 = vmatpush1.msra.mxu0 0.0
  %1559 = vmatprep.subr.mxu0 0.0
  %1560 = vmatpush1.msra.mxu0 0.0
  %1561 = vmatprep.subr.mxu0 0.0
  %1562 = vmatpush1.msra.mxu0 0.0
  %1563 = vmatprep.subr.mxu0 0.0
  %1564 = vmatpush1.msra.mxu0 0.0
  %1565 = vmatprep.subr.mxu0 0.0
  %1566 = vmatpush1.msra.mxu0 0.0
  %1567 = vmatprep.subr.mxu0 0.0
  %1568 = vmatpush1.msra.mxu0 0.0
  %1569 = vmatprep.subr.mxu0 0.0
  %1570 = vmatpush1.msra.mxu0 0.0
  %1571 = vmatprep.subr.mxu0 0.0
  %1572 = vmatpush1.msra.mxu0 0.0
  %1573 = vmatprep.subr.mxu0 0.0
  %1574 = vmatpush1.msra.mxu0 0.0
  %1575 = vmatprep.subr.mxu0 0.0
  %1576 = vmatpush1.msra.mxu0 0.0
  %1577 = vmatprep.subr.mxu0 0.0
  %1578 = vmatpush1.msra.mxu0 0.0
  %1579 = vmatprep.subr.mxu0 0.0
  %1580 = vmatpush1.msra.mxu0 0.0
  %1581 = vmatprep.subr.mxu0 0.0
  %1582 = vmatpush1.msra.mxu0 0.0
  %1583 = vmatprep.subr.mxu0 0.0
  %1584 = vmatpush1.msra.mxu0 0.0
  %1585 = vmatprep.subr.mxu0 0.0
  %1586 = vmatpush1.msra.mxu0 0.0
  %1587 = vmatprep.mubr.f32.mxu0 0.0
  %v1588 = vand.u32 %v1148, 4294901760
  %1589 = vmatmul.mubr.f32.gmra.mrb[0].mxu0 %v1588
  %v1590 = vpop.f32.mrb[0].mxu0
  %v1591 = vadd.f32 %v1500, %v1590
  %v1592 = vpop.f32.mrb[0].mxu0
  %1593 = vmatprep.mubr.f32.mxu0 0.0
  %v1594 = vand.u32 %v1151, 4294901760
  %1595 = vmatmul.mubr.f32.gmra.mrb[0].mxu0 %v1594
  %v1596 = vpop.f32.mrb[0].mxu0
  %v1597 = vadd.f32 %v1508, %v1596
  %v1598 = vpop.f32.mrb[0].mxu0
  %1599 = vdwg.mxu0
  %1600 = vmatprep.subr.mxu0 0.0
  %v1601 = vand.u32 %v1136, 4294901760
  %1602 = vmatpush1.msra.mxu0 %v1601
  %1603 = vmatprep.subr.mxu0 0.0
  %v1604 = vand.u32 %v1137, 4294901760
  %1605 = vmatpush1.msra.mxu0 %v1604
  %1606 = vmatprep.subr.mxu0 0.0
  %v1607 = vand.u32 %v1138, 4294901760
  %1608 = vmatpush1.msra.mxu0 %v1607
  %1609 = vmatprep.subr.mxu0 0.0
  %v1610 = vand.u32 %v1139, 4294901760
  %1611 = vmatpush1.msra.mxu0 %v1610
  %1612 = vmatprep.subr.mxu0 0.0
  %1613 = vmatpush1.msra.mxu0 0.0
  %1614 = vmatprep.subr.mxu0 0.0
  %1615 = vmatpush1.msra.mxu0 0.0
  %1616 = vmatprep.subr.mxu0 0.0
  %1617 = vmatpush1.msra.mxu0 0.0
  %1618 = vmatprep.subr.mxu0 0.0
  %1619 = vmatpush1.msra.mxu0 0.0
  %1620 = vmatprep.subr.mxu0 0.0
  %1621 = vmatpush1.msra.mxu0 0.0
  %1622 = vmatprep.subr.mxu0 0.0
  %1623 = vmatpush1.msra.mxu0 0.0
  %1624 = vmatprep.subr.mxu0 0.0
  %1625 = vmatpush1.msra.mxu0 0.0
  %1626 = vmatprep.subr.mxu0 0.0
  %1627 = vmatpush1.msra.mxu0 0.0
  %1628 = vmatprep.subr.mxu0 0.0
  %1629 = vmatpush1.msra.mxu0 0.0
  %1630 = vmatprep.subr.mxu0 0.0
  %1631 = vmatpush1.msra.mxu0 0.0
  %1632 = vmatprep.subr.mxu0 0.0
  %1633 = vmatpush1.msra.mxu0 0.0
  %1634 = vmatprep.subr.mxu0 0.0
  %1635 = vmatpush1.msra.mxu0 0.0
  %1636 = vmatprep.subr.mxu0 0.0
  %1637 = vmatpush1.msra.mxu0 0.0
  %1638 = vmatprep.subr.mxu0 0.0
  %1639 = vmatpush1.msra.mxu0 0.0
  %1640 = vmatprep.subr.mxu0 0.0
  %1641 = vmatpush1.msra.mxu0 0.0
  %1642 = vmatprep.subr.mxu0 0.0
  %1643 = vmatpush1.msra.mxu0 0.0
  %1644 = vmatprep.subr.mxu0 0.0
  %1645 = vmatpush1.msra.mxu0 0.0
  %1646 = vmatprep.subr.mxu0 0.0
  %1647 = vmatpush1.msra.mxu0 0.0
  %1648 = vmatprep.subr.mxu0 0.0
  %1649 = vmatpush1.msra.mxu0 0.0
  %1650 = vmatprep.subr.mxu0 0.0
  %1651 = vmatpush1.msra.mxu0 0.0
  %1652 = vmatprep.subr.mxu0 0.0
  %1653 = vmatpush1.msra.mxu0 0.0
  %1654 = vmatprep.subr.mxu0 0.0
  %1655 = vmatpush1.msra.mxu0 0.0
  %1656 = vmatprep.subr.mxu0 0.0
  %1657 = vmatpush1.msra.mxu0 0.0
  %1658 = vmatprep.subr.mxu0 0.0
  %1659 = vmatpush1.msra.mxu0 0.0
  %1660 = vmatprep.subr.mxu0 0.0
  %1661 = vmatpush1.msra.mxu0 0.0
  %1662 = vmatprep.subr.mxu0 0.0
  %1663 = vmatpush1.msra.mxu0 0.0
  %1664 = vmatprep.subr.mxu0 0.0
  %1665 = vmatpush1.msra.mxu0 0.0
  %1666 = vmatprep.subr.mxu0 0.0
  %1667 = vmatpush1.msra.mxu0 0.0
  %1668 = vmatprep.mubr.f32.mxu0 0.0
  %v1669 = vand.u32 %v1148, 4294901760
  %1670 = vmatmul.mubr.f32.gmra.mrb[0].mxu0 %v1669
  %v1671 = vpop.f32.mrb[0].mxu0
  %v1672 = vadd.f32 %v1591, %v1671
  %v1673 = vpop.f32.mrb[0].mxu0
  %1674 = vmatprep.mubr.f32.mxu0 0.0
  %v1675 = vand.u32 %v1151, 4294901760
  %1676 = vmatmul.mubr.f32.gmra.mrb[0].mxu0 %v1675
  %v1677 = vpop.f32.mrb[0].mxu0
  %v1678 = vadd.f32 %v1597, %v1677
  %v1679 = vpop.f32.mrb[0].mxu0
  %1680 = vdwg.mxu0
  %vm1681 = vcmask 523264
  %1682 = vst.msk [vmem:[%s11] sm:$0xff] %vm1681, %v1672
  %1683 = vst.msk [vmem:[%s11 + $0x8] sm:$0xff] %vm1681, %v1678
  // Predicated region
  $region38: #{multi_head_attention_l.2} parent=0 // pred_check
    _
  $region39: #{multi_head_attention_l.2} parent=0 // pred_check_branch
    %1685 = sbr.rel (0) target = $region41
  $region40: #{multi_head_attention_l.2} parent=0 // pred_region
    _
  $region41: #{multi_head_attention_l.2} parent=0 // pred_fallthru
    _
  // Predicated region
  $region42: #{multi_head_attention_l.2} parent=0 // pred_check
    _
  $region43: #{multi_head_attention_l.2} parent=0 // pred_check_branch
    %1687 = sbr.rel (0) target = $region45
  $region44: #{multi_head_attention_l.2} parent=0 // pred_region
    _
  $region45: #{multi_head_attention_l.2} parent=0 // pred_fallthru
    _
  // Predicated region
  $region46: #{multi_head_attention_l.2} parent=0 // pred_check
    _
  $region47: #{multi_head_attention_l.2} parent=0 // pred_check_branch
    %1689 = sbr.rel (0) target = $region49
  $region48: #{multi_head_attention_l.2} parent=0 // pred_region
    _
  $region49: #{multi_head_attention_l.2} parent=0 // pred_fallthru
    _
  // Predicated region
  $region50: #{multi_head_attention_l.2} parent=0 // pred_check
    _
  $region51: #{multi_head_attention_l.2} parent=0 // pred_check_branch
    %1691 = sbr.rel (0) target = $region53
  $region52: #{multi_head_attention_l.2} parent=0 // pred_region
    _
  $region53: #{multi_head_attention_l.2} parent=0 // pred_fallthru
    _
  // Predicated region
  $region54: #{multi_head_attention_l.2} parent=0 // pred_check
    _
  $region55: #{multi_head_attention_l.2} parent=0 // pred_check_branch
    %1693 = sbr.rel (0) target = $region57
  $region56: #{multi_head_attention_l.2} parent=0 // pred_region
    _
  $region57: #{multi_head_attention_l.2} parent=0 // pred_fallthru
    _
  // Predicated region
  $region58: #{multi_head_attention_l.2} parent=0 // pred_check
    _
  $region59: #{multi_head_attention_l.2} parent=0 // pred_check_branch
    %1695 = sbr.rel (0) target = $region61
  $region60: #{multi_head_attention_l.2} parent=0 // pred_region
    _
  $region61: #{multi_head_attention_l.2} parent=0 // pred_fallthru
    _

</llo_original>
